<compile_context>
chip_gen: v6e
topology: v6e:2x2x1
jax: 0.10.0
libtpu: 0.0.40
codegen_flags: <defaults>
</compile_context>

<pallas_src>
import functools
import math

import numpy as np
import jax
import jax.numpy as jnp
from jax.experimental import pallas as pl
from jax.experimental.pallas import tpu as pltpu


# ---------------------------------------------------------------------------
# Glue (plain JAX): Swin window partition / reverse, same semantics as PyTorch.
# ---------------------------------------------------------------------------
def window_partition(x, window_size):
    B, H, W, C = x.shape
    x = x.reshape(B, H // window_size, window_size, W // window_size, window_size, C)
    return jnp.transpose(x, (0, 1, 3, 2, 4, 5)).reshape(-1, window_size, window_size, C)


def window_reverse(windows, window_size, H, W):
    B = int(windows.shape[0] / (H * W / window_size / window_size))
    x = windows.reshape(B, H // window_size, W // window_size, window_size, window_size, -1)
    return jnp.transpose(x, (0, 1, 3, 2, 4, 5)).reshape(B, H, W, -1)


# ---------------------------------------------------------------------------
# Pallas kernel: multi-head window attention over W_TILE windows per grid step.
# ---------------------------------------------------------------------------
def _window_attn_kernel(x_ref, wq_ref, wk_ref, wv_ref, bq_ref, bk_ref, bv_ref,
                        wproj_ref, bproj_ref, o_ref, *,
                        w_tile, n_tok, num_heads, head_dim):
    hd_all = num_heads * head_dim
    rows = w_tile * n_tok

    x = x_ref[...]                                              # (rows, C_pad) bf16

    # QKV projections: bf16 operands, f32 accumulation, one bf16 cast each.
    # Softmax scale is pre-folded into wq / bq on the host.
    q = (jnp.dot(x, wq_ref[...], preferred_element_type=jnp.float32)
         + bq_ref[...]).astype(jnp.bfloat16)
    k = (jnp.dot(x, wk_ref[...], preferred_element_type=jnp.float32)
         + bk_ref[...]).astype(jnp.bfloat16)
    v = (jnp.dot(x, wv_ref[...], preferred_element_type=jnp.float32)
         + bv_ref[...]).astype(jnp.bfloat16)

    # Single relayout per tensor: (rows, hd_all) -> (w*h, N, dh).
    def to_heads(t):
        t = t.reshape(w_tile, n_tok, num_heads, head_dim)
        t = jnp.transpose(t, (0, 2, 1, 3))
        return t.reshape(w_tile * num_heads, n_tok, head_dim)

    q3, k3, v3 = to_heads(q), to_heads(k), to_heads(v)

    # Batched attention over all (window, head) pairs: back-to-back MXU pushes.
    s = jnp.einsum('bnd,bmd->bnm', q3, k3,
                   preferred_element_type=jnp.float32)          # (w*h, N, N) f32
    s = s - jnp.max(s, axis=-1, keepdims=True)
    p = jnp.exp(s)
    p = p * pl.reciprocal(jnp.sum(p, axis=-1, keepdims=True), approx=True)

    o3 = jnp.einsum('bnm,bmd->bnd', p.astype(jnp.bfloat16), v3,
                    preferred_element_type=jnp.float32)         # (w*h, N, dh) f32

    # One relayout back to token-major: single lane-dense materialization.
    heads_out = o3.reshape(w_tile, num_heads, n_tok, head_dim)
    heads_out = jnp.transpose(heads_out, (0, 2, 1, 3)).reshape(rows, hd_all)

    # Output-projection GEMM + bias, lane-dense bf16 store (C_pad % 128 == 0).
    out = jnp.dot(heads_out.astype(jnp.bfloat16), wproj_ref[...],
                  preferred_element_type=jnp.float32) + bproj_ref[...]
    o_ref[...] = out.astype(o_ref.dtype)


def window_attention_pallas(x_windows, params, num_heads, head_dim, rows_target=512):
    """x_windows: (nW, N, C) float32 -> (nW, N, C) float32."""
    nW, N, C = x_windows.shape
    hd_all = num_heads * head_dim
    scale = head_dim ** (-0.5)

    # --- tiling --------------------------------------------------------------
    C_pad = ((C + 127) // 128) * 128                   # lane-dense channels
    # rows must be a multiple of 16 (bf16 packs 16 sublanes per vreg)
    step = 16 // math.gcd(N, 16)                       # smallest legal w_tile increment
    w_tile = max(step, (rows_target // max(N, 1)) // step * step)
    w_tile = min(w_tile, math.ceil(nW / step) * step)  # never blow past nW
    if nW >= 2 * step:
        # keep >= 2 grid steps so the "parallel" axis can shard over v7x's 2 TCs
        w_tile = min(w_tile, math.ceil(math.ceil(nW / 2) / step) * step)
    nW_pad = math.ceil(nW / w_tile) * w_tile
    rows = w_tile * N
    n_steps = nW_pad // w_tile

    # --- pack inputs: lane-dense 2-D token slab, bf16 activations/weights -----
    x2d = x_windows.reshape(nW * N, C)
    x2d = jnp.pad(x2d, ((0, (nW_pad - nW) * N), (0, C_pad - C))).astype(jnp.bfloat16)

    wqkv, bqkv = params["wqkv"], params["bqkv"]
    # Separate Q/K/V weight slabs (no unaligned +hd_all / +2*hd_all lane offsets
    # inside the kernel); fold the softmax scale into the Q projection.
    wq = jnp.pad(wqkv[:, :hd_all] * scale, ((0, C_pad - C), (0, 0))).astype(jnp.bfloat16)
    wk = jnp.pad(wqkv[:, hd_all:2 * hd_all], ((0, C_pad - C), (0, 0))).astype(jnp.bfloat16)
    wv = jnp.pad(wqkv[:, 2 * hd_all:], ((0, C_pad - C), (0, 0))).astype(jnp.bfloat16)
    bq = (bqkv[:hd_all] * scale).reshape(1, hd_all).astype(jnp.float32)
    bk = bqkv[hd_all:2 * hd_all].reshape(1, hd_all).astype(jnp.float32)
    bv = bqkv[2 * hd_all:].reshape(1, hd_all).astype(jnp.float32)
    wproj = jnp.pad(params["wproj"], ((0, 0), (0, C_pad - C))).astype(jnp.bfloat16)
    bproj = jnp.pad(params["bproj"], (0, C_pad - C)).reshape(1, C_pad).astype(jnp.float32)

    kernel = functools.partial(_window_attn_kernel, w_tile=w_tile, n_tok=N,
                               num_heads=num_heads, head_dim=head_dim)

    # --- VMEM budget (v5e/v6e: 128 MiB physical; v7x: 64 MiB per TC) ----------
    vmem_est = (
        4 * rows * C_pad * 2                                           # x + out double buffers (bf16)
        + 2 * (4 * C_pad * hd_all * 2 + 3 * hd_all * 4 + C_pad * 4)    # weights/biases (double-buffered)
        + 3 * rows * hd_all * 4                                        # q/k/v f32 pre-cast
        + 2 * w_tile * num_heads * N * N * 4                           # scores + probs f32
        + rows * hd_all * 4 + rows * C_pad * 4                         # head-out + pre-store f32
    )
    vmem_limit = int(min(96 * 1024 * 1024, max(32 * 1024 * 1024, 2 * vmem_est)))
    # TODO(synk): on v7x with large C, additionally single-buffer wq/wk/wv/wproj
    # (pipeline_mode=pl.Buffered(1)); their block index never changes.

    total_rows = nW_pad * N
    cost = pl.CostEstimate(
        flops=int(2 * total_rows * C_pad * 3 * hd_all            # QKV GEMMs
                  + 4 * nW_pad * num_heads * N * N * head_dim    # QK^T + PV
                  + 2 * total_rows * hd_all * C_pad),            # output proj
        transcendentals=int(nW_pad * num_heads * N * (N + 1)),   # exp + reciprocal
        bytes_accessed=int(2 * total_rows * C_pad * 2            # x in + out (bf16)
                           + 4 * C_pad * hd_all * 2              # weights (bf16)
                           + (3 * hd_all + C_pad) * 4),          # biases (f32)
    )

    out2d = pl.pallas_call(
        kernel,
        out_shape=jax.ShapeDtypeStruct((nW_pad * N, C_pad), jnp.bfloat16),
        grid_spec=pltpu.PrefetchScalarGridSpec(
            num_scalar_prefetch=0,
            grid=(n_steps,),
            in_specs=[
                pl.BlockSpec((rows, C_pad), lambda i: (i, 0)),       # x slab tile
                pl.BlockSpec((C_pad, hd_all), lambda i: (0, 0)),     # wq (resident)
                pl.BlockSpec((C_pad, hd_all), lambda i: (0, 0)),     # wk (resident)
                pl.BlockSpec((C_pad, hd_all), lambda i: (0, 0)),     # wv (resident)
                pl.BlockSpec((1, hd_all), lambda i: (0, 0)),         # bq
                pl.BlockSpec((1, hd_all), lambda i: (0, 0)),         # bk
                pl.BlockSpec((1, hd_all), lambda i: (0, 0)),         # bv
                pl.BlockSpec((hd_all, C_pad), lambda i: (0, 0)),     # wproj (resident)
                pl.BlockSpec((1, C_pad), lambda i: (0, 0)),          # bproj
            ],
            out_specs=pl.BlockSpec((rows, C_pad), lambda i: (i, 0)),
        ),
        compiler_params=pltpu.CompilerParams(
            dimension_semantics=("parallel",),       # window tiles shard over TCs
            vmem_limit_bytes=vmem_limit),
        cost_estimate=cost,
    )(x2d, wq, wk, wv, bq, bk, bv, wproj, bproj)

    # crop fake windows / padded channels; single upcast outside the kernel
    return out2d[: nW * N, :C].astype(jnp.float32).reshape(nW, N, C)


# ---------------------------------------------------------------------------
# SwinAttntion forward (defaults: window_size=0 -> window_num path, rpe=False,
# conv=False, moe_enable=False, mask_diag=False, glob_pe='none', shift_size=0).
# ---------------------------------------------------------------------------
class SwinAttentionPallas:
    def __init__(self, dim, num_heads=8, window_num=8, key=None):
        self.dim = dim
        self.num_heads = num_heads
        self.head_dim = dim // num_heads
        self.window_num = window_num
        hd_all = self.head_dim * num_heads

        k1, k2, k3, k4 = jax.random.split(key, 4)
        # Deterministic synthetic parameters (stand-in for nn.Linear weights).
        self.params = {
            "wqkv": jax.random.normal(k1, (dim, 3 * hd_all), jnp.float32) * 0.02,
            "bqkv": jax.random.normal(k2, (3 * hd_all,), jnp.float32) * 0.02,
            "wproj": jax.random.normal(k3, (hd_all, dim), jnp.float32) * 0.02,
            "bproj": jax.random.normal(k4, (dim,), jnp.float32) * 0.02,
        }

    def _padding(self, x):
        B, L, C = x.shape
        H = W = int(np.ceil(np.sqrt(L)))
        _n = -H % self.window_num
        H, W = H + _n, W + _n
        window_size = H // self.window_num
        add_length = H * W - L
        if add_length > 0:
            x = jnp.concatenate([x, jnp.zeros((B, add_length, C), x.dtype)], axis=1)
        return x, H, W, add_length, window_size

    def __call__(self, x, use_pallas=True):
        B, L, C = x.shape
        x, H, W, add_length, window_size = self._padding(x)
        x = x.reshape(B, H, W, C)
        # shift_size == 0 path
        x_windows = window_partition(x, window_size)              # (nW*B, ws, ws, C)
        x_windows = x_windows.reshape(-1, window_size * window_size, C)

        if use_pallas:
            attn_windows = window_attention_pallas(
                x_windows, self.params, self.num_heads, self.head_dim)
        else:
            attn_windows = self._attn_ref(x_windows)

        attn_windows = attn_windows.reshape(-1, window_size, window_size, C)
        x = window_reverse(attn_windows, window_size, H, W)
        x = x.reshape(B, H * W, C)
        if add_length > 0:
            x = x[:, :-add_length]
        return x

    # Pure-JAX (f32) reference of the WindowAttention forward for validation.
    def _attn_ref(self, xw):
        B_, N, C = xw.shape
        nh, dh = self.num_heads, self.head_dim
        p = self.params
        qkv = xw @ p["wqkv"] + p["bqkv"]
        qkv = qkv.reshape(B_, N, 3, nh, dh).transpose(2, 0, 3, 1, 4)
        q, k, v = qkv[0], qkv[1], qkv[2]
        q = q * (dh ** -0.5)
        attn = jnp.einsum("bhnd,bhmd->bhnm", q, k)
        attn = jax.nn.softmax(attn, axis=-1)
        out = jnp.einsum("bhnm,bhmd->bhnd", attn, v)
        out = out.transpose(0, 2, 1, 3).reshape(B_, N, nh * dh)
        return out @ p["wproj"] + p["bproj"]


if __name__ == "__main__":
    key = jax.random.PRNGKey(0)
    kx, kp = jax.random.split(key)

    B, L, C = 2, 60, 32           # L=60 exercises the zero-padding / crop path (H=W=8)
    num_heads, window_num = 4, 2  # window_size becomes 4 -> N = 16 tokens per window

    x = jax.random.normal(kx, (B, L, C), jnp.float32)
    module = SwinAttentionPallas(dim=C, num_heads=num_heads, window_num=window_num, key=kp)

    out = module(x, use_pallas=True)
    out = jax.block_until_ready(out)

    ref = module(x, use_pallas=False)
    assert out.shape == (B, L, C), out.shape
    # bf16 matmul operands + bf16 output slab (f32 accumulation) vs f32 reference
    np.testing.assert_allclose(np.asarray(out), np.asarray(ref), rtol=3e-2, atol=5e-3)

    print("KERNEL_OK")
</pallas_src>

<mosaic_0001>
module attributes {stable_mosaic.version = 11 : i64} {
  func.func @_window_attn_kernel(%arg0: i32, %arg1: memref<64x128xbf16, #tpu.memory_space<vmem>>, %arg2: memref<128x32xbf16, #tpu.memory_space<vmem>>, %arg3: memref<128x32xbf16, #tpu.memory_space<vmem>>, %arg4: memref<128x32xbf16, #tpu.memory_space<vmem>>, %arg5: memref<1x32xf32, #tpu.memory_space<vmem>>, %arg6: memref<1x32xf32, #tpu.memory_space<vmem>>, %arg7: memref<1x32xf32, #tpu.memory_space<vmem>>, %arg8: memref<32x128xbf16, #tpu.memory_space<vmem>>, %arg9: memref<1x128xf32, #tpu.memory_space<vmem>>, %arg10: memref<64x128xbf16, #tpu.memory_space<vmem>>) attributes {dimension_semantics = [#tpu.dimension_semantics<parallel>], iteration_bounds = array<i64: 2>, scalar_prefetch = 0 : i64, scratch_operands = 0 : i64, tpu.core_type = #tpu.core_type<tc>, window_params = [{transform_indices = @transform_0, window_bounds = array<i64: 64, 128>}, {pipeline_mode = #tpu.pipeline_mode<synchronous>, transform_indices = @transform_1, window_bounds = array<i64: 128, 32>}, {pipeline_mode = #tpu.pipeline_mode<synchronous>, transform_indices = @transform_2, window_bounds = array<i64: 128, 32>}, {pipeline_mode = #tpu.pipeline_mode<synchronous>, transform_indices = @transform_3, window_bounds = array<i64: 128, 32>}, {pipeline_mode = #tpu.pipeline_mode<synchronous>, transform_indices = @transform_4, window_bounds = array<i64: 1, 32>}, {pipeline_mode = #tpu.pipeline_mode<synchronous>, transform_indices = @transform_5, window_bounds = array<i64: 1, 32>}, {pipeline_mode = #tpu.pipeline_mode<synchronous>, transform_indices = @transform_6, window_bounds = array<i64: 1, 32>}, {pipeline_mode = #tpu.pipeline_mode<synchronous>, transform_indices = @transform_7, window_bounds = array<i64: 32, 128>}, {pipeline_mode = #tpu.pipeline_mode<synchronous>, transform_indices = @transform_8, window_bounds = array<i64: 1, 128>}, {transform_indices = @transform_9, window_bounds = array<i64: 64, 128>}]} {
    %c0 = arith.constant 0 : index
    %c0_0 = arith.constant 0 : index
    %0 = vector.load %arg1[%c0, %c0_0] : memref<64x128xbf16, #tpu.memory_space<vmem>>, vector<64x128xbf16>
    %c0_1 = arith.constant 0 : index
    %c0_2 = arith.constant 0 : index
    %1 = vector.load %arg2[%c0_1, %c0_2] : memref<128x32xbf16, #tpu.memory_space<vmem>>, vector<128x32xbf16>
    %cst = arith.constant dense<0.000000e+00> : vector<64x32xf32>
    %2 = tpu.matmul %0, %1, %cst {dimension_numbers = #tpu.dot_dimension_numbers<[1], [0], [0], [1], [0, 0, 1, 1], [], []>} : vector<64x128xbf16>, vector<128x32xbf16>, vector<64x32xf32> -> vector<64x32xf32>
    %c0_3 = arith.constant 0 : index
    %c0_4 = arith.constant 0 : index
    %3 = vector.load %arg5[%c0_3, %c0_4] : memref<1x32xf32, #tpu.memory_space<vmem>>, vector<1x32xf32>
    %4 = vector.broadcast %3 : vector<1x32xf32> to vector<64x32xf32>
    %5 = arith.addf %2, %4 : vector<64x32xf32>
    %6 = arith.truncf %5 : vector<64x32xf32> to vector<64x32xbf16>
    %c0_5 = arith.constant 0 : index
    %c0_6 = arith.constant 0 : index
    %7 = vector.load %arg3[%c0_5, %c0_6] : memref<128x32xbf16, #tpu.memory_space<vmem>>, vector<128x32xbf16>
    %cst_7 = arith.constant dense<0.000000e+00> : vector<64x32xf32>
    %8 = tpu.matmul %0, %7, %cst_7 {dimension_numbers = #tpu.dot_dimension_numbers<[1], [0], [0], [1], [0, 0, 1, 1], [], []>} : vector<64x128xbf16>, vector<128x32xbf16>, vector<64x32xf32> -> vector<64x32xf32>
    %c0_8 = arith.constant 0 : index
    %c0_9 = arith.constant 0 : index
    %9 = vector.load %arg6[%c0_8, %c0_9] : memref<1x32xf32, #tpu.memory_space<vmem>>, vector<1x32xf32>
    %10 = vector.broadcast %9 : vector<1x32xf32> to vector<64x32xf32>
    %11 = arith.addf %8, %10 : vector<64x32xf32>
    %12 = arith.truncf %11 : vector<64x32xf32> to vector<64x32xbf16>
    %c0_10 = arith.constant 0 : index
    %c0_11 = arith.constant 0 : index
    %13 = vector.load %arg4[%c0_10, %c0_11] : memref<128x32xbf16, #tpu.memory_space<vmem>>, vector<128x32xbf16>
    %cst_12 = arith.constant dense<0.000000e+00> : vector<64x32xf32>
    %14 = tpu.matmul %0, %13, %cst_12 {dimension_numbers = #tpu.dot_dimension_numbers<[1], [0], [0], [1], [0, 0, 1, 1], [], []>} : vector<64x128xbf16>, vector<128x32xbf16>, vector<64x32xf32> -> vector<64x32xf32>
    %c0_13 = arith.constant 0 : index
    %c0_14 = arith.constant 0 : index
    %15 = vector.load %arg7[%c0_13, %c0_14] : memref<1x32xf32, #tpu.memory_space<vmem>>, vector<1x32xf32>
    %16 = vector.broadcast %15 : vector<1x32xf32> to vector<64x32xf32>
    %17 = arith.addf %14, %16 : vector<64x32xf32>
    %18 = arith.truncf %17 : vector<64x32xf32> to vector<64x32xbf16>
    %19 = vector.shape_cast %6 : vector<64x32xbf16> to vector<4x16x4x8xbf16>
    %20 = tpu.transpose %19, [0, 2, 1, 3] : vector<4x16x4x8xbf16> -> vector<4x4x16x8xbf16>
    %21 = vector.shape_cast %20 : vector<4x4x16x8xbf16> to vector<16x16x8xbf16>
    %22 = vector.shape_cast %12 : vector<64x32xbf16> to vector<4x16x4x8xbf16>
    %23 = tpu.transpose %22, [0, 2, 1, 3] : vector<4x16x4x8xbf16> -> vector<4x4x16x8xbf16>
    %24 = vector.shape_cast %23 : vector<4x4x16x8xbf16> to vector<16x16x8xbf16>
    %25 = vector.shape_cast %18 : vector<64x32xbf16> to vector<4x16x4x8xbf16>
    %26 = tpu.transpose %25, [0, 2, 1, 3] : vector<4x16x4x8xbf16> -> vector<4x4x16x8xbf16>
    %27 = vector.shape_cast %26 : vector<4x4x16x8xbf16> to vector<16x16x8xbf16>
    "tpu.trace_start"() <{level = 10 : i32, message = "bnd,bmd->bnm"}> : () -> ()
    %cst_15 = arith.constant dense<0.000000e+00> : vector<16x16x16xf32>
    %28 = tpu.matmul %21, %24, %cst_15 {dimension_numbers = #tpu.dot_dimension_numbers<[2], [2], [1], [1], [0, 0, 0, 1, 1, 1], [0], [0]>} : vector<16x16x8xbf16>, vector<16x16x8xbf16>, vector<16x16x16xf32> -> vector<16x16x16xf32>
    "tpu.trace_stop"() : () -> ()
    %cst_16 = arith.constant dense<0xFF800000> : vector<16x16xf32>
    %29 = vector.multi_reduction <maximumf>, %28, %cst_16 [2] : vector<16x16x16xf32> to vector<16x16xf32>
    %30 = vector.shape_cast %29 : vector<16x16xf32> to vector<16x16x1xf32>
    %31 = vector.broadcast %30 : vector<16x16x1xf32> to vector<16x16x16xf32>
    %32 = arith.subf %28, %31 : vector<16x16x16xf32>
    %33 = math.exp %32 : vector<16x16x16xf32>
    %cst_17 = arith.constant dense<0.000000e+00> : vector<16x16xf32>
    %34 = vector.multi_reduction <add>, %33, %cst_17 [2] : vector<16x16x16xf32> to vector<16x16xf32>
    %35 = vector.shape_cast %34 : vector<16x16xf32> to vector<16x16x1xf32>
    %36 = tpu.reciprocal %35 {approx = true} : vector<16x16x1xf32> -> vector<16x16x1xf32>
    %37 = vector.broadcast %36 : vector<16x16x1xf32> to vector<16x16x16xf32>
    %38 = arith.mulf %33, %37 : vector<16x16x16xf32>
    %39 = arith.truncf %38 : vector<16x16x16xf32> to vector<16x16x16xbf16>
    "tpu.trace_start"() <{level = 10 : i32, message = "bnm,bmd->bnd"}> : () -> ()
    %cst_18 = arith.constant dense<0.000000e+00> : vector<16x16x8xf32>
    %40 = tpu.matmul %39, %27, %cst_18 {dimension_numbers = #tpu.dot_dimension_numbers<[2], [1], [1], [2], [0, 0, 0, 1, 1, 2], [0], [0]>} : vector<16x16x16xbf16>, vector<16x16x8xbf16>, vector<16x16x8xf32> -> vector<16x16x8xf32>
    "tpu.trace_stop"() : () -> ()
    %41 = vector.shape_cast %40 : vector<16x16x8xf32> to vector<4x4x16x8xf32>
    %42 = tpu.transpose %41, [0, 2, 1, 3] : vector<4x4x16x8xf32> -> vector<4x16x4x8xf32>
    %43 = vector.shape_cast %42 : vector<4x16x4x8xf32> to vector<64x32xf32>
    %44 = arith.truncf %43 : vector<64x32xf32> to vector<64x32xbf16>
    %c0_19 = arith.constant 0 : index
    %c0_20 = arith.constant 0 : index
    %45 = vector.load %arg8[%c0_19, %c0_20] : memref<32x128xbf16, #tpu.memory_space<vmem>>, vector<32x128xbf16>
    %cst_21 = arith.constant dense<0.000000e+00> : vector<64x128xf32>
    %46 = tpu.matmul %44, %45, %cst_21 {dimension_numbers = #tpu.dot_dimension_numbers<[1], [0], [0], [1], [0, 0, 1, 1], [], []>} : vector<64x32xbf16>, vector<32x128xbf16>, vector<64x128xf32> -> vector<64x128xf32>
    %c0_22 = arith.constant 0 : index
    %c0_23 = arith.constant 0 : index
    %47 = vector.load %arg9[%c0_22, %c0_23] : memref<1x128xf32, #tpu.memory_space<vmem>>, vector<1x128xf32>
    %48 = vector.broadcast %47 : vector<1x128xf32> to vector<64x128xf32>
    %49 = arith.addf %46, %48 : vector<64x128xf32>
    %50 = arith.truncf %49 : vector<64x128xf32> to vector<64x128xbf16>
    %c0_24 = arith.constant 0 : index
    %c0_25 = arith.constant 0 : index
    %51 = vector.load %arg10[%c0_24, %c0_25] : memref<64x128xbf16, #tpu.memory_space<vmem>>, vector<64x128xbf16>
    tpu.vector_store %arg10[%c0_24, %c0_25], %50 {strides = array<i32>} : memref<64x128xbf16, #tpu.memory_space<vmem>>, vector<64x128xbf16>,
    return
  }
  func.func @transform_0(%arg0: i32) -> (i32, i32) {
    %c0_i32 = arith.constant 0 : i32
    %c0_i32_0 = arith.constant 0 : i32
    return %arg0, %c0_i32 : i32, i32
  }
  func.func @transform_1(%arg0: i32) -> (i32, i32) {
    %c0_i32 = arith.constant 0 : i32
    %c0_i32_0 = arith.constant 0 : i32
    %c0_i32_1 = arith.constant 0 : i32
    return %c0_i32, %c0_i32_0 : i32, i32
  }
  func.func @transform_2(%arg0: i32) -> (i32, i32) {
    %c0_i32 = arith.constant 0 : i32
    %c0_i32_0 = arith.constant 0 : i32
    %c0_i32_1 = arith.constant 0 : i32
    return %c0_i32, %c0_i32_0 : i32, i32
  }
  func.func @transform_3(%arg0: i32) -> (i32, i32) {
    %c0_i32 = arith.constant 0 : i32
    %c0_i32_0 = arith.constant 0 : i32
    %c0_i32_1 = arith.constant 0 : i32
    return %c0_i32, %c0_i32_0 : i32, i32
  }
  func.func @transform_4(%arg0: i32) -> (i32, i32) {
    %c0_i32 = arith.constant 0 : i32
    %c0_i32_0 = arith.constant 0 : i32
    %c0_i32_1 = arith.constant 0 : i32
    return %c0_i32, %c0_i32_0 : i32, i32
  }
  func.func @transform_5(%arg0: i32) -> (i32, i32) {
    %c0_i32 = arith.constant 0 : i32
    %c0_i32_0 = arith.constant 0 : i32
    %c0_i32_1 = arith.constant 0 : i32
    return %c0_i32, %c0_i32_0 : i32, i32
  }
  func.func @transform_6(%arg0: i32) -> (i32, i32) {
    %c0_i32 = arith.constant 0 : i32
    %c0_i32_0 = arith.constant 0 : i32
    %c0_i32_1 = arith.constant 0 : i32
    return %c0_i32, %c0_i32_0 : i32, i32
  }
  func.func @transform_7(%arg0: i32) -> (i32, i32) {
    %c0_i32 = arith.constant 0 : i32
    %c0_i32_0 = arith.constant 0 : i32
    %c0_i32_1 = arith.constant 0 : i32
    return %c0_i32, %c0_i32_0 : i32, i32
  }
  func.func @transform_8(%arg0: i32) -> (i32, i32) {
    %c0_i32 = arith.constant 0 : i32
    %c0_i32_0 = arith.constant 0 : i32
    %c0_i32_1 = arith.constant 0 : i32
    return %c0_i32, %c0_i32_0 : i32, i32
  }
  func.func @transform_9(%arg0: i32) -> (i32, i32) {
    %c0_i32 = arith.constant 0 : i32
    %c0_i32_0 = arith.constant 0 : i32
    return %arg0, %c0_i32 : i32, i32
  }
}

</mosaic_0001>

<llo_original>
// kernel: tpu_custom_call.1
$region0: #{tpu_custom_call.1}
  #allocation0 [shape = 'u32[]', space=smem, size = 0x4, offset = 0x4, fixed_abs, tag = 'smem constant byte address 0x4 - core index']
  #allocation1 [shape = 'u32[144,128]{1,0:T(1,128)}', space=vmem, size = 0x12000, scoped, tag = 'internal scratch']
  %s0 = inlined_call_operand.vmem [shape: bf16[128,128], index: 0, kind: input, shape index: {}]
  %s1 = inlined_call_operand.vmem [shape: bf16[128,32], index: 1, kind: input, shape index: {}]
  %s2 = inlined_call_operand.vmem [shape: bf16[128,32], index: 2, kind: input, shape index: {}]
  %s3 = inlined_call_operand.vmem [shape: bf16[128,32], index: 3, kind: input, shape index: {}]
  %s4 = inlined_call_operand.vmem [shape: f32[1,32], index: 4, kind: input, shape index: {}]
  %s5 = inlined_call_operand.vmem [shape: f32[1,32], index: 5, kind: input, shape index: {}]
  %s6 = inlined_call_operand.vmem [shape: f32[1,32], index: 6, kind: input, shape index: {}]
  %s7 = inlined_call_operand.vmem [shape: bf16[32,128], index: 7, kind: input, shape index: {}]
  %s8 = inlined_call_operand.vmem [shape: f32[1,128], index: 8, kind: input, shape index: {}]
  %s9 = inlined_call_operand.hbm [shape: bf16[128,128], index: 9, kind: output, shape index: {}]
  %s10 = sld [smem:[#allocation0]]
  $region69: #{tpu_custom_call.1} parent=0
    _
  %s12 = ssub.s32 1, %s10
  %s13 = scalar_select 0, %s12, %s10
  $region1: #{tpu_custom_call.1} parent=0
    #allocation2 [shape = 'u8[32768]{0}', space=vmem, size = 0x8000, scoped, tag = 'output window, operand 0']
    #allocation3 [shape = 's32[2]{0}', space=sflag, size = 0x8, scoped, tag = 'scoped memory for tpu_custom_call.1']
    %14 = vsyncpa [#allocation3], 0
    %s15 = scalar_lea.sflag [#allocation3], 1
    %16 = vsyncpa %s15, 0
    loop: start=0, step=1, limit=4
    $region2: #{tpu_custom_call.1} parent=1 // loop_pre_header
      _
    $region3: #{tpu_custom_call.1} parent=1 // loop_header
      %s18 = sphi 0, %s22
      %p19 = scmp.ge.s32.totalorder %s18, 4
      %s28 = sphi 0, %s30
      %s31 = sphi 0, %s28
      %s32 = sphi 0, %s31
      %s48 = sphi 0, %s32
      %s52 = sphi 0, %s52
      %s54 = sphi 0, %s52
      %s55 = sphi 0, %s54
      %s69 = sphi 0, %s55
      %s73 = sphi 0, %s73
      %s75 = sphi 0, %s73
      %s76 = sphi 0, %s75
      %s90 = sphi 0, %s76
      %s94 = sphi 0, %s94
      %s96 = sphi 0, %s94
      %s97 = sphi 0, %s96
      %s111 = sphi 0, %s97
      %s115 = sphi 0, %s115
      %s117 = sphi 0, %s115
      %s118 = sphi 0, %s117
      %s132 = sphi 0, %s118
      %s136 = sphi 0, %s136
      %s138 = sphi 0, %s136
      %s139 = sphi 0, %s138
      %s153 = sphi 0, %s139
      %s157 = sphi 0, %s157
      %s159 = sphi 0, %s157
      %s160 = sphi 0, %s159
      %s174 = sphi 0, %s160
      %s178 = sphi 0, %s178
      %s180 = sphi 0, %s178
      %s181 = sphi 0, %s180
      %s195 = sphi 0, %s181
      %s199 = sphi 0, %s199
      %s201 = sphi 0, %s199
      %s202 = sphi 0, %s201
      %s216 = sphi 0, %s202
      %s222 = sphi 0, %s224
      %s225 = sphi 0, %s222
      %s226 = sphi 0, %s225
      %s242 = sphi 0, %s226
    $region4: #{tpu_custom_call.1} parent=1 // loop_header_branch
      %21 = sbr.rel (%p19) target = $region8
    $region5: #{tpu_custom_call.1} parent=1 // loop_body
      %s23 = ssub.s32 %s18, 1
      %s24 = ssub.s32 %s18, 2
      %s25 = sadd.s32 %s18, 1
      %s26 = ssub.s32 %s18, %s25
      %p27 = scmp.eq.s32.totalorder %s26, 0
      %s29 = sadd.s32 %s28, 1
      %s30 = scalar_select %p27, %s28, %s29
      %p33 = pneg %p27
      %p34 = scmp.eq.s32.totalorder %s18, 1
      %p35 = por %p33, %p34
      %p36 = scmp.ne.s32.totalorder %s28, %s31
      %p37 = scmp.eq.s32.totalorder %s18, 0
      %p38 = por %p36, %p37
      %p39 = scmp.ne.s32.totalorder %s28, %s31
      %p40 = scmp.eq.s32.totalorder %s23, 1
      %p41 = por %p39, %p40
      %p42 = scmp.ne.s32.totalorder %s31, %s32
      %p43 = scmp.eq.s32.totalorder %s23, 0
      %p44 = por %p42, %p43
      %p45 = scmp.ne.s32.totalorder %s31, %s32
      %p46 = scmp.eq.s32.totalorder %s24, 1
      %p47 = por %p45, %p46
      %p49 = scmp.ne.s32.totalorder %s32, %s48
      %p50 = scmp.eq.s32.totalorder %s24, 0
      %p51 = por %p49, %p50
      %s53 = sadd.s32 %s52, 1
      %p56 = scmp.eq.s32.totalorder %s18, 1
      %p57 = scmp.ne.s32.totalorder %s52, %s54
      %p58 = scmp.eq.s32.totalorder %s18, 0
      %p59 = por %p57, %p58
      %p60 = scmp.ne.s32.totalorder %s52, %s54
      %p61 = scmp.eq.s32.totalorder %s23, 1
      %p62 = por %p60, %p61
      %p63 = scmp.ne.s32.totalorder %s54, %s55
      %p64 = scmp.eq.s32.totalorder %s23, 0
      %p65 = por %p63, %p64
      %p66 = scmp.ne.s32.totalorder %s54, %s55
      %p67 = scmp.eq.s32.totalorder %s24, 1
      %p68 = por %p66, %p67
      %p70 = scmp.ne.s32.totalorder %s55, %s69
      %p71 = scmp.eq.s32.totalorder %s24, 0
      %p72 = por %p70, %p71
      %s74 = sadd.s32 %s73, 1
      %p77 = scmp.eq.s32.totalorder %s18, 1
      %p78 = scmp.ne.s32.totalorder %s73, %s75
      %p79 = scmp.eq.s32.totalorder %s18, 0
      %p80 = por %p78, %p79
      %p81 = scmp.ne.s32.totalorder %s73, %s75
      %p82 = scmp.eq.s32.totalorder %s23, 1
      %p83 = por %p81, %p82
      %p84 = scmp.ne.s32.totalorder %s75, %s76
      %p85 = scmp.eq.s32.totalorder %s23, 0
      %p86 = por %p84, %p85
      %p87 = scmp.ne.s32.totalorder %s75, %s76
      %p88 = scmp.eq.s32.totalorder %s24, 1
      %p89 = por %p87, %p88
      %p91 = scmp.ne.s32.totalorder %s76, %s90
      %p92 = scmp.eq.s32.totalorder %s24, 0
      %p93 = por %p91, %p92
      %s95 = sadd.s32 %s94, 1
      %p98 = scmp.eq.s32.totalorder %s18, 1
      %p99 = scmp.ne.s32.totalorder %s94, %s96
      %p100 = scmp.eq.s32.totalorder %s18, 0
      %p101 = por %p99, %p100
      %p102 = scmp.ne.s32.totalorder %s94, %s96
      %p103 = scmp.eq.s32.totalorder %s23, 1
      %p104 = por %p102, %p103
      %p105 = scmp.ne.s32.totalorder %s96, %s97
      %p106 = scmp.eq.s32.totalorder %s23, 0
      %p107 = por %p105, %p106
      %p108 = scmp.ne.s32.totalorder %s96, %s97
      %p109 = scmp.eq.s32.totalorder %s24, 1
      %p110 = por %p108, %p109
      %p112 = scmp.ne.s32.totalorder %s97, %s111
      %p113 = scmp.eq.s32.totalorder %s24, 0
      %p114 = por %p112, %p113
      %s116 = sadd.s32 %s115, 1
      %p119 = scmp.eq.s32.totalorder %s18, 1
      %p120 = scmp.ne.s32.totalorder %s115, %s117
      %p121 = scmp.eq.s32.totalorder %s18, 0
      %p122 = por %p120, %p121
      %p123 = scmp.ne.s32.totalorder %s115, %s117
      %p124 = scmp.eq.s32.totalorder %s23, 1
      %p125 = por %p123, %p124
      %p126 = scmp.ne.s32.totalorder %s117, %s118
      %p127 = scmp.eq.s32.totalorder %s23, 0
      %p128 = por %p126, %p127
      %p129 = scmp.ne.s32.totalorder %s117, %s118
      %p130 = scmp.eq.s32.totalorder %s24, 1
      %p131 = por %p129, %p130
      %p133 = scmp.ne.s32.totalorder %s118, %s132
      %p134 = scmp.eq.s32.totalorder %s24, 0
      %p135 = por %p133, %p134
      %s137 = sadd.s32 %s136, 1
      %p140 = scmp.eq.s32.totalorder %s18, 1
      %p141 = scmp.ne.s32.totalorder %s136, %s138
      %p142 = scmp.eq.s32.totalorder %s18, 0
      %p143 = por %p141, %p142
      %p144 = scmp.ne.s32.totalorder %s136, %s138
      %p145 = scmp.eq.s32.totalorder %s23, 1
      %p146 = por %p144, %p145
      %p147 = scmp.ne.s32.totalorder %s138, %s139
      %p148 = scmp.eq.s32.totalorder %s23, 0
      %p149 = por %p147, %p148
      %p150 = scmp.ne.s32.totalorder %s138, %s139
      %p151 = scmp.eq.s32.totalorder %s24, 1
      %p152 = por %p150, %p151
      %p154 = scmp.ne.s32.totalorder %s139, %s153
      %p155 = scmp.eq.s32.totalorder %s24, 0
      %p156 = por %p154, %p155
      %s158 = sadd.s32 %s157, 1
      %p161 = scmp.eq.s32.totalorder %s18, 1
      %p162 = scmp.ne.s32.totalorder %s157, %s159
      %p163 = scmp.eq.s32.totalorder %s18, 0
      %p164 = por %p162, %p163
      %p165 = scmp.ne.s32.totalorder %s157, %s159
      %p166 = scmp.eq.s32.totalorder %s23, 1
      %p167 = por %p165, %p166
      %p168 = scmp.ne.s32.totalorder %s159, %s160
      %p169 = scmp.eq.s32.totalorder %s23, 0
      %p170 = por %p168, %p169
      %p171 = scmp.ne.s32.totalorder %s159, %s160
      %p172 = scmp.eq.s32.totalorder %s24, 1
      %p173 = por %p171, %p172
      %p175 = scmp.ne.s32.totalorder %s160, %s174
      %p176 = scmp.eq.s32.totalorder %s24, 0
      %p177 = por %p175, %p176
      %s179 = sadd.s32 %s178, 1
      %p182 = scmp.eq.s32.totalorder %s18, 1
      %p183 = scmp.ne.s32.totalorder %s178, %s180
      %p184 = scmp.eq.s32.totalorder %s18, 0
      %p185 = por %p183, %p184
      %p186 = scmp.ne.s32.totalorder %s178, %s180
      %p187 = scmp.eq.s32.totalorder %s23, 1
      %p188 = por %p186, %p187
      %p189 = scmp.ne.s32.totalorder %s180, %s181
      %p190 = scmp.eq.s32.totalorder %s23, 0
      %p191 = por %p189, %p190
      %p192 = scmp.ne.s32.totalorder %s180, %s181
      %p193 = scmp.eq.s32.totalorder %s24, 1
      %p194 = por %p192, %p193
      %p196 = scmp.ne.s32.totalorder %s181, %s195
      %p197 = scmp.eq.s32.totalorder %s24, 0
      %p198 = por %p196, %p197
      %s200 = sadd.s32 %s199, 1
      %p203 = scmp.eq.s32.totalorder %s18, 1
      %p204 = scmp.ne.s32.totalorder %s199, %s201
      %p205 = scmp.eq.s32.totalorder %s18, 0
      %p206 = por %p204, %p205
      %p207 = scmp.ne.s32.totalorder %s199, %s201
      %p208 = scmp.eq.s32.totalorder %s23, 1
      %p209 = por %p207, %p208
      %p210 = scmp.ne.s32.totalorder %s201, %s202
      %p211 = scmp.eq.s32.totalorder %s23, 0
      %p212 = por %p210, %p211
      %p213 = scmp.ne.s32.totalorder %s201, %s202
      %p214 = scmp.eq.s32.totalorder %s24, 1
      %p215 = por %p213, %p214
      %p217 = scmp.ne.s32.totalorder %s202, %s216
      %p218 = scmp.eq.s32.totalorder %s24, 0
      %p219 = por %p217, %p218
      %s220 = ssub.s32 %s18, %s25
      %p221 = scmp.eq.s32.totalorder %s220, 0
      %s223 = sadd.s32 %s222, 1
      %s224 = scalar_select %p221, %s222, %s223
      %p227 = pneg %p221
      %p228 = scmp.eq.s32.totalorder %s18, 1
      %p229 = por %p227, %p228
      %p230 = scmp.ne.s32.totalorder %s222, %s225
      %p231 = scmp.eq.s32.totalorder %s18, 0
      %p232 = por %p230, %p231
      %p233 = scmp.ne.s32.totalorder %s222, %s225
      %p234 = scmp.eq.s32.totalorder %s23, 1
      %p235 = por %p233, %p234
      %p236 = scmp.ne.s32.totalorder %s225, %s226
      %p237 = scmp.eq.s32.totalorder %s23, 0
      %p238 = por %p236, %p237
      %p239 = scmp.ne.s32.totalorder %s225, %s226
      %p240 = scmp.eq.s32.totalorder %s24, 1
      %p241 = por %p239, %p240
      %p243 = scmp.ne.s32.totalorder %s226, %s242
      %p244 = scmp.eq.s32.totalorder %s24, 0
      %p245 = por %p243, %p244
      %p246 = scmp.le.s32.totalorder 1, %s18
      %p247 = scmp.lt.s32.totalorder %s18, 3
      %p248 = pnand %p246, %p247
      %p249 = pneg %p248
      // Predicated region
      $region9: #{tpu_custom_call.1} parent=5 // pred_check
        _
      $region10: #{tpu_custom_call.1} parent=5 // pred_check_branch
        %251 = sbr.rel (%p248) target = $region12
      $region11: #{tpu_custom_call.1} parent=5 // pred_region
        %s252 = ssub.s32 %s18, 1
        // Predicated region
        $region13: #{tpu_custom_call.1} parent=11 // pred_check
          %p253 = pneg %p65
        $region14: #{tpu_custom_call.1} parent=11 // pred_check_branch
          %255 = sbr.rel (%p253) target = $region16
        $region15: #{tpu_custom_call.1} parent=11 // pred_region
          _
        $region16: #{tpu_custom_call.1} parent=11 // pred_fallthru
          _
        // Predicated region
        $region17: #{tpu_custom_call.1} parent=11 // pred_check
          %p256 = pneg %p86
        $region18: #{tpu_custom_call.1} parent=11 // pred_check_branch
          %258 = sbr.rel (%p256) target = $region20
        $region19: #{tpu_custom_call.1} parent=11 // pred_region
          _
        $region20: #{tpu_custom_call.1} parent=11 // pred_fallthru
          _
        // Predicated region
        $region21: #{tpu_custom_call.1} parent=11 // pred_check
          %p259 = pneg %p107
        $region22: #{tpu_custom_call.1} parent=11 // pred_check_branch
          %261 = sbr.rel (%p259) target = $region24
        $region23: #{tpu_custom_call.1} parent=11 // pred_region
          _
        $region24: #{tpu_custom_call.1} parent=11 // pred_fallthru
          _
        // Predicated region
        $region25: #{tpu_custom_call.1} parent=11 // pred_check
          %p262 = pneg %p128
        $region26: #{tpu_custom_call.1} parent=11 // pred_check_branch
          %264 = sbr.rel (%p262) target = $region28
        $region27: #{tpu_custom_call.1} parent=11 // pred_region
          _
        $region28: #{tpu_custom_call.1} parent=11 // pred_fallthru
          _
        // Predicated region
        $region29: #{tpu_custom_call.1} parent=11 // pred_check
          %p265 = pneg %p149
        $region30: #{tpu_custom_call.1} parent=11 // pred_check_branch
          %267 = sbr.rel (%p265) target = $region32
        $region31: #{tpu_custom_call.1} parent=11 // pred_region
          _
        $region32: #{tpu_custom_call.1} parent=11 // pred_fallthru
          _
        // Predicated region
        $region33: #{tpu_custom_call.1} parent=11 // pred_check
          %p268 = pneg %p170
        $region34: #{tpu_custom_call.1} parent=11 // pred_check_branch
          %270 = sbr.rel (%p268) target = $region36
        $region35: #{tpu_custom_call.1} parent=11 // pred_region
          _
        $region36: #{tpu_custom_call.1} parent=11 // pred_fallthru
          _
        // Predicated region
        $region37: #{tpu_custom_call.1} parent=11 // pred_check
          %p271 = pneg %p191
        $region38: #{tpu_custom_call.1} parent=11 // pred_check_branch
          %273 = sbr.rel (%p271) target = $region40
        $region39: #{tpu_custom_call.1} parent=11 // pred_region
          _
        $region40: #{tpu_custom_call.1} parent=11 // pred_fallthru
          _
        // Predicated region
        $region41: #{tpu_custom_call.1} parent=11 // pred_check
          %p274 = pneg %p212
        $region42: #{tpu_custom_call.1} parent=11 // pred_check_branch
          %276 = sbr.rel (%p274) target = $region44
        $region43: #{tpu_custom_call.1} parent=11 // pred_region
          _
        $region44: #{tpu_custom_call.1} parent=11 // pred_fallthru
          _
      $region12: #{tpu_custom_call.1} parent=5 // pred_fallthru
        _
      %p277 = scmp.lt.s32.totalorder %s18, 2
      // Predicated region
      $region45: #{tpu_custom_call.1} parent=5 // pred_check
        %p278 = pneg %p277
      $region46: #{tpu_custom_call.1} parent=5 // pred_check_branch
        %280 = sbr.rel (%p278) target = $region48
      $region47: #{tpu_custom_call.1} parent=5 // pred_region
        // Predicated region
        $region49: #{tpu_custom_call.1} parent=47 // pred_check
          %p281 = pneg %p38
        $region50: #{tpu_custom_call.1} parent=47 // pred_check_branch
          %283 = sbr.rel (%p281) target = $region52
        $region51: #{tpu_custom_call.1} parent=47 // pred_region
          %s284 = smul.u32 8, %s18
          %p285 = scmp.lt.s32.totalorder %s284, 15
          %s286 = scalar_select %p285, %s284, 15
          %s287 = smul.addr %s286, 4
          %s288 = scalar_lea.vmem %s0, %s287
          %s289 = smul.u32 8, %s18
        $region52: #{tpu_custom_call.1} parent=47 // pred_fallthru
          _
      $region48: #{tpu_custom_call.1} parent=5 // pred_fallthru
        _
      %p290 = scmp.le.s32.totalorder 1, %s18
      %p291 = scmp.lt.s32.totalorder %s18, 3
      %p292 = pnand %p290, %p291
      %p293 = pneg %p292
      // Predicated region
      $region53: #{tpu_custom_call.1} parent=5 // pred_check
        _
      $region54: #{tpu_custom_call.1} parent=5 // pred_check_branch
        %295 = sbr.rel (%p292) target = $region56
      $region55: #{tpu_custom_call.1} parent=5 // pred_region
        %s296 = ssub.s32 %s18, 1
        %s297 = smul.u32 8, %s23
        %p298 = scmp.lt.s32.totalorder %s297, 15
        %s299 = scalar_select %p298, %s297, 15
        %s300 = smul.addr %s299, 4
        %s301 = scalar_lea.vmem %s0, %s300
        %p302 = pneg %p44
        %p303 = pneg %p41
        %p304 = pneg %p65
        %p305 = pneg %p62
        %p306 = pneg %p86
        %p307 = pneg %p83
        %p308 = pneg %p107
        %p309 = pneg %p104
        %p310 = pneg %p128
        %p311 = pneg %p125
        %p312 = pneg %p149
        %p313 = pneg %p146
        %p314 = pneg %p170
        %p315 = pneg %p167
        %p316 = pneg %p191
        %p317 = pneg %p188
        %p318 = pneg %p212
        %p319 = pneg %p209
        %p320 = pneg %p238
        %p321 = pneg %p235
        %s322 = sand.u32 %s225, 1
        %s323 = scalar_lea.sflag [#allocation3], %s322
        %s324 = sand.u32 %s225, 1
        %s325 = smul.addr %s324, 32
        %s326 = scalar_lea.vmem [#allocation2], %s325
        %s327 = smul.u32 8, %s23
        %p328 = scmp.lt.s32.totalorder %s327, 15
        %s329 = scalar_select %p328, %s327, 15
        %s330 = smul.addr %s329, 4
        %s331 = scalar_lea.vmem %s0, %s330
        %s332 = smul.u32 8, %s23
        %s333 = smul.u32 8, %s23
        %v335 = vld [vmem:[%s331] sm:$0xf]
        %v336 = vld [vmem:[%s331 + $0x4] sm:$0xf]
        %v337 = vld [vmem:[%s331 + $0x8] sm:$0xf]
        %v338 = vld [vmem:[%s331 + $0xc] sm:$0xf]
        %v339 = vld [vmem:[%s331 + $0x10] sm:$0xf]
        %v340 = vld [vmem:[%s331 + $0x14] sm:$0xf]
        %v341 = vld [vmem:[%s331 + $0x18] sm:$0xf]
        %v342 = vld [vmem:[%s331 + $0x1c] sm:$0xf]
        %v343 = vld [vmem:[%s1] sm:$0xf]
        %v344 = vld [vmem:[%s1 + $0x4] sm:$0xf]
        %v345 = vld [vmem:[%s1 + $0x8] sm:$0xf]
        %v346 = vld [vmem:[%s1 + $0xc] sm:$0xf]
        %v347 = vld [vmem:[%s1 + $0x10] sm:$0xf]
        %v348 = vld [vmem:[%s1 + $0x14] sm:$0xf]
        %v349 = vld [vmem:[%s1 + $0x18] sm:$0xf]
        %v350 = vld [vmem:[%s1 + $0x1c] sm:$0xf]
        %v351 = vld [vmem:[%s1 + $0x20] sm:$0xf]
        %v352 = vld [vmem:[%s1 + $0x24] sm:$0xf]
        %v353 = vld [vmem:[%s1 + $0x28] sm:$0xf]
        %v354 = vld [vmem:[%s1 + $0x2c] sm:$0xf]
        %v355 = vld [vmem:[%s1 + $0x30] sm:$0xf]
        %v356 = vld [vmem:[%s1 + $0x34] sm:$0xf]
        %v357 = vld [vmem:[%s1 + $0x38] sm:$0xf]
        %v358 = vld [vmem:[%s1 + $0x3c] sm:$0xf]
        %v359 = vld [vmem:[%s4] sm:$0x1]
        %v361 = vlaneseq
        %v362 = vshrl.u32 %v361, 7
        %v363 = vsub.s32 0, %v362
        %v364 = vrot.slane %v359, %v363
        %v374 = vunpack.c.l.b16 %v335
        %v375 = vunpack.c.l.b16 %v336
        %v376 = vunpack.c.l.b16 %v337
        %v377 = vunpack.c.l.b16 %v338
        %v378 = vunpack.c.l.b16 %v339
        %v379 = vunpack.c.l.b16 %v340
        %v380 = vunpack.c.l.b16 %v341
        %v381 = vunpack.c.l.b16 %v342
        %v382 = vpack.c.b16 %v375, %v374
        %v383 = vpack.c.b16 %v377, %v376
        %v384 = vpack.c.b16 %v379, %v378
        %v385 = vpack.c.b16 %v381, %v380
        %v406 = vunpack.c.l.b16 %v343
        %v407 = vunpack.c.l.b16 %v344
        %v408 = vunpack.c.l.b16 %v345
        %v409 = vunpack.c.l.b16 %v346
        %v410 = vunpack.c.l.b16 %v347
        %v411 = vunpack.c.l.b16 %v348
        %v412 = vunpack.c.l.b16 %v349
        %v413 = vunpack.c.l.b16 %v350
        %v414 = vunpack.c.l.b16 %v351
        %v415 = vunpack.c.l.b16 %v352
        %v416 = vunpack.c.l.b16 %v353
        %v417 = vunpack.c.l.b16 %v354
        %v418 = vunpack.c.l.b16 %v355
        %v419 = vunpack.c.l.b16 %v356
        %v420 = vunpack.c.l.b16 %v357
        %v421 = vunpack.c.l.b16 %v358
        %v422 = vpack.c.b16 %v407, %v406
        %v423 = vpack.c.b16 %v409, %v408
        %v424 = vpack.c.b16 %v411, %v410
        %v425 = vpack.c.b16 %v413, %v412
        %v426 = vpack.c.b16 %v415, %v414
        %v427 = vpack.c.b16 %v417, %v416
        %v428 = vpack.c.b16 %v419, %v418
        %v429 = vpack.c.b16 %v421, %v420
        %438 = vmatprep.subr.bf16.mxu0 0
        %439 = vmatpush1.bf16.msra.mxu0 %v429
        %440 = vmatprep.subr.bf16.mxu0 0
        %441 = vmatpush1.bf16.msra.mxu0 %v428
        %442 = vmatprep.subr.bf16.mxu0 0
        %443 = vmatpush1.bf16.msra.mxu0 %v427
        %444 = vmatprep.subr.bf16.mxu0 0
        %445 = vmatpush1.bf16.msra.mxu0 %v426
        %446 = vmatprep.subr.bf16.mxu0 0
        %447 = vmatpush1.bf16.msra.mxu0 %v425
        %448 = vmatprep.subr.bf16.mxu0 0
        %449 = vmatpush1.bf16.msra.mxu0 %v424
        %450 = vmatprep.subr.bf16.mxu0 0
        %451 = vmatpush1.bf16.msra.mxu0 %v423
        %452 = vmatprep.subr.bf16.mxu0 0
        %453 = vmatpush1.bf16.msra.mxu0 %v422
        %454 = vmatprep.subr.bf16.mxu0 0
        %455 = vmatpush2.bf16.msra.mxu0 0
        %456 = vmatprep.subr.bf16.mxu0 0
        %457 = vmatpush2.bf16.msra.mxu0 0
        %458 = vmatprep.subr.bf16.mxu0 0
        %459 = vmatpush2.bf16.msra.mxu0 0
        %460 = vmatprep.subr.bf16.mxu0 0
        %461 = vmatpush2.bf16.msra.mxu0 0
        %462 = vmatprep.subr.bf16.mxu0 0
        %463 = vmatpush2.bf16.msra.mxu0 0
        %464 = vmatprep.subr.bf16.mxu0 0
        %465 = vmatpush2.bf16.msra.mxu0 0
        %466 = vmatprep.subr.bf16.mxu0 0
        %467 = vmatpush2.bf16.msra.mxu0 0
        %468 = vmatprep.subr.bf16.mxu0 0
        %469 = vmatpush2.bf16.msra.mxu0 0
        %470 = vmatprep.mubr.bf16.mxu0 0
        %471 = vmatmul.mubr.bf16.gmra.mxu0 %v382
        %v472 = vpop.f32.mrf.mxu0
        %v473 = vadd.f32 %v364, %v472
        %v474 = vpop.f32.mrf.mxu0
        %v475 = vpop.f32.mrf.mxu0
        %v476 = vadd.f32 %v364, %v475
        %v477 = vpop.f32.mrf.mxu0
        %478 = vmatprep.mubr.bf16.mxu0 0
        %479 = vmatmul.mubr.bf16.gmra.mxu0 %v383
        %v480 = vpop.f32.mrf.mxu0
        %v481 = vadd.f32 %v364, %v480
        %v482 = vpop.f32.mrf.mxu0
        %v483 = vpop.f32.mrf.mxu0
        %v484 = vadd.f32 %v364, %v483
        %v485 = vpop.f32.mrf.mxu0
        %486 = vmatprep.mubr.bf16.mxu0 0
        %487 = vmatmul.mubr.bf16.gmra.mxu0 %v384
        %v488 = vpop.f32.mrf.mxu0
        %v489 = vadd.f32 %v364, %v488
        %v490 = vpop.f32.mrf.mxu0
        %v491 = vpop.f32.mrf.mxu0
        %v492 = vadd.f32 %v364, %v491
        %v493 = vpop.f32.mrf.mxu0
        %494 = vmatprep.mubr.bf16.mxu0 0
        %495 = vmatmul.mubr.bf16.gmra.mxu0 %v385
        %v496 = vpop.f32.mrf.mxu0
        %v497 = vadd.f32 %v364, %v496
        %v498 = vpop.f32.mrf.mxu0
        %v499 = vpop.f32.mrf.mxu0
        %v500 = vadd.f32 %v364, %v499
        %v501 = vpop.f32.mrf.mxu0
        %502 = vdwg.mxu0
        %v503 = vpack.c.bf16 %v476, %v473
        %v504 = vpack.c.bf16 %v484, %v481
        %v505 = vpack.c.bf16 %v492, %v489
        %v506 = vpack.c.bf16 %v500, %v497
        %v507 = vld [vmem:[%s2] sm:$0xf]
        %v508 = vld [vmem:[%s2 + $0x4] sm:$0xf]
        %v509 = vld [vmem:[%s2 + $0x8] sm:$0xf]
        %v510 = vld [vmem:[%s2 + $0xc] sm:$0xf]
        %v511 = vld [vmem:[%s2 + $0x10] sm:$0xf]
        %v512 = vld [vmem:[%s2 + $0x14] sm:$0xf]
        %v513 = vld [vmem:[%s2 + $0x18] sm:$0xf]
        %v514 = vld [vmem:[%s2 + $0x1c] sm:$0xf]
        %v515 = vld [vmem:[%s2 + $0x20] sm:$0xf]
        %v516 = vld [vmem:[%s2 + $0x24] sm:$0xf]
        %v517 = vld [vmem:[%s2 + $0x28] sm:$0xf]
        %v518 = vld [vmem:[%s2 + $0x2c] sm:$0xf]
        %v519 = vld [vmem:[%s2 + $0x30] sm:$0xf]
        %v520 = vld [vmem:[%s2 + $0x34] sm:$0xf]
        %v521 = vld [vmem:[%s2 + $0x38] sm:$0xf]
        %v522 = vld [vmem:[%s2 + $0x3c] sm:$0xf]
        %v523 = vld [vmem:[%s5] sm:$0x1]
        %v525 = vlaneseq
        %v526 = vshrl.u32 %v525, 7
        %v527 = vsub.s32 0, %v526
        %v528 = vrot.slane %v523, %v527
        %v546 = vunpack.c.l.b16 %v507
        %v547 = vunpack.c.l.b16 %v508
        %v548 = vunpack.c.l.b16 %v509
        %v549 = vunpack.c.l.b16 %v510
        %v550 = vunpack.c.l.b16 %v511
        %v551 = vunpack.c.l.b16 %v512
        %v552 = vunpack.c.l.b16 %v513
        %v553 = vunpack.c.l.b16 %v514
        %v554 = vunpack.c.l.b16 %v515
        %v555 = vunpack.c.l.b16 %v516
        %v556 = vunpack.c.l.b16 %v517
        %v557 = vunpack.c.l.b16 %v518
        %v558 = vunpack.c.l.b16 %v519
        %v559 = vunpack.c.l.b16 %v520
        %v560 = vunpack.c.l.b16 %v521
        %v561 = vunpack.c.l.b16 %v522
        %v562 = vpack.c.b16 %v547, %v546
        %v563 = vpack.c.b16 %v549, %v548
        %v564 = vpack.c.b16 %v551, %v550
        %v565 = vpack.c.b16 %v553, %v552
        %v566 = vpack.c.b16 %v555, %v554
        %v567 = vpack.c.b16 %v557, %v556
        %v568 = vpack.c.b16 %v559, %v558
        %v569 = vpack.c.b16 %v561, %v560
        %578 = vmatprep.subr.bf16.mxu0 0
        %579 = vmatpush1.bf16.msra.mxu0 %v569
        %580 = vmatprep.subr.bf16.mxu0 0
        %581 = vmatpush1.bf16.msra.mxu0 %v568
        %582 = vmatprep.subr.bf16.mxu0 0
        %583 = vmatpush1.bf16.msra.mxu0 %v567
        %584 = vmatprep.subr.bf16.mxu0 0
        %585 = vmatpush1.bf16.msra.mxu0 %v566
        %586 = vmatprep.subr.bf16.mxu0 0
        %587 = vmatpush1.bf16.msra.mxu0 %v565
        %588 = vmatprep.subr.bf16.mxu0 0
        %589 = vmatpush1.bf16.msra.mxu0 %v564
        %590 = vmatprep.subr.bf16.mxu0 0
        %591 = vmatpush1.bf16.msra.mxu0 %v563
        %592 = vmatprep.subr.bf16.mxu0 0
        %593 = vmatpush1.bf16.msra.mxu0 %v562
        %594 = vmatprep.subr.bf16.mxu0 0
        %595 = vmatpush2.bf16.msra.mxu0 0
        %596 = vmatprep.subr.bf16.mxu0 0
        %597 = vmatpush2.bf16.msra.mxu0 0
        %598 = vmatprep.subr.bf16.mxu0 0
        %599 = vmatpush2.bf16.msra.mxu0 0
        %600 = vmatprep.subr.bf16.mxu0 0
        %601 = vmatpush2.bf16.msra.mxu0 0
        %602 = vmatprep.subr.bf16.mxu0 0
        %603 = vmatpush2.bf16.msra.mxu0 0
        %604 = vmatprep.subr.bf16.mxu0 0
        %605 = vmatpush2.bf16.msra.mxu0 0
        %606 = vmatprep.subr.bf16.mxu0 0
        %607 = vmatpush2.bf16.msra.mxu0 0
        %608 = vmatprep.subr.bf16.mxu0 0
        %609 = vmatpush2.bf16.msra.mxu0 0
        %610 = vmatprep.mubr.bf16.mxu0 0
        %611 = vmatmul.mubr.bf16.gmra.mxu0 %v382
        %v612 = vpop.f32.mrf.mxu0
        %v613 = vadd.f32 %v528, %v612
        %v614 = vpop.f32.mrf.mxu0
        %v615 = vpop.f32.mrf.mxu0
        %v616 = vadd.f32 %v528, %v615
        %v617 = vpop.f32.mrf.mxu0
        %618 = vmatprep.mubr.bf16.mxu0 0
        %619 = vmatmul.mubr.bf16.gmra.mxu0 %v383
        %v620 = vpop.f32.mrf.mxu0
        %v621 = vadd.f32 %v528, %v620
        %v622 = vpop.f32.mrf.mxu0
        %v623 = vpop.f32.mrf.mxu0
        %v624 = vadd.f32 %v528, %v623
        %v625 = vpop.f32.mrf.mxu0
        %626 = vmatprep.mubr.bf16.mxu0 0
        %627 = vmatmul.mubr.bf16.gmra.mxu0 %v384
        %v628 = vpop.f32.mrf.mxu0
        %v629 = vadd.f32 %v528, %v628
        %v630 = vpop.f32.mrf.mxu0
        %v631 = vpop.f32.mrf.mxu0
        %v632 = vadd.f32 %v528, %v631
        %v633 = vpop.f32.mrf.mxu0
        %634 = vmatprep.mubr.bf16.mxu0 0
        %635 = vmatmul.mubr.bf16.gmra.mxu0 %v385
        %v636 = vpop.f32.mrf.mxu0
        %v637 = vadd.f32 %v528, %v636
        %v638 = vpop.f32.mrf.mxu0
        %v639 = vpop.f32.mrf.mxu0
        %v640 = vadd.f32 %v528, %v639
        %v641 = vpop.f32.mrf.mxu0
        %642 = vdwg.mxu0
        %v643 = vpack.c.bf16 %v616, %v613
        %v644 = vpack.c.bf16 %v624, %v621
        %v645 = vpack.c.bf16 %v632, %v629
        %v646 = vpack.c.bf16 %v640, %v637
        %v647 = vld [vmem:[%s3] sm:$0xf]
        %v648 = vld [vmem:[%s3 + $0x4] sm:$0xf]
        %v649 = vld [vmem:[%s3 + $0x8] sm:$0xf]
        %v650 = vld [vmem:[%s3 + $0xc] sm:$0xf]
        %v651 = vld [vmem:[%s3 + $0x10] sm:$0xf]
        %v652 = vld [vmem:[%s3 + $0x14] sm:$0xf]
        %v653 = vld [vmem:[%s3 + $0x18] sm:$0xf]
        %v654 = vld [vmem:[%s3 + $0x1c] sm:$0xf]
        %v655 = vld [vmem:[%s3 + $0x20] sm:$0xf]
        %v656 = vld [vmem:[%s3 + $0x24] sm:$0xf]
        %v657 = vld [vmem:[%s3 + $0x28] sm:$0xf]
        %v658 = vld [vmem:[%s3 + $0x2c] sm:$0xf]
        %v659 = vld [vmem:[%s3 + $0x30] sm:$0xf]
        %v660 = vld [vmem:[%s3 + $0x34] sm:$0xf]
        %v661 = vld [vmem:[%s3 + $0x38] sm:$0xf]
        %v662 = vld [vmem:[%s3 + $0x3c] sm:$0xf]
        %v663 = vld [vmem:[%s6] sm:$0x1]
        %v665 = vlaneseq
        %v666 = vshrl.u32 %v665, 7
        %v667 = vsub.s32 0, %v666
        %v668 = vrot.slane %v663, %v667
        %v686 = vunpack.c.l.b16 %v647
        %v687 = vunpack.c.l.b16 %v648
        %v688 = vunpack.c.l.b16 %v649
        %v689 = vunpack.c.l.b16 %v650
        %v690 = vunpack.c.l.b16 %v651
        %v691 = vunpack.c.l.b16 %v652
        %v692 = vunpack.c.l.b16 %v653
        %v693 = vunpack.c.l.b16 %v654
        %v694 = vunpack.c.l.b16 %v655
        %v695 = vunpack.c.l.b16 %v656
        %v696 = vunpack.c.l.b16 %v657
        %v697 = vunpack.c.l.b16 %v658
        %v698 = vunpack.c.l.b16 %v659
        %v699 = vunpack.c.l.b16 %v660
        %v700 = vunpack.c.l.b16 %v661
        %v701 = vunpack.c.l.b16 %v662
        %v702 = vpack.c.b16 %v687, %v686
        %v703 = vpack.c.b16 %v689, %v688
        %v704 = vpack.c.b16 %v691, %v690
        %v705 = vpack.c.b16 %v693, %v692
        %v706 = vpack.c.b16 %v695, %v694
        %v707 = vpack.c.b16 %v697, %v696
        %v708 = vpack.c.b16 %v699, %v698
        %v709 = vpack.c.b16 %v701, %v700
        %718 = vmatprep.subr.bf16.mxu0 0
        %719 = vmatpush1.bf16.msra.mxu0 %v709
        %720 = vmatprep.subr.bf16.mxu0 0
        %721 = vmatpush1.bf16.msra.mxu0 %v708
        %722 = vmatprep.subr.bf16.mxu0 0
        %723 = vmatpush1.bf16.msra.mxu0 %v707
        %724 = vmatprep.subr.bf16.mxu0 0
        %725 = vmatpush1.bf16.msra.mxu0 %v706
        %726 = vmatprep.subr.bf16.mxu0 0
        %727 = vmatpush1.bf16.msra.mxu0 %v705
        %728 = vmatprep.subr.bf16.mxu0 0
        %729 = vmatpush1.bf16.msra.mxu0 %v704
        %730 = vmatprep.subr.bf16.mxu0 0
        %731 = vmatpush1.bf16.msra.mxu0 %v703
        %732 = vmatprep.subr.bf16.mxu0 0
        %733 = vmatpush1.bf16.msra.mxu0 %v702
        %734 = vmatprep.subr.bf16.mxu0 0
        %735 = vmatpush2.bf16.msra.mxu0 0
        %736 = vmatprep.subr.bf16.mxu0 0
        %737 = vmatpush2.bf16.msra.mxu0 0
        %738 = vmatprep.subr.bf16.mxu0 0
        %739 = vmatpush2.bf16.msra.mxu0 0
        %740 = vmatprep.subr.bf16.mxu0 0
        %741 = vmatpush2.bf16.msra.mxu0 0
        %742 = vmatprep.subr.bf16.mxu0 0
        %743 = vmatpush2.bf16.msra.mxu0 0
        %744 = vmatprep.subr.bf16.mxu0 0
        %745 = vmatpush2.bf16.msra.mxu0 0
        %746 = vmatprep.subr.bf16.mxu0 0
        %747 = vmatpush2.bf16.msra.mxu0 0
        %748 = vmatprep.subr.bf16.mxu0 0
        %749 = vmatpush2.bf16.msra.mxu0 0
        %750 = vmatprep.mubr.bf16.mxu0 0
        %751 = vmatmul.mubr.bf16.gmra.mxu0 %v382
        %v752 = vpop.f32.mrf.mxu0
        %v753 = vadd.f32 %v668, %v752
        %v754 = vpop.f32.mrf.mxu0
        %v755 = vpop.f32.mrf.mxu0
        %v756 = vadd.f32 %v668, %v755
        %v757 = vpop.f32.mrf.mxu0
        %758 = vmatprep.mubr.bf16.mxu0 0
        %759 = vmatmul.mubr.bf16.gmra.mxu0 %v383
        %v760 = vpop.f32.mrf.mxu0
        %v761 = vadd.f32 %v668, %v760
        %v762 = vpop.f32.mrf.mxu0
        %v763 = vpop.f32.mrf.mxu0
        %v764 = vadd.f32 %v668, %v763
        %v765 = vpop.f32.mrf.mxu0
        %766 = vmatprep.mubr.bf16.mxu0 0
        %767 = vmatmul.mubr.bf16.gmra.mxu0 %v384
        %v768 = vpop.f32.mrf.mxu0
        %v769 = vadd.f32 %v668, %v768
        %v770 = vpop.f32.mrf.mxu0
        %v771 = vpop.f32.mrf.mxu0
        %v772 = vadd.f32 %v668, %v771
        %v773 = vpop.f32.mrf.mxu0
        %774 = vmatprep.mubr.bf16.mxu0 0
        %775 = vmatmul.mubr.bf16.gmra.mxu0 %v385
        %v776 = vpop.f32.mrf.mxu0
        %v777 = vadd.f32 %v668, %v776
        %v778 = vpop.f32.mrf.mxu0
        %v779 = vpop.f32.mrf.mxu0
        %v780 = vadd.f32 %v668, %v779
        %v781 = vpop.f32.mrf.mxu0
        %782 = vdwg.mxu0
        %v783 = vpack.c.bf16 %v756, %v753
        %v784 = vpack.c.bf16 %v764, %v761
        %v785 = vpack.c.bf16 %v772, %v769
        %v786 = vpack.c.bf16 %v780, %v777
        %791 = vrot.lane.b32.xlu0 %v503, 120
        %v792 = vpop.permute.xlu0 %791
        %793 = vrot.lane.b32.xlu0 %v504, 120
        %v794 = vpop.permute.xlu0 %793
        %795 = vrot.lane.b32.xlu0 %v505, 120
        %v796 = vpop.permute.xlu0 %795
        %797 = vrot.lane.b32.xlu0 %v506, 120
        %v798 = vpop.permute.xlu0 %797
        %799 = vrot.lane.b32.xlu0 %v503, 112
        %v800 = vpop.permute.xlu0 %799
        %801 = vrot.lane.b32.xlu0 %v504, 112
        %v802 = vpop.permute.xlu0 %801
        %803 = vrot.lane.b32.xlu0 %v505, 112
        %v804 = vpop.permute.xlu0 %803
        %805 = vrot.lane.b32.xlu0 %v506, 112
        %v806 = vpop.permute.xlu0 %805
        %807 = vrot.lane.b32.xlu0 %v503, 104
        %v808 = vpop.permute.xlu0 %807
        %809 = vrot.lane.b32.xlu0 %v504, 104
        %v810 = vpop.permute.xlu0 %809
        %811 = vrot.lane.b32.xlu0 %v505, 104
        %v812 = vpop.permute.xlu0 %811
        %813 = vrot.lane.b32.xlu0 %v506, 104
        %v814 = vpop.permute.xlu0 %813
        %v817 = vpack.i.b16 %v792, %v503
        %v819 = vshrl.u32 %v503, 16
        %v820 = vshrl.u32 %v792, 16
        %v821 = vpack.i.b16 %v820, %v819
        %v825 = vpack.i.b16 %v808, %v800
        %v827 = vshrl.u32 %v800, 16
        %v828 = vshrl.u32 %v808, 16
        %v829 = vpack.i.b16 %v828, %v827
        %v832 = vpack.i.b16 0, 0
        %v834 = vshrl.u32 0, 16
        %v835 = vpack.i.b16 %v834, %v834
        %v839 = vpack.i.b16 %v794, %v504
        %v841 = vshrl.u32 %v504, 16
        %v842 = vshrl.u32 %v794, 16
        %v843 = vpack.i.b16 %v842, %v841
        %v847 = vpack.i.b16 %v810, %v802
        %v849 = vshrl.u32 %v802, 16
        %v850 = vshrl.u32 %v810, 16
        %v851 = vpack.i.b16 %v850, %v849
        %v855 = vpack.i.b16 %v796, %v505
        %v857 = vshrl.u32 %v505, 16
        %v858 = vshrl.u32 %v796, 16
        %v859 = vpack.i.b16 %v858, %v857
        %v863 = vpack.i.b16 %v812, %v804
        %v865 = vshrl.u32 %v804, 16
        %v866 = vshrl.u32 %v812, 16
        %v867 = vpack.i.b16 %v866, %v865
        %v871 = vpack.i.b16 %v798, %v506
        %v873 = vshrl.u32 %v506, 16
        %v874 = vshrl.u32 %v798, 16
        %v875 = vpack.i.b16 %v874, %v873
        %v879 = vpack.i.b16 %v814, %v806
        %v881 = vshrl.u32 %v806, 16
        %v882 = vshrl.u32 %v814, 16
        %v883 = vpack.i.b16 %v882, %v881
        %v885 = vcombine.high %v817, %v832
        %v887 = vunpack.c.l.s4 1983009808
        %v888 = vunpack.c.0.s8 %v887
        %v889 = vlaneseq
        %v890 = vshrl.u32 %v889, 7
        %v891 = vsub.s32 %v888, %v890
        %v892 = vrot.slane %v817, %v891
        %v894 = vunpack.c.l.s4 1983009808
        %v895 = vunpack.c.0.s8 %v894
        %v896 = vlaneseq
        %v897 = vshrl.u32 %v896, 7
        %v898 = vsub.s32 %v895, %v897
        %v899 = vrot.slane %v885, %v898
        %v900 = vcombine.high %v825, %v832
        %v902 = vunpack.c.l.s4 1983009808
        %v903 = vunpack.c.0.s8 %v902
        %v904 = vlaneseq
        %v905 = vshrl.u32 %v904, 7
        %v906 = vsub.s32 %v903, %v905
        %v907 = vrot.slane %v825, %v906
        %v909 = vunpack.c.l.s4 1983009808
        %v910 = vunpack.c.0.s8 %v909
        %v911 = vlaneseq
        %v912 = vshrl.u32 %v911, 7
        %v913 = vsub.s32 %v910, %v912
        %v914 = vrot.slane %v900, %v913
        %v915 = vcombine.low %v892, %v907
        %v916 = vcombine.high %v892, %v907
        %v918 = vunpack.c.l.s4 1934713408
        %v919 = vunpack.c.0.s8 %v918
        %v920 = vlaneseq
        %v921 = vshrl.u32 %v920, 7
        %v922 = vsub.s32 %v919, %v921
        %v923 = vrot.slane %v915, %v922
        %v925 = vunpack.c.l.s4 1934713408
        %v926 = vunpack.c.0.s8 %v925
        %v927 = vlaneseq
        %v928 = vshrl.u32 %v927, 7
        %v929 = vsub.s32 %v926, %v928
        %v930 = vrot.slane %v916, %v929
        %v931 = vcombine.low %v899, %v914
        %v932 = vcombine.high %v899, %v914
        %v934 = vunpack.c.l.s4 1934713408
        %v935 = vunpack.c.0.s8 %v934
        %v936 = vlaneseq
        %v937 = vshrl.u32 %v936, 7
        %v938 = vsub.s32 %v935, %v937
        %v939 = vrot.slane %v931, %v938
        %v941 = vunpack.c.l.s4 1934713408
        %v942 = vunpack.c.0.s8 %v941
        %v943 = vlaneseq
        %v944 = vshrl.u32 %v943, 7
        %v945 = vsub.s32 %v942, %v944
        %v946 = vrot.slane %v932, %v945
        %v947 = vcombine.high %v923, 0
        %v948 = vcombine.high %v930, 0
        %v949 = vcombine.high %v939, 0
        %v950 = vcombine.high %v946, 0
        %v951 = vcombine.high %v821, %v835
        %v953 = vunpack.c.l.s4 1983009808
        %v954 = vunpack.c.0.s8 %v953
        %v955 = vlaneseq
        %v956 = vshrl.u32 %v955, 7
        %v957 = vsub.s32 %v954, %v956
        %v958 = vrot.slane %v821, %v957
        %v960 = vunpack.c.l.s4 1983009808
        %v961 = vunpack.c.0.s8 %v960
        %v962 = vlaneseq
        %v963 = vshrl.u32 %v962, 7
        %v964 = vsub.s32 %v961, %v963
        %v965 = vrot.slane %v951, %v964
        %v966 = vcombine.high %v829, %v835
        %v968 = vunpack.c.l.s4 1983009808
        %v969 = vunpack.c.0.s8 %v968
        %v970 = vlaneseq
        %v971 = vshrl.u32 %v970, 7
        %v972 = vsub.s32 %v969, %v971
        %v973 = vrot.slane %v829, %v972
        %v975 = vunpack.c.l.s4 1983009808
        %v976 = vunpack.c.0.s8 %v975
        %v977 = vlaneseq
        %v978 = vshrl.u32 %v977, 7
        %v979 = vsub.s32 %v976, %v978
        %v980 = vrot.slane %v966, %v979
        %v981 = vcombine.low %v958, %v973
        %v982 = vcombine.high %v958, %v973
        %v984 = vunpack.c.l.s4 1934713408
        %v985 = vunpack.c.0.s8 %v984
        %v986 = vlaneseq
        %v987 = vshrl.u32 %v986, 7
        %v988 = vsub.s32 %v985, %v987
        %v989 = vrot.slane %v981, %v988
        %v991 = vunpack.c.l.s4 1934713408
        %v992 = vunpack.c.0.s8 %v991
        %v993 = vlaneseq
        %v994 = vshrl.u32 %v993, 7
        %v995 = vsub.s32 %v992, %v994
        %v996 = vrot.slane %v982, %v995
        %v997 = vcombine.low %v965, %v980
        %v998 = vcombine.high %v965, %v980
        %v1000 = vunpack.c.l.s4 1934713408
        %v1001 = vunpack.c.0.s8 %v1000
        %v1002 = vlaneseq
        %v1003 = vshrl.u32 %v1002, 7
        %v1004 = vsub.s32 %v1001, %v1003
        %v1005 = vrot.slane %v997, %v1004
        %v1007 = vunpack.c.l.s4 1934713408
        %v1008 = vunpack.c.0.s8 %v1007
        %v1009 = vlaneseq
        %v1010 = vshrl.u32 %v1009, 7
        %v1011 = vsub.s32 %v1008, %v1010
        %v1012 = vrot.slane %v998, %v1011
        %v1013 = vcombine.high %v989, 0
        %v1014 = vcombine.high %v996, 0
        %v1015 = vcombine.high %v1005, 0
        %v1016 = vcombine.high %v1012, 0
        %v1017 = vcombine.high %v839, %v832
        %v1019 = vunpack.c.l.s4 1983009808
        %v1020 = vunpack.c.0.s8 %v1019
        %v1021 = vlaneseq
        %v1022 = vshrl.u32 %v1021, 7
        %v1023 = vsub.s32 %v1020, %v1022
        %v1024 = vrot.slane %v839, %v1023
        %v1026 = vunpack.c.l.s4 1983009808
        %v1027 = vunpack.c.0.s8 %v1026
        %v1028 = vlaneseq
        %v1029 = vshrl.u32 %v1028, 7
        %v1030 = vsub.s32 %v1027, %v1029
        %v1031 = vrot.slane %v1017, %v1030
        %v1032 = vcombine.high %v847, %v832
        %v1034 = vunpack.c.l.s4 1983009808
        %v1035 = vunpack.c.0.s8 %v1034
        %v1036 = vlaneseq
        %v1037 = vshrl.u32 %v1036, 7
        %v1038 = vsub.s32 %v1035, %v1037
        %v1039 = vrot.slane %v847, %v1038
        %v1041 = vunpack.c.l.s4 1983009808
        %v1042 = vunpack.c.0.s8 %v1041
        %v1043 = vlaneseq
        %v1044 = vshrl.u32 %v1043, 7
        %v1045 = vsub.s32 %v1042, %v1044
        %v1046 = vrot.slane %v1032, %v1045
        %v1047 = vcombine.low %v1024, %v1039
        %v1048 = vcombine.high %v1024, %v1039
        %v1050 = vunpack.c.l.s4 1934713408
        %v1051 = vunpack.c.0.s8 %v1050
        %v1052 = vlaneseq
        %v1053 = vshrl.u32 %v1052, 7
        %v1054 = vsub.s32 %v1051, %v1053
        %v1055 = vrot.slane %v1047, %v1054
        %v1057 = vunpack.c.l.s4 1934713408
        %v1058 = vunpack.c.0.s8 %v1057
        %v1059 = vlaneseq
        %v1060 = vshrl.u32 %v1059, 7
        %v1061 = vsub.s32 %v1058, %v1060
        %v1062 = vrot.slane %v1048, %v1061
        %v1063 = vcombine.low %v1031, %v1046
        %v1064 = vcombine.high %v1031, %v1046
        %v1066 = vunpack.c.l.s4 1934713408
        %v1067 = vunpack.c.0.s8 %v1066
        %v1068 = vlaneseq
        %v1069 = vshrl.u32 %v1068, 7
        %v1070 = vsub.s32 %v1067, %v1069
        %v1071 = vrot.slane %v1063, %v1070
        %v1073 = vunpack.c.l.s4 1934713408
        %v1074 = vunpack.c.0.s8 %v1073
        %v1075 = vlaneseq
        %v1076 = vshrl.u32 %v1075, 7
        %v1077 = vsub.s32 %v1074, %v1076
        %v1078 = vrot.slane %v1064, %v1077
        %v1079 = vcombine.high %v1055, 0
        %v1080 = vcombine.high %v1062, 0
        %v1081 = vcombine.high %v1071, 0
        %v1082 = vcombine.high %v1078, 0
        %v1083 = vcombine.high %v843, %v835
        %v1085 = vunpack.c.l.s4 1983009808
        %v1086 = vunpack.c.0.s8 %v1085
        %v1087 = vlaneseq
        %v1088 = vshrl.u32 %v1087, 7
        %v1089 = vsub.s32 %v1086, %v1088
        %v1090 = vrot.slane %v843, %v1089
        %v1092 = vunpack.c.l.s4 1983009808
        %v1093 = vunpack.c.0.s8 %v1092
        %v1094 = vlaneseq
        %v1095 = vshrl.u32 %v1094, 7
        %v1096 = vsub.s32 %v1093, %v1095
        %v1097 = vrot.slane %v1083, %v1096
        %v1098 = vcombine.high %v851, %v835
        %v1100 = vunpack.c.l.s4 1983009808
        %v1101 = vunpack.c.0.s8 %v1100
        %v1102 = vlaneseq
        %v1103 = vshrl.u32 %v1102, 7
        %v1104 = vsub.s32 %v1101, %v1103
        %v1105 = vrot.slane %v851, %v1104
        %v1107 = vunpack.c.l.s4 1983009808
        %v1108 = vunpack.c.0.s8 %v1107
        %v1109 = vlaneseq
        %v1110 = vshrl.u32 %v1109, 7
        %v1111 = vsub.s32 %v1108, %v1110
        %v1112 = vrot.slane %v1098, %v1111
        %v1113 = vcombine.low %v1090, %v1105
        %v1114 = vcombine.high %v1090, %v1105
        %v1116 = vunpack.c.l.s4 1934713408
        %v1117 = vunpack.c.0.s8 %v1116
        %v1118 = vlaneseq
        %v1119 = vshrl.u32 %v1118, 7
        %v1120 = vsub.s32 %v1117, %v1119
        %v1121 = vrot.slane %v1113, %v1120
        %v1123 = vunpack.c.l.s4 1934713408
        %v1124 = vunpack.c.0.s8 %v1123
        %v1125 = vlaneseq
        %v1126 = vshrl.u32 %v1125, 7
        %v1127 = vsub.s32 %v1124, %v1126
        %v1128 = vrot.slane %v1114, %v1127
        %v1129 = vcombine.low %v1097, %v1112
        %v1130 = vcombine.high %v1097, %v1112
        %v1132 = vunpack.c.l.s4 1934713408
        %v1133 = vunpack.c.0.s8 %v1132
        %v1134 = vlaneseq
        %v1135 = vshrl.u32 %v1134, 7
        %v1136 = vsub.s32 %v1133, %v1135
        %v1137 = vrot.slane %v1129, %v1136
        %v1139 = vunpack.c.l.s4 1934713408
        %v1140 = vunpack.c.0.s8 %v1139
        %v1141 = vlaneseq
        %v1142 = vshrl.u32 %v1141, 7
        %v1143 = vsub.s32 %v1140, %v1142
        %v1144 = vrot.slane %v1130, %v1143
        %v1145 = vcombine.high %v1121, 0
        %v1146 = vcombine.high %v1128, 0
        %v1147 = vcombine.high %v1137, 0
        %v1148 = vcombine.high %v1144, 0
        %v1149 = vcombine.high %v855, %v832
        %v1151 = vunpack.c.l.s4 1983009808
        %v1152 = vunpack.c.0.s8 %v1151
        %v1153 = vlaneseq
        %v1154 = vshrl.u32 %v1153, 7
        %v1155 = vsub.s32 %v1152, %v1154
        %v1156 = vrot.slane %v855, %v1155
        %v1158 = vunpack.c.l.s4 1983009808
        %v1159 = vunpack.c.0.s8 %v1158
        %v1160 = vlaneseq
        %v1161 = vshrl.u32 %v1160, 7
        %v1162 = vsub.s32 %v1159, %v1161
        %v1163 = vrot.slane %v1149, %v1162
        %v1164 = vcombine.high %v863, %v832
        %v1166 = vunpack.c.l.s4 1983009808
        %v1167 = vunpack.c.0.s8 %v1166
        %v1168 = vlaneseq
        %v1169 = vshrl.u32 %v1168, 7
        %v1170 = vsub.s32 %v1167, %v1169
        %v1171 = vrot.slane %v863, %v1170
        %v1173 = vunpack.c.l.s4 1983009808
        %v1174 = vunpack.c.0.s8 %v1173
        %v1175 = vlaneseq
        %v1176 = vshrl.u32 %v1175, 7
        %v1177 = vsub.s32 %v1174, %v1176
        %v1178 = vrot.slane %v1164, %v1177
        %v1179 = vcombine.low %v1156, %v1171
        %v1180 = vcombine.high %v1156, %v1171
        %v1182 = vunpack.c.l.s4 1934713408
        %v1183 = vunpack.c.0.s8 %v1182
        %v1184 = vlaneseq
        %v1185 = vshrl.u32 %v1184, 7
        %v1186 = vsub.s32 %v1183, %v1185
        %v1187 = vrot.slane %v1179, %v1186
        %v1189 = vunpack.c.l.s4 1934713408
        %v1190 = vunpack.c.0.s8 %v1189
        %v1191 = vlaneseq
        %v1192 = vshrl.u32 %v1191, 7
        %v1193 = vsub.s32 %v1190, %v1192
        %v1194 = vrot.slane %v1180, %v1193
        %v1195 = vcombine.low %v1163, %v1178
        %v1196 = vcombine.high %v1163, %v1178
        %v1198 = vunpack.c.l.s4 1934713408
        %v1199 = vunpack.c.0.s8 %v1198
        %v1200 = vlaneseq
        %v1201 = vshrl.u32 %v1200, 7
        %v1202 = vsub.s32 %v1199, %v1201
        %v1203 = vrot.slane %v1195, %v1202
        %v1205 = vunpack.c.l.s4 1934713408
        %v1206 = vunpack.c.0.s8 %v1205
        %v1207 = vlaneseq
        %v1208 = vshrl.u32 %v1207, 7
        %v1209 = vsub.s32 %v1206, %v1208
        %v1210 = vrot.slane %v1196, %v1209
        %v1211 = vcombine.high %v1187, 0
        %v1212 = vcombine.high %v1194, 0
        %v1213 = vcombine.high %v1203, 0
        %v1214 = vcombine.high %v1210, 0
        %v1215 = vcombine.high %v859, %v835
        %v1217 = vunpack.c.l.s4 1983009808
        %v1218 = vunpack.c.0.s8 %v1217
        %v1219 = vlaneseq
        %v1220 = vshrl.u32 %v1219, 7
        %v1221 = vsub.s32 %v1218, %v1220
        %v1222 = vrot.slane %v859, %v1221
        %v1224 = vunpack.c.l.s4 1983009808
        %v1225 = vunpack.c.0.s8 %v1224
        %v1226 = vlaneseq
        %v1227 = vshrl.u32 %v1226, 7
        %v1228 = vsub.s32 %v1225, %v1227
        %v1229 = vrot.slane %v1215, %v1228
        %v1230 = vcombine.high %v867, %v835
        %v1232 = vunpack.c.l.s4 1983009808
        %v1233 = vunpack.c.0.s8 %v1232
        %v1234 = vlaneseq
        %v1235 = vshrl.u32 %v1234, 7
        %v1236 = vsub.s32 %v1233, %v1235
        %v1237 = vrot.slane %v867, %v1236
        %v1239 = vunpack.c.l.s4 1983009808
        %v1240 = vunpack.c.0.s8 %v1239
        %v1241 = vlaneseq
        %v1242 = vshrl.u32 %v1241, 7
        %v1243 = vsub.s32 %v1240, %v1242
        %v1244 = vrot.slane %v1230, %v1243
        %v1245 = vcombine.low %v1222, %v1237
        %v1246 = vcombine.high %v1222, %v1237
        %v1248 = vunpack.c.l.s4 1934713408
        %v1249 = vunpack.c.0.s8 %v1248
        %v1250 = vlaneseq
        %v1251 = vshrl.u32 %v1250, 7
        %v1252 = vsub.s32 %v1249, %v1251
        %v1253 = vrot.slane %v1245, %v1252
        %v1255 = vunpack.c.l.s4 1934713408
        %v1256 = vunpack.c.0.s8 %v1255
        %v1257 = vlaneseq
        %v1258 = vshrl.u32 %v1257, 7
        %v1259 = vsub.s32 %v1256, %v1258
        %v1260 = vrot.slane %v1246, %v1259
        %v1261 = vcombine.low %v1229, %v1244
        %v1262 = vcombine.high %v1229, %v1244
        %v1264 = vunpack.c.l.s4 1934713408
        %v1265 = vunpack.c.0.s8 %v1264
        %v1266 = vlaneseq
        %v1267 = vshrl.u32 %v1266, 7
        %v1268 = vsub.s32 %v1265, %v1267
        %v1269 = vrot.slane %v1261, %v1268
        %v1271 = vunpack.c.l.s4 1934713408
        %v1272 = vunpack.c.0.s8 %v1271
        %v1273 = vlaneseq
        %v1274 = vshrl.u32 %v1273, 7
        %v1275 = vsub.s32 %v1272, %v1274
        %v1276 = vrot.slane %v1262, %v1275
        %v1277 = vcombine.high %v1253, 0
        %v1278 = vcombine.high %v1260, 0
        %v1279 = vcombine.high %v1269, 0
        %v1280 = vcombine.high %v1276, 0
        %v1281 = vcombine.high %v871, %v832
        %v1283 = vunpack.c.l.s4 1983009808
        %v1284 = vunpack.c.0.s8 %v1283
        %v1285 = vlaneseq
        %v1286 = vshrl.u32 %v1285, 7
        %v1287 = vsub.s32 %v1284, %v1286
        %v1288 = vrot.slane %v871, %v1287
        %v1290 = vunpack.c.l.s4 1983009808
        %v1291 = vunpack.c.0.s8 %v1290
        %v1292 = vlaneseq
        %v1293 = vshrl.u32 %v1292, 7
        %v1294 = vsub.s32 %v1291, %v1293
        %v1295 = vrot.slane %v1281, %v1294
        %v1296 = vcombine.high %v879, %v832
        %v1298 = vunpack.c.l.s4 1983009808
        %v1299 = vunpack.c.0.s8 %v1298
        %v1300 = vlaneseq
        %v1301 = vshrl.u32 %v1300, 7
        %v1302 = vsub.s32 %v1299, %v1301
        %v1303 = vrot.slane %v879, %v1302
        %v1305 = vunpack.c.l.s4 1983009808
        %v1306 = vunpack.c.0.s8 %v1305
        %v1307 = vlaneseq
        %v1308 = vshrl.u32 %v1307, 7
        %v1309 = vsub.s32 %v1306, %v1308
        %v1310 = vrot.slane %v1296, %v1309
        %v1311 = vcombine.low %v1288, %v1303
        %v1312 = vcombine.high %v1288, %v1303
        %v1314 = vunpack.c.l.s4 1934713408
        %v1315 = vunpack.c.0.s8 %v1314
        %v1316 = vlaneseq
        %v1317 = vshrl.u32 %v1316, 7
        %v1318 = vsub.s32 %v1315, %v1317
        %v1319 = vrot.slane %v1311, %v1318
        %v1321 = vunpack.c.l.s4 1934713408
        %v1322 = vunpack.c.0.s8 %v1321
        %v1323 = vlaneseq
        %v1324 = vshrl.u32 %v1323, 7
        %v1325 = vsub.s32 %v1322, %v1324
        %v1326 = vrot.slane %v1312, %v1325
        %v1327 = vcombine.low %v1295, %v1310
        %v1328 = vcombine.high %v1295, %v1310
        %v1330 = vunpack.c.l.s4 1934713408
        %v1331 = vunpack.c.0.s8 %v1330
        %v1332 = vlaneseq
        %v1333 = vshrl.u32 %v1332, 7
        %v1334 = vsub.s32 %v1331, %v1333
        %v1335 = vrot.slane %v1327, %v1334
        %v1337 = vunpack.c.l.s4 1934713408
        %v1338 = vunpack.c.0.s8 %v1337
        %v1339 = vlaneseq
        %v1340 = vshrl.u32 %v1339, 7
        %v1341 = vsub.s32 %v1338, %v1340
        %v1342 = vrot.slane %v1328, %v1341
        %v1343 = vcombine.high %v1319, 0
        %v1344 = vcombine.high %v1326, 0
        %v1345 = vcombine.high %v1335, 0
        %v1346 = vcombine.high %v1342, 0
        %v1347 = vcombine.high %v875, %v835
        %v1349 = vunpack.c.l.s4 1983009808
        %v1350 = vunpack.c.0.s8 %v1349
        %v1351 = vlaneseq
        %v1352 = vshrl.u32 %v1351, 7
        %v1353 = vsub.s32 %v1350, %v1352
        %v1354 = vrot.slane %v875, %v1353
        %v1356 = vunpack.c.l.s4 1983009808
        %v1357 = vunpack.c.0.s8 %v1356
        %v1358 = vlaneseq
        %v1359 = vshrl.u32 %v1358, 7
        %v1360 = vsub.s32 %v1357, %v1359
        %v1361 = vrot.slane %v1347, %v1360
        %v1362 = vcombine.high %v883, %v835
        %v1364 = vunpack.c.l.s4 1983009808
        %v1365 = vunpack.c.0.s8 %v1364
        %v1366 = vlaneseq
        %v1367 = vshrl.u32 %v1366, 7
        %v1368 = vsub.s32 %v1365, %v1367
        %v1369 = vrot.slane %v883, %v1368
        %v1371 = vunpack.c.l.s4 1983009808
        %v1372 = vunpack.c.0.s8 %v1371
        %v1373 = vlaneseq
        %v1374 = vshrl.u32 %v1373, 7
        %v1375 = vsub.s32 %v1372, %v1374
        %v1376 = vrot.slane %v1362, %v1375
        %v1377 = vcombine.low %v1354, %v1369
        %v1378 = vcombine.high %v1354, %v1369
        %v1380 = vunpack.c.l.s4 1934713408
        %v1381 = vunpack.c.0.s8 %v1380
        %v1382 = vlaneseq
        %v1383 = vshrl.u32 %v1382, 7
        %v1384 = vsub.s32 %v1381, %v1383
        %v1385 = vrot.slane %v1377, %v1384
        %v1387 = vunpack.c.l.s4 1934713408
        %v1388 = vunpack.c.0.s8 %v1387
        %v1389 = vlaneseq
        %v1390 = vshrl.u32 %v1389, 7
        %v1391 = vsub.s32 %v1388, %v1390
        %v1392 = vrot.slane %v1378, %v1391
        %v1393 = vcombine.low %v1361, %v1376
        %v1394 = vcombine.high %v1361, %v1376
        %v1396 = vunpack.c.l.s4 1934713408
        %v1397 = vunpack.c.0.s8 %v1396
        %v1398 = vlaneseq
        %v1399 = vshrl.u32 %v1398, 7
        %v1400 = vsub.s32 %v1397, %v1399
        %v1401 = vrot.slane %v1393, %v1400
        %v1403 = vunpack.c.l.s4 1934713408
        %v1404 = vunpack.c.0.s8 %v1403
        %v1405 = vlaneseq
        %v1406 = vshrl.u32 %v1405, 7
        %v1407 = vsub.s32 %v1404, %v1406
        %v1408 = vrot.slane %v1394, %v1407
        %v1409 = vcombine.high %v1385, 0
        %v1410 = vcombine.high %v1392, 0
        %v1411 = vcombine.high %v1401, 0
        %v1412 = vcombine.high %v1408, 0
        %v1413 = vcombine.low %v923, %v930
        %v1415 = vunpack.c.l.s4 1983009808
        %v1416 = vunpack.c.0.s8 %v1415
        %v1417 = vlaneseq
        %v1418 = vshrl.u32 %v1417, 7
        %v1419 = vsub.s32 %v1416, %v1418
        %v1420 = vrot.slane %v1413, %v1419
        %v1421 = vcombine.low %v947, %v948
        %v1423 = vunpack.c.l.s4 1983009808
        %v1424 = vunpack.c.0.s8 %v1423
        %v1425 = vlaneseq
        %v1426 = vshrl.u32 %v1425, 7
        %v1427 = vsub.s32 %v1424, %v1426
        %v1428 = vrot.slane %v1421, %v1427
        %v1429 = vcombine.low %v939, %v946
        %v1431 = vunpack.c.l.s4 1983009808
        %v1432 = vunpack.c.0.s8 %v1431
        %v1433 = vlaneseq
        %v1434 = vshrl.u32 %v1433, 7
        %v1435 = vsub.s32 %v1432, %v1434
        %v1436 = vrot.slane %v1429, %v1435
        %v1437 = vcombine.low %v949, %v950
        %v1439 = vunpack.c.l.s4 1983009808
        %v1440 = vunpack.c.0.s8 %v1439
        %v1441 = vlaneseq
        %v1442 = vshrl.u32 %v1441, 7
        %v1443 = vsub.s32 %v1440, %v1442
        %v1444 = vrot.slane %v1437, %v1443
        %v1445 = vcombine.low %v1420, %v1428
        %v1447 = vunpack.c.l.s4 1934713408
        %v1448 = vunpack.c.0.s8 %v1447
        %v1449 = vlaneseq
        %v1450 = vshrl.u32 %v1449, 7
        %v1451 = vsub.s32 %v1448, %v1450
        %v1452 = vrot.slane %v1445, %v1451
        %v1453 = vcombine.low %v1436, %v1444
        %v1455 = vunpack.c.l.s4 1934713408
        %v1456 = vunpack.c.0.s8 %v1455
        %v1457 = vlaneseq
        %v1458 = vshrl.u32 %v1457, 7
        %v1459 = vsub.s32 %v1456, %v1458
        %v1460 = vrot.slane %v1453, %v1459
        %v1461 = vcombine.low %v1452, %v1460
        %v1462 = vcombine.high %v1452, %v1460
        %v1463 = vcombine.low %v989, %v996
        %v1465 = vunpack.c.l.s4 1983009808
        %v1466 = vunpack.c.0.s8 %v1465
        %v1467 = vlaneseq
        %v1468 = vshrl.u32 %v1467, 7
        %v1469 = vsub.s32 %v1466, %v1468
        %v1470 = vrot.slane %v1463, %v1469
        %v1471 = vcombine.low %v1013, %v1014
        %v1473 = vunpack.c.l.s4 1983009808
        %v1474 = vunpack.c.0.s8 %v1473
        %v1475 = vlaneseq
        %v1476 = vshrl.u32 %v1475, 7
        %v1477 = vsub.s32 %v1474, %v1476
        %v1478 = vrot.slane %v1471, %v1477
        %v1479 = vcombine.low %v1005, %v1012
        %v1481 = vunpack.c.l.s4 1983009808
        %v1482 = vunpack.c.0.s8 %v1481
        %v1483 = vlaneseq
        %v1484 = vshrl.u32 %v1483, 7
        %v1485 = vsub.s32 %v1482, %v1484
        %v1486 = vrot.slane %v1479, %v1485
        %v1487 = vcombine.low %v1015, %v1016
        %v1489 = vunpack.c.l.s4 1983009808
        %v1490 = vunpack.c.0.s8 %v1489
        %v1491 = vlaneseq
        %v1492 = vshrl.u32 %v1491, 7
        %v1493 = vsub.s32 %v1490, %v1492
        %v1494 = vrot.slane %v1487, %v1493
        %v1495 = vcombine.low %v1470, %v1478
        %v1497 = vunpack.c.l.s4 1934713408
        %v1498 = vunpack.c.0.s8 %v1497
        %v1499 = vlaneseq
        %v1500 = vshrl.u32 %v1499, 7
        %v1501 = vsub.s32 %v1498, %v1500
        %v1502 = vrot.slane %v1495, %v1501
        %v1503 = vcombine.low %v1486, %v1494
        %v1505 = vunpack.c.l.s4 1934713408
        %v1506 = vunpack.c.0.s8 %v1505
        %v1507 = vlaneseq
        %v1508 = vshrl.u32 %v1507, 7
        %v1509 = vsub.s32 %v1506, %v1508
        %v1510 = vrot.slane %v1503, %v1509
        %v1511 = vcombine.low %v1502, %v1510
        %v1512 = vcombine.high %v1502, %v1510
        %v1513 = vcombine.low %v1055, %v1062
        %v1515 = vunpack.c.l.s4 1983009808
        %v1516 = vunpack.c.0.s8 %v1515
        %v1517 = vlaneseq
        %v1518 = vshrl.u32 %v1517, 7
        %v1519 = vsub.s32 %v1516, %v1518
        %v1520 = vrot.slane %v1513, %v1519
        %v1521 = vcombine.low %v1079, %v1080
        %v1523 = vunpack.c.l.s4 1983009808
        %v1524 = vunpack.c.0.s8 %v1523
        %v1525 = vlaneseq
        %v1526 = vshrl.u32 %v1525, 7
        %v1527 = vsub.s32 %v1524, %v1526
        %v1528 = vrot.slane %v1521, %v1527
        %v1529 = vcombine.low %v1071, %v1078
        %v1531 = vunpack.c.l.s4 1983009808
        %v1532 = vunpack.c.0.s8 %v1531
        %v1533 = vlaneseq
        %v1534 = vshrl.u32 %v1533, 7
        %v1535 = vsub.s32 %v1532, %v1534
        %v1536 = vrot.slane %v1529, %v1535
        %v1537 = vcombine.low %v1081, %v1082
        %v1539 = vunpack.c.l.s4 1983009808
        %v1540 = vunpack.c.0.s8 %v1539
        %v1541 = vlaneseq
        %v1542 = vshrl.u32 %v1541, 7
        %v1543 = vsub.s32 %v1540, %v1542
        %v1544 = vrot.slane %v1537, %v1543
        %v1545 = vcombine.low %v1520, %v1528
        %v1547 = vunpack.c.l.s4 1934713408
        %v1548 = vunpack.c.0.s8 %v1547
        %v1549 = vlaneseq
        %v1550 = vshrl.u32 %v1549, 7
        %v1551 = vsub.s32 %v1548, %v1550
        %v1552 = vrot.slane %v1545, %v1551
        %v1553 = vcombine.low %v1536, %v1544
        %v1555 = vunpack.c.l.s4 1934713408
        %v1556 = vunpack.c.0.s8 %v1555
        %v1557 = vlaneseq
        %v1558 = vshrl.u32 %v1557, 7
        %v1559 = vsub.s32 %v1556, %v1558
        %v1560 = vrot.slane %v1553, %v1559
        %v1561 = vcombine.low %v1552, %v1560
        %v1562 = vcombine.high %v1552, %v1560
        %v1563 = vcombine.low %v1121, %v1128
        %v1565 = vunpack.c.l.s4 1983009808
        %v1566 = vunpack.c.0.s8 %v1565
        %v1567 = vlaneseq
        %v1568 = vshrl.u32 %v1567, 7
        %v1569 = vsub.s32 %v1566, %v1568
        %v1570 = vrot.slane %v1563, %v1569
        %v1571 = vcombine.low %v1145, %v1146
        %v1573 = vunpack.c.l.s4 1983009808
        %v1574 = vunpack.c.0.s8 %v1573
        %v1575 = vlaneseq
        %v1576 = vshrl.u32 %v1575, 7
        %v1577 = vsub.s32 %v1574, %v1576
        %v1578 = vrot.slane %v1571, %v1577
        %v1579 = vcombine.low %v1137, %v1144
        %v1581 = vunpack.c.l.s4 1983009808
        %v1582 = vunpack.c.0.s8 %v1581
        %v1583 = vlaneseq
        %v1584 = vshrl.u32 %v1583, 7
        %v1585 = vsub.s32 %v1582, %v1584
        %v1586 = vrot.slane %v1579, %v1585
        %v1587 = vcombine.low %v1147, %v1148
        %v1589 = vunpack.c.l.s4 1983009808
        %v1590 = vunpack.c.0.s8 %v1589
        %v1591 = vlaneseq
        %v1592 = vshrl.u32 %v1591, 7
        %v1593 = vsub.s32 %v1590, %v1592
        %v1594 = vrot.slane %v1587, %v1593
        %v1595 = vcombine.low %v1570, %v1578
        %v1597 = vunpack.c.l.s4 1934713408
        %v1598 = vunpack.c.0.s8 %v1597
        %v1599 = vlaneseq
        %v1600 = vshrl.u32 %v1599, 7
        %v1601 = vsub.s32 %v1598, %v1600
        %v1602 = vrot.slane %v1595, %v1601
        %v1603 = vcombine.low %v1586, %v1594
        %v1605 = vunpack.c.l.s4 1934713408
        %v1606 = vunpack.c.0.s8 %v1605
        %v1607 = vlaneseq
        %v1608 = vshrl.u32 %v1607, 7
        %v1609 = vsub.s32 %v1606, %v1608
        %v1610 = vrot.slane %v1603, %v1609
        %v1611 = vcombine.low %v1602, %v1610
        %v1612 = vcombine.high %v1602, %v1610
        %v1613 = vcombine.low %v1187, %v1194
        %v1615 = vunpack.c.l.s4 1983009808
        %v1616 = vunpack.c.0.s8 %v1615
        %v1617 = vlaneseq
        %v1618 = vshrl.u32 %v1617, 7
        %v1619 = vsub.s32 %v1616, %v1618
        %v1620 = vrot.slane %v1613, %v1619
        %v1621 = vcombine.low %v1211, %v1212
        %v1623 = vunpack.c.l.s4 1983009808
        %v1624 = vunpack.c.0.s8 %v1623
        %v1625 = vlaneseq
        %v1626 = vshrl.u32 %v1625, 7
        %v1627 = vsub.s32 %v1624, %v1626
        %v1628 = vrot.slane %v1621, %v1627
        %v1629 = vcombine.low %v1203, %v1210
        %v1631 = vunpack.c.l.s4 1983009808
        %v1632 = vunpack.c.0.s8 %v1631
        %v1633 = vlaneseq
        %v1634 = vshrl.u32 %v1633, 7
        %v1635 = vsub.s32 %v1632, %v1634
        %v1636 = vrot.slane %v1629, %v1635
        %v1637 = vcombine.low %v1213, %v1214
        %v1639 = vunpack.c.l.s4 1983009808
        %v1640 = vunpack.c.0.s8 %v1639
        %v1641 = vlaneseq
        %v1642 = vshrl.u32 %v1641, 7
        %v1643 = vsub.s32 %v1640, %v1642
        %v1644 = vrot.slane %v1637, %v1643
        %v1645 = vcombine.low %v1620, %v1628
        %v1647 = vunpack.c.l.s4 1934713408
        %v1648 = vunpack.c.0.s8 %v1647
        %v1649 = vlaneseq
        %v1650 = vshrl.u32 %v1649, 7
        %v1651 = vsub.s32 %v1648, %v1650
        %v1652 = vrot.slane %v1645, %v1651
        %v1653 = vcombine.low %v1636, %v1644
        %v1655 = vunpack.c.l.s4 1934713408
        %v1656 = vunpack.c.0.s8 %v1655
        %v1657 = vlaneseq
        %v1658 = vshrl.u32 %v1657, 7
        %v1659 = vsub.s32 %v1656, %v1658
        %v1660 = vrot.slane %v1653, %v1659
        %v1661 = vcombine.low %v1652, %v1660
        %v1662 = vcombine.high %v1652, %v1660
        %v1663 = vcombine.low %v1253, %v1260
        %v1665 = vunpack.c.l.s4 1983009808
        %v1666 = vunpack.c.0.s8 %v1665
        %v1667 = vlaneseq
        %v1668 = vshrl.u32 %v1667, 7
        %v1669 = vsub.s32 %v1666, %v1668
        %v1670 = vrot.slane %v1663, %v1669
        %v1671 = vcombine.low %v1277, %v1278
        %v1673 = vunpack.c.l.s4 1983009808
        %v1674 = vunpack.c.0.s8 %v1673
        %v1675 = vlaneseq
        %v1676 = vshrl.u32 %v1675, 7
        %v1677 = vsub.s32 %v1674, %v1676
        %v1678 = vrot.slane %v1671, %v1677
        %v1679 = vcombine.low %v1269, %v1276
        %v1681 = vunpack.c.l.s4 1983009808
        %v1682 = vunpack.c.0.s8 %v1681
        %v1683 = vlaneseq
        %v1684 = vshrl.u32 %v1683, 7
        %v1685 = vsub.s32 %v1682, %v1684
        %v1686 = vrot.slane %v1679, %v1685
        %v1687 = vcombine.low %v1279, %v1280
        %v1689 = vunpack.c.l.s4 1983009808
        %v1690 = vunpack.c.0.s8 %v1689
        %v1691 = vlaneseq
        %v1692 = vshrl.u32 %v1691, 7
        %v1693 = vsub.s32 %v1690, %v1692
        %v1694 = vrot.slane %v1687, %v1693
        %v1695 = vcombine.low %v1670, %v1678
        %v1697 = vunpack.c.l.s4 1934713408
        %v1698 = vunpack.c.0.s8 %v1697
        %v1699 = vlaneseq
        %v1700 = vshrl.u32 %v1699, 7
        %v1701 = vsub.s32 %v1698, %v1700
        %v1702 = vrot.slane %v1695, %v1701
        %v1703 = vcombine.low %v1686, %v1694
        %v1705 = vunpack.c.l.s4 1934713408
        %v1706 = vunpack.c.0.s8 %v1705
        %v1707 = vlaneseq
        %v1708 = vshrl.u32 %v1707, 7
        %v1709 = vsub.s32 %v1706, %v1708
        %v1710 = vrot.slane %v1703, %v1709
        %v1711 = vcombine.low %v1702, %v1710
        %v1712 = vcombine.high %v1702, %v1710
        %v1713 = vcombine.low %v1319, %v1326
        %v1715 = vunpack.c.l.s4 1983009808
        %v1716 = vunpack.c.0.s8 %v1715
        %v1717 = vlaneseq
        %v1718 = vshrl.u32 %v1717, 7
        %v1719 = vsub.s32 %v1716, %v1718
        %v1720 = vrot.slane %v1713, %v1719
        %v1721 = vcombine.low %v1343, %v1344
        %v1723 = vunpack.c.l.s4 1983009808
        %v1724 = vunpack.c.0.s8 %v1723
        %v1725 = vlaneseq
        %v1726 = vshrl.u32 %v1725, 7
        %v1727 = vsub.s32 %v1724, %v1726
        %v1728 = vrot.slane %v1721, %v1727
        %v1729 = vcombine.low %v1335, %v1342
        %v1731 = vunpack.c.l.s4 1983009808
        %v1732 = vunpack.c.0.s8 %v1731
        %v1733 = vlaneseq
        %v1734 = vshrl.u32 %v1733, 7
        %v1735 = vsub.s32 %v1732, %v1734
        %v1736 = vrot.slane %v1729, %v1735
        %v1737 = vcombine.low %v1345, %v1346
        %v1739 = vunpack.c.l.s4 1983009808
        %v1740 = vunpack.c.0.s8 %v1739
        %v1741 = vlaneseq
        %v1742 = vshrl.u32 %v1741, 7
        %v1743 = vsub.s32 %v1740, %v1742
        %v1744 = vrot.slane %v1737, %v1743
        %v1745 = vcombine.low %v1720, %v1728
        %v1747 = vunpack.c.l.s4 1934713408
        %v1748 = vunpack.c.0.s8 %v1747
        %v1749 = vlaneseq
        %v1750 = vshrl.u32 %v1749, 7
        %v1751 = vsub.s32 %v1748, %v1750
        %v1752 = vrot.slane %v1745, %v1751
        %v1753 = vcombine.low %v1736, %v1744
        %v1755 = vunpack.c.l.s4 1934713408
        %v1756 = vunpack.c.0.s8 %v1755
        %v1757 = vlaneseq
        %v1758 = vshrl.u32 %v1757, 7
        %v1759 = vsub.s32 %v1756, %v1758
        %v1760 = vrot.slane %v1753, %v1759
        %v1761 = vcombine.low %v1752, %v1760
        %v1762 = vcombine.high %v1752, %v1760
        %v1763 = vcombine.low %v1385, %v1392
        %v1765 = vunpack.c.l.s4 1983009808
        %v1766 = vunpack.c.0.s8 %v1765
        %v1767 = vlaneseq
        %v1768 = vshrl.u32 %v1767, 7
        %v1769 = vsub.s32 %v1766, %v1768
        %v1770 = vrot.slane %v1763, %v1769
        %v1771 = vcombine.low %v1409, %v1410
        %v1773 = vunpack.c.l.s4 1983009808
        %v1774 = vunpack.c.0.s8 %v1773
        %v1775 = vlaneseq
        %v1776 = vshrl.u32 %v1775, 7
        %v1777 = vsub.s32 %v1774, %v1776
        %v1778 = vrot.slane %v1771, %v1777
        %v1779 = vcombine.low %v1401, %v1408
        %v1781 = vunpack.c.l.s4 1983009808
        %v1782 = vunpack.c.0.s8 %v1781
        %v1783 = vlaneseq
        %v1784 = vshrl.u32 %v1783, 7
        %v1785 = vsub.s32 %v1782, %v1784
        %v1786 = vrot.slane %v1779, %v1785
        %v1787 = vcombine.low %v1411, %v1412
        %v1789 = vunpack.c.l.s4 1983009808
        %v1790 = vunpack.c.0.s8 %v1789
        %v1791 = vlaneseq
        %v1792 = vshrl.u32 %v1791, 7
        %v1793 = vsub.s32 %v1790, %v1792
        %v1794 = vrot.slane %v1787, %v1793
        %v1795 = vcombine.low %v1770, %v1778
        %v1797 = vunpack.c.l.s4 1934713408
        %v1798 = vunpack.c.0.s8 %v1797
        %v1799 = vlaneseq
        %v1800 = vshrl.u32 %v1799, 7
        %v1801 = vsub.s32 %v1798, %v1800
        %v1802 = vrot.slane %v1795, %v1801
        %v1803 = vcombine.low %v1786, %v1794
        %v1805 = vunpack.c.l.s4 1934713408
        %v1806 = vunpack.c.0.s8 %v1805
        %v1807 = vlaneseq
        %v1808 = vshrl.u32 %v1807, 7
        %v1809 = vsub.s32 %v1806, %v1808
        %v1810 = vrot.slane %v1803, %v1809
        %v1811 = vcombine.low %v1802, %v1810
        %v1812 = vcombine.high %v1802, %v1810
        %v1815 = vpack.i.b16 %v1511, %v1461
        %v1816 = vshrl.u32 %v1461, 16
        %v1817 = vshrl.u32 %v1511, 16
        %v1818 = vpack.i.b16 %v1817, %v1816
        %v1821 = vpack.i.b16 %v1512, %v1462
        %v1822 = vshrl.u32 %v1462, 16
        %v1823 = vshrl.u32 %v1512, 16
        %v1824 = vpack.i.b16 %v1823, %v1822
        %v1827 = vpack.i.b16 %v1611, %v1561
        %v1828 = vshrl.u32 %v1561, 16
        %v1829 = vshrl.u32 %v1611, 16
        %v1830 = vpack.i.b16 %v1829, %v1828
        %v1833 = vpack.i.b16 %v1612, %v1562
        %v1834 = vshrl.u32 %v1562, 16
        %v1835 = vshrl.u32 %v1612, 16
        %v1836 = vpack.i.b16 %v1835, %v1834
        %v1839 = vpack.i.b16 %v1711, %v1661
        %v1840 = vshrl.u32 %v1661, 16
        %v1841 = vshrl.u32 %v1711, 16
        %v1842 = vpack.i.b16 %v1841, %v1840
        %v1845 = vpack.i.b16 %v1712, %v1662
        %v1846 = vshrl.u32 %v1662, 16
        %v1847 = vshrl.u32 %v1712, 16
        %v1848 = vpack.i.b16 %v1847, %v1846
        %v1851 = vpack.i.b16 %v1811, %v1761
        %v1852 = vshrl.u32 %v1761, 16
        %v1853 = vshrl.u32 %v1811, 16
        %v1854 = vpack.i.b16 %v1853, %v1852
        %v1857 = vpack.i.b16 %v1812, %v1762
        %v1858 = vshrl.u32 %v1762, 16
        %v1859 = vshrl.u32 %v1812, 16
        %v1860 = vpack.i.b16 %v1859, %v1858
        %1865 = vrot.lane.b32.xlu0 %v643, 120
        %v1866 = vpop.permute.xlu0 %1865
        %1867 = vrot.lane.b32.xlu0 %v644, 120
        %v1868 = vpop.permute.xlu0 %1867
        %1869 = vrot.lane.b32.xlu0 %v645, 120
        %v1870 = vpop.permute.xlu0 %1869
        %1871 = vrot.lane.b32.xlu0 %v646, 120
        %v1872 = vpop.permute.xlu0 %1871
        %1873 = vrot.lane.b32.xlu0 %v643, 112
        %v1874 = vpop.permute.xlu0 %1873
        %1875 = vrot.lane.b32.xlu0 %v644, 112
        %v1876 = vpop.permute.xlu0 %1875
        %1877 = vrot.lane.b32.xlu0 %v645, 112
        %v1878 = vpop.permute.xlu0 %1877
        %1879 = vrot.lane.b32.xlu0 %v646, 112
        %v1880 = vpop.permute.xlu0 %1879
        %1881 = vrot.lane.b32.xlu0 %v643, 104
        %v1882 = vpop.permute.xlu0 %1881
        %1883 = vrot.lane.b32.xlu0 %v644, 104
        %v1884 = vpop.permute.xlu0 %1883
        %1885 = vrot.lane.b32.xlu0 %v645, 104
        %v1886 = vpop.permute.xlu0 %1885
        %1887 = vrot.lane.b32.xlu0 %v646, 104
        %v1888 = vpop.permute.xlu0 %1887
        %v1891 = vpack.i.b16 %v1866, %v643
        %v1893 = vshrl.u32 %v643, 16
        %v1894 = vshrl.u32 %v1866, 16
        %v1895 = vpack.i.b16 %v1894, %v1893
        %v1899 = vpack.i.b16 %v1882, %v1874
        %v1901 = vshrl.u32 %v1874, 16
        %v1902 = vshrl.u32 %v1882, 16
        %v1903 = vpack.i.b16 %v1902, %v1901
        %v1907 = vpack.i.b16 %v1868, %v644
        %v1909 = vshrl.u32 %v644, 16
        %v1910 = vshrl.u32 %v1868, 16
        %v1911 = vpack.i.b16 %v1910, %v1909
        %v1915 = vpack.i.b16 %v1884, %v1876
        %v1917 = vshrl.u32 %v1876, 16
        %v1918 = vshrl.u32 %v1884, 16
        %v1919 = vpack.i.b16 %v1918, %v1917
        %v1923 = vpack.i.b16 %v1870, %v645
        %v1925 = vshrl.u32 %v645, 16
        %v1926 = vshrl.u32 %v1870, 16
        %v1927 = vpack.i.b16 %v1926, %v1925
        %v1931 = vpack.i.b16 %v1886, %v1878
        %v1933 = vshrl.u32 %v1878, 16
        %v1934 = vshrl.u32 %v1886, 16
        %v1935 = vpack.i.b16 %v1934, %v1933
        %v1939 = vpack.i.b16 %v1872, %v646
        %v1941 = vshrl.u32 %v646, 16
        %v1942 = vshrl.u32 %v1872, 16
        %v1943 = vpack.i.b16 %v1942, %v1941
        %v1947 = vpack.i.b16 %v1888, %v1880
        %v1949 = vshrl.u32 %v1880, 16
        %v1950 = vshrl.u32 %v1888, 16
        %v1951 = vpack.i.b16 %v1950, %v1949
        %v1953 = vcombine.high %v1891, %v832
        %v1955 = vunpack.c.l.s4 1983009808
        %v1956 = vunpack.c.0.s8 %v1955
        %v1957 = vlaneseq
        %v1958 = vshrl.u32 %v1957, 7
        %v1959 = vsub.s32 %v1956, %v1958
        %v1960 = vrot.slane %v1891, %v1959
        %v1962 = vunpack.c.l.s4 1983009808
        %v1963 = vunpack.c.0.s8 %v1962
        %v1964 = vlaneseq
        %v1965 = vshrl.u32 %v1964, 7
        %v1966 = vsub.s32 %v1963, %v1965
        %v1967 = vrot.slane %v1953, %v1966
        %v1968 = vcombine.high %v1899, %v832
        %v1970 = vunpack.c.l.s4 1983009808
        %v1971 = vunpack.c.0.s8 %v1970
        %v1972 = vlaneseq
        %v1973 = vshrl.u32 %v1972, 7
        %v1974 = vsub.s32 %v1971, %v1973
        %v1975 = vrot.slane %v1899, %v1974
        %v1977 = vunpack.c.l.s4 1983009808
        %v1978 = vunpack.c.0.s8 %v1977
        %v1979 = vlaneseq
        %v1980 = vshrl.u32 %v1979, 7
        %v1981 = vsub.s32 %v1978, %v1980
        %v1982 = vrot.slane %v1968, %v1981
        %v1983 = vcombine.low %v1960, %v1975
        %v1984 = vcombine.high %v1960, %v1975
        %v1986 = vunpack.c.l.s4 1934713408
        %v1987 = vunpack.c.0.s8 %v1986
        %v1988 = vlaneseq
        %v1989 = vshrl.u32 %v1988, 7
        %v1990 = vsub.s32 %v1987, %v1989
        %v1991 = vrot.slane %v1983, %v1990
        %v1993 = vunpack.c.l.s4 1934713408
        %v1994 = vunpack.c.0.s8 %v1993
        %v1995 = vlaneseq
        %v1996 = vshrl.u32 %v1995, 7
        %v1997 = vsub.s32 %v1994, %v1996
        %v1998 = vrot.slane %v1984, %v1997
        %v1999 = vcombine.low %v1967, %v1982
        %v2000 = vcombine.high %v1967, %v1982
        %v2002 = vunpack.c.l.s4 1934713408
        %v2003 = vunpack.c.0.s8 %v2002
        %v2004 = vlaneseq
        %v2005 = vshrl.u32 %v2004, 7
        %v2006 = vsub.s32 %v2003, %v2005
        %v2007 = vrot.slane %v1999, %v2006
        %v2009 = vunpack.c.l.s4 1934713408
        %v2010 = vunpack.c.0.s8 %v2009
        %v2011 = vlaneseq
        %v2012 = vshrl.u32 %v2011, 7
        %v2013 = vsub.s32 %v2010, %v2012
        %v2014 = vrot.slane %v2000, %v2013
        %v2015 = vcombine.high %v1991, 0
        %v2016 = vcombine.high %v1998, 0
        %v2017 = vcombine.high %v2007, 0
        %v2018 = vcombine.high %v2014, 0
        %v2019 = vcombine.high %v1895, %v835
        %v2021 = vunpack.c.l.s4 1983009808
        %v2022 = vunpack.c.0.s8 %v2021
        %v2023 = vlaneseq
        %v2024 = vshrl.u32 %v2023, 7
        %v2025 = vsub.s32 %v2022, %v2024
        %v2026 = vrot.slane %v1895, %v2025
        %v2028 = vunpack.c.l.s4 1983009808
        %v2029 = vunpack.c.0.s8 %v2028
        %v2030 = vlaneseq
        %v2031 = vshrl.u32 %v2030, 7
        %v2032 = vsub.s32 %v2029, %v2031
        %v2033 = vrot.slane %v2019, %v2032
        %v2034 = vcombine.high %v1903, %v835
        %v2036 = vunpack.c.l.s4 1983009808
        %v2037 = vunpack.c.0.s8 %v2036
        %v2038 = vlaneseq
        %v2039 = vshrl.u32 %v2038, 7
        %v2040 = vsub.s32 %v2037, %v2039
        %v2041 = vrot.slane %v1903, %v2040
        %v2043 = vunpack.c.l.s4 1983009808
        %v2044 = vunpack.c.0.s8 %v2043
        %v2045 = vlaneseq
        %v2046 = vshrl.u32 %v2045, 7
        %v2047 = vsub.s32 %v2044, %v2046
        %v2048 = vrot.slane %v2034, %v2047
        %v2049 = vcombine.low %v2026, %v2041
        %v2050 = vcombine.high %v2026, %v2041
        %v2052 = vunpack.c.l.s4 1934713408
        %v2053 = vunpack.c.0.s8 %v2052
        %v2054 = vlaneseq
        %v2055 = vshrl.u32 %v2054, 7
        %v2056 = vsub.s32 %v2053, %v2055
        %v2057 = vrot.slane %v2049, %v2056
        %v2059 = vunpack.c.l.s4 1934713408
        %v2060 = vunpack.c.0.s8 %v2059
        %v2061 = vlaneseq
        %v2062 = vshrl.u32 %v2061, 7
        %v2063 = vsub.s32 %v2060, %v2062
        %v2064 = vrot.slane %v2050, %v2063
        %v2065 = vcombine.low %v2033, %v2048
        %v2066 = vcombine.high %v2033, %v2048
        %v2068 = vunpack.c.l.s4 1934713408
        %v2069 = vunpack.c.0.s8 %v2068
        %v2070 = vlaneseq
        %v2071 = vshrl.u32 %v2070, 7
        %v2072 = vsub.s32 %v2069, %v2071
        %v2073 = vrot.slane %v2065, %v2072
        %v2075 = vunpack.c.l.s4 1934713408
        %v2076 = vunpack.c.0.s8 %v2075
        %v2077 = vlaneseq
        %v2078 = vshrl.u32 %v2077, 7
        %v2079 = vsub.s32 %v2076, %v2078
        %v2080 = vrot.slane %v2066, %v2079
        %v2081 = vcombine.high %v2057, 0
        %v2082 = vcombine.high %v2064, 0
        %v2083 = vcombine.high %v2073, 0
        %v2084 = vcombine.high %v2080, 0
        %v2085 = vcombine.high %v1907, %v832
        %v2087 = vunpack.c.l.s4 1983009808
        %v2088 = vunpack.c.0.s8 %v2087
        %v2089 = vlaneseq
        %v2090 = vshrl.u32 %v2089, 7
        %v2091 = vsub.s32 %v2088, %v2090
        %v2092 = vrot.slane %v1907, %v2091
        %v2094 = vunpack.c.l.s4 1983009808
        %v2095 = vunpack.c.0.s8 %v2094
        %v2096 = vlaneseq
        %v2097 = vshrl.u32 %v2096, 7
        %v2098 = vsub.s32 %v2095, %v2097
        %v2099 = vrot.slane %v2085, %v2098
        %v2100 = vcombine.high %v1915, %v832
        %v2102 = vunpack.c.l.s4 1983009808
        %v2103 = vunpack.c.0.s8 %v2102
        %v2104 = vlaneseq
        %v2105 = vshrl.u32 %v2104, 7
        %v2106 = vsub.s32 %v2103, %v2105
        %v2107 = vrot.slane %v1915, %v2106
        %v2109 = vunpack.c.l.s4 1983009808
        %v2110 = vunpack.c.0.s8 %v2109
        %v2111 = vlaneseq
        %v2112 = vshrl.u32 %v2111, 7
        %v2113 = vsub.s32 %v2110, %v2112
        %v2114 = vrot.slane %v2100, %v2113
        %v2115 = vcombine.low %v2092, %v2107
        %v2116 = vcombine.high %v2092, %v2107
        %v2118 = vunpack.c.l.s4 1934713408
        %v2119 = vunpack.c.0.s8 %v2118
        %v2120 = vlaneseq
        %v2121 = vshrl.u32 %v2120, 7
        %v2122 = vsub.s32 %v2119, %v2121
        %v2123 = vrot.slane %v2115, %v2122
        %v2125 = vunpack.c.l.s4 1934713408
        %v2126 = vunpack.c.0.s8 %v2125
        %v2127 = vlaneseq
        %v2128 = vshrl.u32 %v2127, 7
        %v2129 = vsub.s32 %v2126, %v2128
        %v2130 = vrot.slane %v2116, %v2129
        %v2131 = vcombine.low %v2099, %v2114
        %v2132 = vcombine.high %v2099, %v2114
        %v2134 = vunpack.c.l.s4 1934713408
        %v2135 = vunpack.c.0.s8 %v2134
        %v2136 = vlaneseq
        %v2137 = vshrl.u32 %v2136, 7
        %v2138 = vsub.s32 %v2135, %v2137
        %v2139 = vrot.slane %v2131, %v2138
        %v2141 = vunpack.c.l.s4 1934713408
        %v2142 = vunpack.c.0.s8 %v2141
        %v2143 = vlaneseq
        %v2144 = vshrl.u32 %v2143, 7
        %v2145 = vsub.s32 %v2142, %v2144
        %v2146 = vrot.slane %v2132, %v2145
        %v2147 = vcombine.high %v2123, 0
        %v2148 = vcombine.high %v2130, 0
        %v2149 = vcombine.high %v2139, 0
        %v2150 = vcombine.high %v2146, 0
        %v2151 = vcombine.high %v1911, %v835
        %v2153 = vunpack.c.l.s4 1983009808
        %v2154 = vunpack.c.0.s8 %v2153
        %v2155 = vlaneseq
        %v2156 = vshrl.u32 %v2155, 7
        %v2157 = vsub.s32 %v2154, %v2156
        %v2158 = vrot.slane %v1911, %v2157
        %v2160 = vunpack.c.l.s4 1983009808
        %v2161 = vunpack.c.0.s8 %v2160
        %v2162 = vlaneseq
        %v2163 = vshrl.u32 %v2162, 7
        %v2164 = vsub.s32 %v2161, %v2163
        %v2165 = vrot.slane %v2151, %v2164
        %v2166 = vcombine.high %v1919, %v835
        %v2168 = vunpack.c.l.s4 1983009808
        %v2169 = vunpack.c.0.s8 %v2168
        %v2170 = vlaneseq
        %v2171 = vshrl.u32 %v2170, 7
        %v2172 = vsub.s32 %v2169, %v2171
        %v2173 = vrot.slane %v1919, %v2172
        %v2175 = vunpack.c.l.s4 1983009808
        %v2176 = vunpack.c.0.s8 %v2175
        %v2177 = vlaneseq
        %v2178 = vshrl.u32 %v2177, 7
        %v2179 = vsub.s32 %v2176, %v2178
        %v2180 = vrot.slane %v2166, %v2179
        %v2181 = vcombine.low %v2158, %v2173
        %v2182 = vcombine.high %v2158, %v2173
        %v2184 = vunpack.c.l.s4 1934713408
        %v2185 = vunpack.c.0.s8 %v2184
        %v2186 = vlaneseq
        %v2187 = vshrl.u32 %v2186, 7
        %v2188 = vsub.s32 %v2185, %v2187
        %v2189 = vrot.slane %v2181, %v2188
        %v2191 = vunpack.c.l.s4 1934713408
        %v2192 = vunpack.c.0.s8 %v2191
        %v2193 = vlaneseq
        %v2194 = vshrl.u32 %v2193, 7
        %v2195 = vsub.s32 %v2192, %v2194
        %v2196 = vrot.slane %v2182, %v2195
        %v2197 = vcombine.low %v2165, %v2180
        %v2198 = vcombine.high %v2165, %v2180
        %v2200 = vunpack.c.l.s4 1934713408
        %v2201 = vunpack.c.0.s8 %v2200
        %v2202 = vlaneseq
        %v2203 = vshrl.u32 %v2202, 7
        %v2204 = vsub.s32 %v2201, %v2203
        %v2205 = vrot.slane %v2197, %v2204
        %v2207 = vunpack.c.l.s4 1934713408
        %v2208 = vunpack.c.0.s8 %v2207
        %v2209 = vlaneseq
        %v2210 = vshrl.u32 %v2209, 7
        %v2211 = vsub.s32 %v2208, %v2210
        %v2212 = vrot.slane %v2198, %v2211
        %v2213 = vcombine.high %v2189, 0
        %v2214 = vcombine.high %v2196, 0
        %v2215 = vcombine.high %v2205, 0
        %v2216 = vcombine.high %v2212, 0
        %v2217 = vcombine.high %v1923, %v832
        %v2219 = vunpack.c.l.s4 1983009808
        %v2220 = vunpack.c.0.s8 %v2219
        %v2221 = vlaneseq
        %v2222 = vshrl.u32 %v2221, 7
        %v2223 = vsub.s32 %v2220, %v2222
        %v2224 = vrot.slane %v1923, %v2223
        %v2226 = vunpack.c.l.s4 1983009808
        %v2227 = vunpack.c.0.s8 %v2226
        %v2228 = vlaneseq
        %v2229 = vshrl.u32 %v2228, 7
        %v2230 = vsub.s32 %v2227, %v2229
        %v2231 = vrot.slane %v2217, %v2230
        %v2232 = vcombine.high %v1931, %v832
        %v2234 = vunpack.c.l.s4 1983009808
        %v2235 = vunpack.c.0.s8 %v2234
        %v2236 = vlaneseq
        %v2237 = vshrl.u32 %v2236, 7
        %v2238 = vsub.s32 %v2235, %v2237
        %v2239 = vrot.slane %v1931, %v2238
        %v2241 = vunpack.c.l.s4 1983009808
        %v2242 = vunpack.c.0.s8 %v2241
        %v2243 = vlaneseq
        %v2244 = vshrl.u32 %v2243, 7
        %v2245 = vsub.s32 %v2242, %v2244
        %v2246 = vrot.slane %v2232, %v2245
        %v2247 = vcombine.low %v2224, %v2239
        %v2248 = vcombine.high %v2224, %v2239
        %v2250 = vunpack.c.l.s4 1934713408
        %v2251 = vunpack.c.0.s8 %v2250
        %v2252 = vlaneseq
        %v2253 = vshrl.u32 %v2252, 7
        %v2254 = vsub.s32 %v2251, %v2253
        %v2255 = vrot.slane %v2247, %v2254
        %v2257 = vunpack.c.l.s4 1934713408
        %v2258 = vunpack.c.0.s8 %v2257
        %v2259 = vlaneseq
        %v2260 = vshrl.u32 %v2259, 7
        %v2261 = vsub.s32 %v2258, %v2260
        %v2262 = vrot.slane %v2248, %v2261
        %v2263 = vcombine.low %v2231, %v2246
        %v2264 = vcombine.high %v2231, %v2246
        %v2266 = vunpack.c.l.s4 1934713408
        %v2267 = vunpack.c.0.s8 %v2266
        %v2268 = vlaneseq
        %v2269 = vshrl.u32 %v2268, 7
        %v2270 = vsub.s32 %v2267, %v2269
        %v2271 = vrot.slane %v2263, %v2270
        %v2273 = vunpack.c.l.s4 1934713408
        %v2274 = vunpack.c.0.s8 %v2273
        %v2275 = vlaneseq
        %v2276 = vshrl.u32 %v2275, 7
        %v2277 = vsub.s32 %v2274, %v2276
        %v2278 = vrot.slane %v2264, %v2277
        %v2279 = vcombine.high %v2255, 0
        %v2280 = vcombine.high %v2262, 0
        %v2281 = vcombine.high %v2271, 0
        %v2282 = vcombine.high %v2278, 0
        %v2283 = vcombine.high %v1927, %v835
        %v2285 = vunpack.c.l.s4 1983009808
        %v2286 = vunpack.c.0.s8 %v2285
        %v2287 = vlaneseq
        %v2288 = vshrl.u32 %v2287, 7
        %v2289 = vsub.s32 %v2286, %v2288
        %v2290 = vrot.slane %v1927, %v2289
        %v2292 = vunpack.c.l.s4 1983009808
        %v2293 = vunpack.c.0.s8 %v2292
        %v2294 = vlaneseq
        %v2295 = vshrl.u32 %v2294, 7
        %v2296 = vsub.s32 %v2293, %v2295
        %v2297 = vrot.slane %v2283, %v2296
        %v2298 = vcombine.high %v1935, %v835
        %v2300 = vunpack.c.l.s4 1983009808
        %v2301 = vunpack.c.0.s8 %v2300
        %v2302 = vlaneseq
        %v2303 = vshrl.u32 %v2302, 7
        %v2304 = vsub.s32 %v2301, %v2303
        %v2305 = vrot.slane %v1935, %v2304
        %v2307 = vunpack.c.l.s4 1983009808
        %v2308 = vunpack.c.0.s8 %v2307
        %v2309 = vlaneseq
        %v2310 = vshrl.u32 %v2309, 7
        %v2311 = vsub.s32 %v2308, %v2310
        %v2312 = vrot.slane %v2298, %v2311
        %v2313 = vcombine.low %v2290, %v2305
        %v2314 = vcombine.high %v2290, %v2305
        %v2316 = vunpack.c.l.s4 1934713408
        %v2317 = vunpack.c.0.s8 %v2316
        %v2318 = vlaneseq
        %v2319 = vshrl.u32 %v2318, 7
        %v2320 = vsub.s32 %v2317, %v2319
        %v2321 = vrot.slane %v2313, %v2320
        %v2323 = vunpack.c.l.s4 1934713408
        %v2324 = vunpack.c.0.s8 %v2323
        %v2325 = vlaneseq
        %v2326 = vshrl.u32 %v2325, 7
        %v2327 = vsub.s32 %v2324, %v2326
        %v2328 = vrot.slane %v2314, %v2327
        %v2329 = vcombine.low %v2297, %v2312
        %v2330 = vcombine.high %v2297, %v2312
        %v2332 = vunpack.c.l.s4 1934713408
        %v2333 = vunpack.c.0.s8 %v2332
        %v2334 = vlaneseq
        %v2335 = vshrl.u32 %v2334, 7
        %v2336 = vsub.s32 %v2333, %v2335
        %v2337 = vrot.slane %v2329, %v2336
        %v2339 = vunpack.c.l.s4 1934713408
        %v2340 = vunpack.c.0.s8 %v2339
        %v2341 = vlaneseq
        %v2342 = vshrl.u32 %v2341, 7
        %v2343 = vsub.s32 %v2340, %v2342
        %v2344 = vrot.slane %v2330, %v2343
        %v2345 = vcombine.high %v2321, 0
        %v2346 = vcombine.high %v2328, 0
        %v2347 = vcombine.high %v2337, 0
        %v2348 = vcombine.high %v2344, 0
        %v2349 = vcombine.high %v1939, %v832
        %v2351 = vunpack.c.l.s4 1983009808
        %v2352 = vunpack.c.0.s8 %v2351
        %v2353 = vlaneseq
        %v2354 = vshrl.u32 %v2353, 7
        %v2355 = vsub.s32 %v2352, %v2354
        %v2356 = vrot.slane %v1939, %v2355
        %v2358 = vunpack.c.l.s4 1983009808
        %v2359 = vunpack.c.0.s8 %v2358
        %v2360 = vlaneseq
        %v2361 = vshrl.u32 %v2360, 7
        %v2362 = vsub.s32 %v2359, %v2361
        %v2363 = vrot.slane %v2349, %v2362
        %v2364 = vcombine.high %v1947, %v832
        %v2366 = vunpack.c.l.s4 1983009808
        %v2367 = vunpack.c.0.s8 %v2366
        %v2368 = vlaneseq
        %v2369 = vshrl.u32 %v2368, 7
        %v2370 = vsub.s32 %v2367, %v2369
        %v2371 = vrot.slane %v1947, %v2370
        %v2373 = vunpack.c.l.s4 1983009808
        %v2374 = vunpack.c.0.s8 %v2373
        %v2375 = vlaneseq
        %v2376 = vshrl.u32 %v2375, 7
        %v2377 = vsub.s32 %v2374, %v2376
        %v2378 = vrot.slane %v2364, %v2377
        %v2379 = vcombine.low %v2356, %v2371
        %v2380 = vcombine.high %v2356, %v2371
        %v2382 = vunpack.c.l.s4 1934713408
        %v2383 = vunpack.c.0.s8 %v2382
        %v2384 = vlaneseq
        %v2385 = vshrl.u32 %v2384, 7
        %v2386 = vsub.s32 %v2383, %v2385
        %v2387 = vrot.slane %v2379, %v2386
        %v2389 = vunpack.c.l.s4 1934713408
        %v2390 = vunpack.c.0.s8 %v2389
        %v2391 = vlaneseq
        %v2392 = vshrl.u32 %v2391, 7
        %v2393 = vsub.s32 %v2390, %v2392
        %v2394 = vrot.slane %v2380, %v2393
        %v2395 = vcombine.low %v2363, %v2378
        %v2396 = vcombine.high %v2363, %v2378
        %v2398 = vunpack.c.l.s4 1934713408
        %v2399 = vunpack.c.0.s8 %v2398
        %v2400 = vlaneseq
        %v2401 = vshrl.u32 %v2400, 7
        %v2402 = vsub.s32 %v2399, %v2401
        %v2403 = vrot.slane %v2395, %v2402
        %v2405 = vunpack.c.l.s4 1934713408
        %v2406 = vunpack.c.0.s8 %v2405
        %v2407 = vlaneseq
        %v2408 = vshrl.u32 %v2407, 7
        %v2409 = vsub.s32 %v2406, %v2408
        %v2410 = vrot.slane %v2396, %v2409
        %v2411 = vcombine.high %v2387, 0
        %v2412 = vcombine.high %v2394, 0
        %v2413 = vcombine.high %v2403, 0
        %v2414 = vcombine.high %v2410, 0
        %v2415 = vcombine.high %v1943, %v835
        %v2417 = vunpack.c.l.s4 1983009808
        %v2418 = vunpack.c.0.s8 %v2417
        %v2419 = vlaneseq
        %v2420 = vshrl.u32 %v2419, 7
        %v2421 = vsub.s32 %v2418, %v2420
        %v2422 = vrot.slane %v1943, %v2421
        %v2424 = vunpack.c.l.s4 1983009808
        %v2425 = vunpack.c.0.s8 %v2424
        %v2426 = vlaneseq
        %v2427 = vshrl.u32 %v2426, 7
        %v2428 = vsub.s32 %v2425, %v2427
        %v2429 = vrot.slane %v2415, %v2428
        %v2430 = vcombine.high %v1951, %v835
        %v2432 = vunpack.c.l.s4 1983009808
        %v2433 = vunpack.c.0.s8 %v2432
        %v2434 = vlaneseq
        %v2435 = vshrl.u32 %v2434, 7
        %v2436 = vsub.s32 %v2433, %v2435
        %v2437 = vrot.slane %v1951, %v2436
        %v2439 = vunpack.c.l.s4 1983009808
        %v2440 = vunpack.c.0.s8 %v2439
        %v2441 = vlaneseq
        %v2442 = vshrl.u32 %v2441, 7
        %v2443 = vsub.s32 %v2440, %v2442
        %v2444 = vrot.slane %v2430, %v2443
        %v2445 = vcombine.low %v2422, %v2437
        %v2446 = vcombine.high %v2422, %v2437
        %v2448 = vunpack.c.l.s4 1934713408
        %v2449 = vunpack.c.0.s8 %v2448
        %v2450 = vlaneseq
        %v2451 = vshrl.u32 %v2450, 7
        %v2452 = vsub.s32 %v2449, %v2451
        %v2453 = vrot.slane %v2445, %v2452
        %v2455 = vunpack.c.l.s4 1934713408
        %v2456 = vunpack.c.0.s8 %v2455
        %v2457 = vlaneseq
        %v2458 = vshrl.u32 %v2457, 7
        %v2459 = vsub.s32 %v2456, %v2458
        %v2460 = vrot.slane %v2446, %v2459
        %v2461 = vcombine.low %v2429, %v2444
        %v2462 = vcombine.high %v2429, %v2444
        %v2464 = vunpack.c.l.s4 1934713408
        %v2465 = vunpack.c.0.s8 %v2464
        %v2466 = vlaneseq
        %v2467 = vshrl.u32 %v2466, 7
        %v2468 = vsub.s32 %v2465, %v2467
        %v2469 = vrot.slane %v2461, %v2468
        %v2471 = vunpack.c.l.s4 1934713408
        %v2472 = vunpack.c.0.s8 %v2471
        %v2473 = vlaneseq
        %v2474 = vshrl.u32 %v2473, 7
        %v2475 = vsub.s32 %v2472, %v2474
        %v2476 = vrot.slane %v2462, %v2475
        %v2477 = vcombine.high %v2453, 0
        %v2478 = vcombine.high %v2460, 0
        %v2479 = vcombine.high %v2469, 0
        %v2480 = vcombine.high %v2476, 0
        %v2481 = vcombine.low %v1991, %v1998
        %v2483 = vunpack.c.l.s4 1983009808
        %v2484 = vunpack.c.0.s8 %v2483
        %v2485 = vlaneseq
        %v2486 = vshrl.u32 %v2485, 7
        %v2487 = vsub.s32 %v2484, %v2486
        %v2488 = vrot.slane %v2481, %v2487
        %v2489 = vcombine.low %v2015, %v2016
        %v2491 = vunpack.c.l.s4 1983009808
        %v2492 = vunpack.c.0.s8 %v2491
        %v2493 = vlaneseq
        %v2494 = vshrl.u32 %v2493, 7
        %v2495 = vsub.s32 %v2492, %v2494
        %v2496 = vrot.slane %v2489, %v2495
        %v2497 = vcombine.low %v2007, %v2014
        %v2499 = vunpack.c.l.s4 1983009808
        %v2500 = vunpack.c.0.s8 %v2499
        %v2501 = vlaneseq
        %v2502 = vshrl.u32 %v2501, 7
        %v2503 = vsub.s32 %v2500, %v2502
        %v2504 = vrot.slane %v2497, %v2503
        %v2505 = vcombine.low %v2017, %v2018
        %v2507 = vunpack.c.l.s4 1983009808
        %v2508 = vunpack.c.0.s8 %v2507
        %v2509 = vlaneseq
        %v2510 = vshrl.u32 %v2509, 7
        %v2511 = vsub.s32 %v2508, %v2510
        %v2512 = vrot.slane %v2505, %v2511
        %v2513 = vcombine.low %v2488, %v2496
        %v2515 = vunpack.c.l.s4 1934713408
        %v2516 = vunpack.c.0.s8 %v2515
        %v2517 = vlaneseq
        %v2518 = vshrl.u32 %v2517, 7
        %v2519 = vsub.s32 %v2516, %v2518
        %v2520 = vrot.slane %v2513, %v2519
        %v2521 = vcombine.low %v2504, %v2512
        %v2523 = vunpack.c.l.s4 1934713408
        %v2524 = vunpack.c.0.s8 %v2523
        %v2525 = vlaneseq
        %v2526 = vshrl.u32 %v2525, 7
        %v2527 = vsub.s32 %v2524, %v2526
        %v2528 = vrot.slane %v2521, %v2527
        %v2529 = vcombine.low %v2520, %v2528
        %v2530 = vcombine.high %v2520, %v2528
        %v2531 = vcombine.low %v2057, %v2064
        %v2533 = vunpack.c.l.s4 1983009808
        %v2534 = vunpack.c.0.s8 %v2533
        %v2535 = vlaneseq
        %v2536 = vshrl.u32 %v2535, 7
        %v2537 = vsub.s32 %v2534, %v2536
        %v2538 = vrot.slane %v2531, %v2537
        %v2539 = vcombine.low %v2081, %v2082
        %v2541 = vunpack.c.l.s4 1983009808
        %v2542 = vunpack.c.0.s8 %v2541
        %v2543 = vlaneseq
        %v2544 = vshrl.u32 %v2543, 7
        %v2545 = vsub.s32 %v2542, %v2544
        %v2546 = vrot.slane %v2539, %v2545
        %v2547 = vcombine.low %v2073, %v2080
        %v2549 = vunpack.c.l.s4 1983009808
        %v2550 = vunpack.c.0.s8 %v2549
        %v2551 = vlaneseq
        %v2552 = vshrl.u32 %v2551, 7
        %v2553 = vsub.s32 %v2550, %v2552
        %v2554 = vrot.slane %v2547, %v2553
        %v2555 = vcombine.low %v2083, %v2084
        %v2557 = vunpack.c.l.s4 1983009808
        %v2558 = vunpack.c.0.s8 %v2557
        %v2559 = vlaneseq
        %v2560 = vshrl.u32 %v2559, 7
        %v2561 = vsub.s32 %v2558, %v2560
        %v2562 = vrot.slane %v2555, %v2561
        %v2563 = vcombine.low %v2538, %v2546
        %v2565 = vunpack.c.l.s4 1934713408
        %v2566 = vunpack.c.0.s8 %v2565
        %v2567 = vlaneseq
        %v2568 = vshrl.u32 %v2567, 7
        %v2569 = vsub.s32 %v2566, %v2568
        %v2570 = vrot.slane %v2563, %v2569
        %v2571 = vcombine.low %v2554, %v2562
        %v2573 = vunpack.c.l.s4 1934713408
        %v2574 = vunpack.c.0.s8 %v2573
        %v2575 = vlaneseq
        %v2576 = vshrl.u32 %v2575, 7
        %v2577 = vsub.s32 %v2574, %v2576
        %v2578 = vrot.slane %v2571, %v2577
        %v2579 = vcombine.low %v2570, %v2578
        %v2580 = vcombine.high %v2570, %v2578
        %v2581 = vcombine.low %v2123, %v2130
        %v2583 = vunpack.c.l.s4 1983009808
        %v2584 = vunpack.c.0.s8 %v2583
        %v2585 = vlaneseq
        %v2586 = vshrl.u32 %v2585, 7
        %v2587 = vsub.s32 %v2584, %v2586
        %v2588 = vrot.slane %v2581, %v2587
        %v2589 = vcombine.low %v2147, %v2148
        %v2591 = vunpack.c.l.s4 1983009808
        %v2592 = vunpack.c.0.s8 %v2591
        %v2593 = vlaneseq
        %v2594 = vshrl.u32 %v2593, 7
        %v2595 = vsub.s32 %v2592, %v2594
        %v2596 = vrot.slane %v2589, %v2595
        %v2597 = vcombine.low %v2139, %v2146
        %v2599 = vunpack.c.l.s4 1983009808
        %v2600 = vunpack.c.0.s8 %v2599
        %v2601 = vlaneseq
        %v2602 = vshrl.u32 %v2601, 7
        %v2603 = vsub.s32 %v2600, %v2602
        %v2604 = vrot.slane %v2597, %v2603
        %v2605 = vcombine.low %v2149, %v2150
        %v2607 = vunpack.c.l.s4 1983009808
        %v2608 = vunpack.c.0.s8 %v2607
        %v2609 = vlaneseq
        %v2610 = vshrl.u32 %v2609, 7
        %v2611 = vsub.s32 %v2608, %v2610
        %v2612 = vrot.slane %v2605, %v2611
        %v2613 = vcombine.low %v2588, %v2596
        %v2615 = vunpack.c.l.s4 1934713408
        %v2616 = vunpack.c.0.s8 %v2615
        %v2617 = vlaneseq
        %v2618 = vshrl.u32 %v2617, 7
        %v2619 = vsub.s32 %v2616, %v2618
        %v2620 = vrot.slane %v2613, %v2619
        %v2621 = vcombine.low %v2604, %v2612
        %v2623 = vunpack.c.l.s4 1934713408
        %v2624 = vunpack.c.0.s8 %v2623
        %v2625 = vlaneseq
        %v2626 = vshrl.u32 %v2625, 7
        %v2627 = vsub.s32 %v2624, %v2626
        %v2628 = vrot.slane %v2621, %v2627
        %v2629 = vcombine.low %v2620, %v2628
        %v2630 = vcombine.high %v2620, %v2628
        %v2631 = vcombine.low %v2189, %v2196
        %v2633 = vunpack.c.l.s4 1983009808
        %v2634 = vunpack.c.0.s8 %v2633
        %v2635 = vlaneseq
        %v2636 = vshrl.u32 %v2635, 7
        %v2637 = vsub.s32 %v2634, %v2636
        %v2638 = vrot.slane %v2631, %v2637
        %v2639 = vcombine.low %v2213, %v2214
        %v2641 = vunpack.c.l.s4 1983009808
        %v2642 = vunpack.c.0.s8 %v2641
        %v2643 = vlaneseq
        %v2644 = vshrl.u32 %v2643, 7
        %v2645 = vsub.s32 %v2642, %v2644
        %v2646 = vrot.slane %v2639, %v2645
        %v2647 = vcombine.low %v2205, %v2212
        %v2649 = vunpack.c.l.s4 1983009808
        %v2650 = vunpack.c.0.s8 %v2649
        %v2651 = vlaneseq
        %v2652 = vshrl.u32 %v2651, 7
        %v2653 = vsub.s32 %v2650, %v2652
        %v2654 = vrot.slane %v2647, %v2653
        %v2655 = vcombine.low %v2215, %v2216
        %v2657 = vunpack.c.l.s4 1983009808
        %v2658 = vunpack.c.0.s8 %v2657
        %v2659 = vlaneseq
        %v2660 = vshrl.u32 %v2659, 7
        %v2661 = vsub.s32 %v2658, %v2660
        %v2662 = vrot.slane %v2655, %v2661
        %v2663 = vcombine.low %v2638, %v2646
        %v2665 = vunpack.c.l.s4 1934713408
        %v2666 = vunpack.c.0.s8 %v2665
        %v2667 = vlaneseq
        %v2668 = vshrl.u32 %v2667, 7
        %v2669 = vsub.s32 %v2666, %v2668
        %v2670 = vrot.slane %v2663, %v2669
        %v2671 = vcombine.low %v2654, %v2662
        %v2673 = vunpack.c.l.s4 1934713408
        %v2674 = vunpack.c.0.s8 %v2673
        %v2675 = vlaneseq
        %v2676 = vshrl.u32 %v2675, 7
        %v2677 = vsub.s32 %v2674, %v2676
        %v2678 = vrot.slane %v2671, %v2677
        %v2679 = vcombine.low %v2670, %v2678
        %v2680 = vcombine.high %v2670, %v2678
        %v2681 = vcombine.low %v2255, %v2262
        %v2683 = vunpack.c.l.s4 1983009808
        %v2684 = vunpack.c.0.s8 %v2683
        %v2685 = vlaneseq
        %v2686 = vshrl.u32 %v2685, 7
        %v2687 = vsub.s32 %v2684, %v2686
        %v2688 = vrot.slane %v2681, %v2687
        %v2689 = vcombine.low %v2279, %v2280
        %v2691 = vunpack.c.l.s4 1983009808
        %v2692 = vunpack.c.0.s8 %v2691
        %v2693 = vlaneseq
        %v2694 = vshrl.u32 %v2693, 7
        %v2695 = vsub.s32 %v2692, %v2694
        %v2696 = vrot.slane %v2689, %v2695
        %v2697 = vcombine.low %v2271, %v2278
        %v2699 = vunpack.c.l.s4 1983009808
        %v2700 = vunpack.c.0.s8 %v2699
        %v2701 = vlaneseq
        %v2702 = vshrl.u32 %v2701, 7
        %v2703 = vsub.s32 %v2700, %v2702
        %v2704 = vrot.slane %v2697, %v2703
        %v2705 = vcombine.low %v2281, %v2282
        %v2707 = vunpack.c.l.s4 1983009808
        %v2708 = vunpack.c.0.s8 %v2707
        %v2709 = vlaneseq
        %v2710 = vshrl.u32 %v2709, 7
        %v2711 = vsub.s32 %v2708, %v2710
        %v2712 = vrot.slane %v2705, %v2711
        %v2713 = vcombine.low %v2688, %v2696
        %v2715 = vunpack.c.l.s4 1934713408
        %v2716 = vunpack.c.0.s8 %v2715
        %v2717 = vlaneseq
        %v2718 = vshrl.u32 %v2717, 7
        %v2719 = vsub.s32 %v2716, %v2718
        %v2720 = vrot.slane %v2713, %v2719
        %v2721 = vcombine.low %v2704, %v2712
        %v2723 = vunpack.c.l.s4 1934713408
        %v2724 = vunpack.c.0.s8 %v2723
        %v2725 = vlaneseq
        %v2726 = vshrl.u32 %v2725, 7
        %v2727 = vsub.s32 %v2724, %v2726
        %v2728 = vrot.slane %v2721, %v2727
        %v2729 = vcombine.low %v2720, %v2728
        %v2730 = vcombine.high %v2720, %v2728
        %v2731 = vcombine.low %v2321, %v2328
        %v2733 = vunpack.c.l.s4 1983009808
        %v2734 = vunpack.c.0.s8 %v2733
        %v2735 = vlaneseq
        %v2736 = vshrl.u32 %v2735, 7
        %v2737 = vsub.s32 %v2734, %v2736
        %v2738 = vrot.slane %v2731, %v2737
        %v2739 = vcombine.low %v2345, %v2346
        %v2741 = vunpack.c.l.s4 1983009808
        %v2742 = vunpack.c.0.s8 %v2741
        %v2743 = vlaneseq
        %v2744 = vshrl.u32 %v2743, 7
        %v2745 = vsub.s32 %v2742, %v2744
        %v2746 = vrot.slane %v2739, %v2745
        %v2747 = vcombine.low %v2337, %v2344
        %v2749 = vunpack.c.l.s4 1983009808
        %v2750 = vunpack.c.0.s8 %v2749
        %v2751 = vlaneseq
        %v2752 = vshrl.u32 %v2751, 7
        %v2753 = vsub.s32 %v2750, %v2752
        %v2754 = vrot.slane %v2747, %v2753
        %v2755 = vcombine.low %v2347, %v2348
        %v2757 = vunpack.c.l.s4 1983009808
        %v2758 = vunpack.c.0.s8 %v2757
        %v2759 = vlaneseq
        %v2760 = vshrl.u32 %v2759, 7
        %v2761 = vsub.s32 %v2758, %v2760
        %v2762 = vrot.slane %v2755, %v2761
        %v2763 = vcombine.low %v2738, %v2746
        %v2765 = vunpack.c.l.s4 1934713408
        %v2766 = vunpack.c.0.s8 %v2765
        %v2767 = vlaneseq
        %v2768 = vshrl.u32 %v2767, 7
        %v2769 = vsub.s32 %v2766, %v2768
        %v2770 = vrot.slane %v2763, %v2769
        %v2771 = vcombine.low %v2754, %v2762
        %v2773 = vunpack.c.l.s4 1934713408
        %v2774 = vunpack.c.0.s8 %v2773
        %v2775 = vlaneseq
        %v2776 = vshrl.u32 %v2775, 7
        %v2777 = vsub.s32 %v2774, %v2776
        %v2778 = vrot.slane %v2771, %v2777
        %v2779 = vcombine.low %v2770, %v2778
        %v2780 = vcombine.high %v2770, %v2778
        %v2781 = vcombine.low %v2387, %v2394
        %v2783 = vunpack.c.l.s4 1983009808
        %v2784 = vunpack.c.0.s8 %v2783
        %v2785 = vlaneseq
        %v2786 = vshrl.u32 %v2785, 7
        %v2787 = vsub.s32 %v2784, %v2786
        %v2788 = vrot.slane %v2781, %v2787
        %v2789 = vcombine.low %v2411, %v2412
        %v2791 = vunpack.c.l.s4 1983009808
        %v2792 = vunpack.c.0.s8 %v2791
        %v2793 = vlaneseq
        %v2794 = vshrl.u32 %v2793, 7
        %v2795 = vsub.s32 %v2792, %v2794
        %v2796 = vrot.slane %v2789, %v2795
        %v2797 = vcombine.low %v2403, %v2410
        %v2799 = vunpack.c.l.s4 1983009808
        %v2800 = vunpack.c.0.s8 %v2799
        %v2801 = vlaneseq
        %v2802 = vshrl.u32 %v2801, 7
        %v2803 = vsub.s32 %v2800, %v2802
        %v2804 = vrot.slane %v2797, %v2803
        %v2805 = vcombine.low %v2413, %v2414
        %v2807 = vunpack.c.l.s4 1983009808
        %v2808 = vunpack.c.0.s8 %v2807
        %v2809 = vlaneseq
        %v2810 = vshrl.u32 %v2809, 7
        %v2811 = vsub.s32 %v2808, %v2810
        %v2812 = vrot.slane %v2805, %v2811
        %v2813 = vcombine.low %v2788, %v2796
        %v2815 = vunpack.c.l.s4 1934713408
        %v2816 = vunpack.c.0.s8 %v2815
        %v2817 = vlaneseq
        %v2818 = vshrl.u32 %v2817, 7
        %v2819 = vsub.s32 %v2816, %v2818
        %v2820 = vrot.slane %v2813, %v2819
        %v2821 = vcombine.low %v2804, %v2812
        %v2823 = vunpack.c.l.s4 1934713408
        %v2824 = vunpack.c.0.s8 %v2823
        %v2825 = vlaneseq
        %v2826 = vshrl.u32 %v2825, 7
        %v2827 = vsub.s32 %v2824, %v2826
        %v2828 = vrot.slane %v2821, %v2827
        %v2829 = vcombine.low %v2820, %v2828
        %v2830 = vcombine.high %v2820, %v2828
        %v2831 = vcombine.low %v2453, %v2460
        %v2833 = vunpack.c.l.s4 1983009808
        %v2834 = vunpack.c.0.s8 %v2833
        %v2835 = vlaneseq
        %v2836 = vshrl.u32 %v2835, 7
        %v2837 = vsub.s32 %v2834, %v2836
        %v2838 = vrot.slane %v2831, %v2837
        %v2839 = vcombine.low %v2477, %v2478
        %v2841 = vunpack.c.l.s4 1983009808
        %v2842 = vunpack.c.0.s8 %v2841
        %v2843 = vlaneseq
        %v2844 = vshrl.u32 %v2843, 7
        %v2845 = vsub.s32 %v2842, %v2844
        %v2846 = vrot.slane %v2839, %v2845
        %v2847 = vcombine.low %v2469, %v2476
        %v2849 = vunpack.c.l.s4 1983009808
        %v2850 = vunpack.c.0.s8 %v2849
        %v2851 = vlaneseq
        %v2852 = vshrl.u32 %v2851, 7
        %v2853 = vsub.s32 %v2850, %v2852
        %v2854 = vrot.slane %v2847, %v2853
        %v2855 = vcombine.low %v2479, %v2480
        %v2857 = vunpack.c.l.s4 1983009808
        %v2858 = vunpack.c.0.s8 %v2857
        %v2859 = vlaneseq
        %v2860 = vshrl.u32 %v2859, 7
        %v2861 = vsub.s32 %v2858, %v2860
        %v2862 = vrot.slane %v2855, %v2861
        %v2863 = vcombine.low %v2838, %v2846
        %v2865 = vunpack.c.l.s4 1934713408
        %v2866 = vunpack.c.0.s8 %v2865
        %v2867 = vlaneseq
        %v2868 = vshrl.u32 %v2867, 7
        %v2869 = vsub.s32 %v2866, %v2868
        %v2870 = vrot.slane %v2863, %v2869
        %v2871 = vcombine.low %v2854, %v2862
        %v2873 = vunpack.c.l.s4 1934713408
        %v2874 = vunpack.c.0.s8 %v2873
        %v2875 = vlaneseq
        %v2876 = vshrl.u32 %v2875, 7
        %v2877 = vsub.s32 %v2874, %v2876
        %v2878 = vrot.slane %v2871, %v2877
        %v2879 = vcombine.low %v2870, %v2878
        %v2880 = vcombine.high %v2870, %v2878
        %v2883 = vpack.i.b16 %v2579, %v2529
        %v2884 = vshrl.u32 %v2529, 16
        %v2885 = vshrl.u32 %v2579, 16
        %v2886 = vpack.i.b16 %v2885, %v2884
        %v2889 = vpack.i.b16 %v2580, %v2530
        %v2890 = vshrl.u32 %v2530, 16
        %v2891 = vshrl.u32 %v2580, 16
        %v2892 = vpack.i.b16 %v2891, %v2890
        %v2895 = vpack.i.b16 %v2679, %v2629
        %v2896 = vshrl.u32 %v2629, 16
        %v2897 = vshrl.u32 %v2679, 16
        %v2898 = vpack.i.b16 %v2897, %v2896
        %v2901 = vpack.i.b16 %v2680, %v2630
        %v2902 = vshrl.u32 %v2630, 16
        %v2903 = vshrl.u32 %v2680, 16
        %v2904 = vpack.i.b16 %v2903, %v2902
        %v2907 = vpack.i.b16 %v2779, %v2729
        %v2908 = vshrl.u32 %v2729, 16
        %v2909 = vshrl.u32 %v2779, 16
        %v2910 = vpack.i.b16 %v2909, %v2908
        %v2913 = vpack.i.b16 %v2780, %v2730
        %v2914 = vshrl.u32 %v2730, 16
        %v2915 = vshrl.u32 %v2780, 16
        %v2916 = vpack.i.b16 %v2915, %v2914
        %v2919 = vpack.i.b16 %v2879, %v2829
        %v2920 = vshrl.u32 %v2829, 16
        %v2921 = vshrl.u32 %v2879, 16
        %v2922 = vpack.i.b16 %v2921, %v2920
        %v2925 = vpack.i.b16 %v2880, %v2830
        %v2926 = vshrl.u32 %v2830, 16
        %v2927 = vshrl.u32 %v2880, 16
        %v2928 = vpack.i.b16 %v2927, %v2926
        %2933 = vrot.lane.b32.xlu0 %v783, 120
        %v2934 = vpop.permute.xlu0 %2933
        %2935 = vrot.lane.b32.xlu0 %v784, 120
        %v2936 = vpop.permute.xlu0 %2935
        %2937 = vrot.lane.b32.xlu0 %v785, 120
        %v2938 = vpop.permute.xlu0 %2937
        %2939 = vrot.lane.b32.xlu0 %v786, 120
        %v2940 = vpop.permute.xlu0 %2939
        %2941 = vrot.lane.b32.xlu0 %v783, 112
        %v2942 = vpop.permute.xlu0 %2941
        %2943 = vrot.lane.b32.xlu0 %v784, 112
        %v2944 = vpop.permute.xlu0 %2943
        %2945 = vrot.lane.b32.xlu0 %v785, 112
        %v2946 = vpop.permute.xlu0 %2945
        %2947 = vrot.lane.b32.xlu0 %v786, 112
        %v2948 = vpop.permute.xlu0 %2947
        %2949 = vrot.lane.b32.xlu0 %v783, 104
        %v2950 = vpop.permute.xlu0 %2949
        %2951 = vrot.lane.b32.xlu0 %v784, 104
        %v2952 = vpop.permute.xlu0 %2951
        %2953 = vrot.lane.b32.xlu0 %v785, 104
        %v2954 = vpop.permute.xlu0 %2953
        %2955 = vrot.lane.b32.xlu0 %v786, 104
        %v2956 = vpop.permute.xlu0 %2955
        %v2959 = vpack.i.b16 %v2934, %v783
        %v2961 = vshrl.u32 %v783, 16
        %v2962 = vshrl.u32 %v2934, 16
        %v2963 = vpack.i.b16 %v2962, %v2961
        %v2967 = vpack.i.b16 %v2950, %v2942
        %v2969 = vshrl.u32 %v2942, 16
        %v2970 = vshrl.u32 %v2950, 16
        %v2971 = vpack.i.b16 %v2970, %v2969
        %v2975 = vpack.i.b16 %v2936, %v784
        %v2977 = vshrl.u32 %v784, 16
        %v2978 = vshrl.u32 %v2936, 16
        %v2979 = vpack.i.b16 %v2978, %v2977
        %v2983 = vpack.i.b16 %v2952, %v2944
        %v2985 = vshrl.u32 %v2944, 16
        %v2986 = vshrl.u32 %v2952, 16
        %v2987 = vpack.i.b16 %v2986, %v2985
        %v2991 = vpack.i.b16 %v2938, %v785
        %v2993 = vshrl.u32 %v785, 16
        %v2994 = vshrl.u32 %v2938, 16
        %v2995 = vpack.i.b16 %v2994, %v2993
        %v2999 = vpack.i.b16 %v2954, %v2946
        %v3001 = vshrl.u32 %v2946, 16
        %v3002 = vshrl.u32 %v2954, 16
        %v3003 = vpack.i.b16 %v3002, %v3001
        %v3007 = vpack.i.b16 %v2940, %v786
        %v3009 = vshrl.u32 %v786, 16
        %v3010 = vshrl.u32 %v2940, 16
        %v3011 = vpack.i.b16 %v3010, %v3009
        %v3015 = vpack.i.b16 %v2956, %v2948
        %v3017 = vshrl.u32 %v2948, 16
        %v3018 = vshrl.u32 %v2956, 16
        %v3019 = vpack.i.b16 %v3018, %v3017
        %v3021 = vcombine.high %v2959, %v832
        %v3023 = vunpack.c.l.s4 1983009808
        %v3024 = vunpack.c.0.s8 %v3023
        %v3025 = vlaneseq
        %v3026 = vshrl.u32 %v3025, 7
        %v3027 = vsub.s32 %v3024, %v3026
        %v3028 = vrot.slane %v2959, %v3027
        %v3030 = vunpack.c.l.s4 1983009808
        %v3031 = vunpack.c.0.s8 %v3030
        %v3032 = vlaneseq
        %v3033 = vshrl.u32 %v3032, 7
        %v3034 = vsub.s32 %v3031, %v3033
        %v3035 = vrot.slane %v3021, %v3034
        %v3036 = vcombine.high %v2967, %v832
        %v3038 = vunpack.c.l.s4 1983009808
        %v3039 = vunpack.c.0.s8 %v3038
        %v3040 = vlaneseq
        %v3041 = vshrl.u32 %v3040, 7
        %v3042 = vsub.s32 %v3039, %v3041
        %v3043 = vrot.slane %v2967, %v3042
        %v3045 = vunpack.c.l.s4 1983009808
        %v3046 = vunpack.c.0.s8 %v3045
        %v3047 = vlaneseq
        %v3048 = vshrl.u32 %v3047, 7
        %v3049 = vsub.s32 %v3046, %v3048
        %v3050 = vrot.slane %v3036, %v3049
        %v3051 = vcombine.low %v3028, %v3043
        %v3052 = vcombine.high %v3028, %v3043
        %v3054 = vunpack.c.l.s4 1934713408
        %v3055 = vunpack.c.0.s8 %v3054
        %v3056 = vlaneseq
        %v3057 = vshrl.u32 %v3056, 7
        %v3058 = vsub.s32 %v3055, %v3057
        %v3059 = vrot.slane %v3051, %v3058
        %v3061 = vunpack.c.l.s4 1934713408
        %v3062 = vunpack.c.0.s8 %v3061
        %v3063 = vlaneseq
        %v3064 = vshrl.u32 %v3063, 7
        %v3065 = vsub.s32 %v3062, %v3064
        %v3066 = vrot.slane %v3052, %v3065
        %v3067 = vcombine.low %v3035, %v3050
        %v3068 = vcombine.high %v3035, %v3050
        %v3070 = vunpack.c.l.s4 1934713408
        %v3071 = vunpack.c.0.s8 %v3070
        %v3072 = vlaneseq
        %v3073 = vshrl.u32 %v3072, 7
        %v3074 = vsub.s32 %v3071, %v3073
        %v3075 = vrot.slane %v3067, %v3074
        %v3077 = vunpack.c.l.s4 1934713408
        %v3078 = vunpack.c.0.s8 %v3077
        %v3079 = vlaneseq
        %v3080 = vshrl.u32 %v3079, 7
        %v3081 = vsub.s32 %v3078, %v3080
        %v3082 = vrot.slane %v3068, %v3081
        %v3083 = vcombine.high %v3059, 0
        %v3084 = vcombine.high %v3066, 0
        %v3085 = vcombine.high %v3075, 0
        %v3086 = vcombine.high %v3082, 0
        %v3087 = vcombine.high %v2963, %v835
        %v3089 = vunpack.c.l.s4 1983009808
        %v3090 = vunpack.c.0.s8 %v3089
        %v3091 = vlaneseq
        %v3092 = vshrl.u32 %v3091, 7
        %v3093 = vsub.s32 %v3090, %v3092
        %v3094 = vrot.slane %v2963, %v3093
        %v3096 = vunpack.c.l.s4 1983009808
        %v3097 = vunpack.c.0.s8 %v3096
        %v3098 = vlaneseq
        %v3099 = vshrl.u32 %v3098, 7
        %v3100 = vsub.s32 %v3097, %v3099
        %v3101 = vrot.slane %v3087, %v3100
        %v3102 = vcombine.high %v2971, %v835
        %v3104 = vunpack.c.l.s4 1983009808
        %v3105 = vunpack.c.0.s8 %v3104
        %v3106 = vlaneseq
        %v3107 = vshrl.u32 %v3106, 7
        %v3108 = vsub.s32 %v3105, %v3107
        %v3109 = vrot.slane %v2971, %v3108
        %v3111 = vunpack.c.l.s4 1983009808
        %v3112 = vunpack.c.0.s8 %v3111
        %v3113 = vlaneseq
        %v3114 = vshrl.u32 %v3113, 7
        %v3115 = vsub.s32 %v3112, %v3114
        %v3116 = vrot.slane %v3102, %v3115
        %v3117 = vcombine.low %v3094, %v3109
        %v3118 = vcombine.high %v3094, %v3109
        %v3120 = vunpack.c.l.s4 1934713408
        %v3121 = vunpack.c.0.s8 %v3120
        %v3122 = vlaneseq
        %v3123 = vshrl.u32 %v3122, 7
        %v3124 = vsub.s32 %v3121, %v3123
        %v3125 = vrot.slane %v3117, %v3124
        %v3127 = vunpack.c.l.s4 1934713408
        %v3128 = vunpack.c.0.s8 %v3127
        %v3129 = vlaneseq
        %v3130 = vshrl.u32 %v3129, 7
        %v3131 = vsub.s32 %v3128, %v3130
        %v3132 = vrot.slane %v3118, %v3131
        %v3133 = vcombine.low %v3101, %v3116
        %v3134 = vcombine.high %v3101, %v3116
        %v3136 = vunpack.c.l.s4 1934713408
        %v3137 = vunpack.c.0.s8 %v3136
        %v3138 = vlaneseq
        %v3139 = vshrl.u32 %v3138, 7
        %v3140 = vsub.s32 %v3137, %v3139
        %v3141 = vrot.slane %v3133, %v3140
        %v3143 = vunpack.c.l.s4 1934713408
        %v3144 = vunpack.c.0.s8 %v3143
        %v3145 = vlaneseq
        %v3146 = vshrl.u32 %v3145, 7
        %v3147 = vsub.s32 %v3144, %v3146
        %v3148 = vrot.slane %v3134, %v3147
        %v3149 = vcombine.high %v3125, 0
        %v3150 = vcombine.high %v3132, 0
        %v3151 = vcombine.high %v3141, 0
        %v3152 = vcombine.high %v3148, 0
        %v3153 = vcombine.high %v2975, %v832
        %v3155 = vunpack.c.l.s4 1983009808
        %v3156 = vunpack.c.0.s8 %v3155
        %v3157 = vlaneseq
        %v3158 = vshrl.u32 %v3157, 7
        %v3159 = vsub.s32 %v3156, %v3158
        %v3160 = vrot.slane %v2975, %v3159
        %v3162 = vunpack.c.l.s4 1983009808
        %v3163 = vunpack.c.0.s8 %v3162
        %v3164 = vlaneseq
        %v3165 = vshrl.u32 %v3164, 7
        %v3166 = vsub.s32 %v3163, %v3165
        %v3167 = vrot.slane %v3153, %v3166
        %v3168 = vcombine.high %v2983, %v832
        %v3170 = vunpack.c.l.s4 1983009808
        %v3171 = vunpack.c.0.s8 %v3170
        %v3172 = vlaneseq
        %v3173 = vshrl.u32 %v3172, 7
        %v3174 = vsub.s32 %v3171, %v3173
        %v3175 = vrot.slane %v2983, %v3174
        %v3177 = vunpack.c.l.s4 1983009808
        %v3178 = vunpack.c.0.s8 %v3177
        %v3179 = vlaneseq
        %v3180 = vshrl.u32 %v3179, 7
        %v3181 = vsub.s32 %v3178, %v3180
        %v3182 = vrot.slane %v3168, %v3181
        %v3183 = vcombine.low %v3160, %v3175
        %v3184 = vcombine.high %v3160, %v3175
        %v3186 = vunpack.c.l.s4 1934713408
        %v3187 = vunpack.c.0.s8 %v3186
        %v3188 = vlaneseq
        %v3189 = vshrl.u32 %v3188, 7
        %v3190 = vsub.s32 %v3187, %v3189
        %v3191 = vrot.slane %v3183, %v3190
        %v3193 = vunpack.c.l.s4 1934713408
        %v3194 = vunpack.c.0.s8 %v3193
        %v3195 = vlaneseq
        %v3196 = vshrl.u32 %v3195, 7
        %v3197 = vsub.s32 %v3194, %v3196
        %v3198 = vrot.slane %v3184, %v3197
        %v3199 = vcombine.low %v3167, %v3182
        %v3200 = vcombine.high %v3167, %v3182
        %v3202 = vunpack.c.l.s4 1934713408
        %v3203 = vunpack.c.0.s8 %v3202
        %v3204 = vlaneseq
        %v3205 = vshrl.u32 %v3204, 7
        %v3206 = vsub.s32 %v3203, %v3205
        %v3207 = vrot.slane %v3199, %v3206
        %v3209 = vunpack.c.l.s4 1934713408
        %v3210 = vunpack.c.0.s8 %v3209
        %v3211 = vlaneseq
        %v3212 = vshrl.u32 %v3211, 7
        %v3213 = vsub.s32 %v3210, %v3212
        %v3214 = vrot.slane %v3200, %v3213
        %v3215 = vcombine.high %v3191, 0
        %v3216 = vcombine.high %v3198, 0
        %v3217 = vcombine.high %v3207, 0
        %v3218 = vcombine.high %v3214, 0
        %v3219 = vcombine.high %v2979, %v835
        %v3221 = vunpack.c.l.s4 1983009808
        %v3222 = vunpack.c.0.s8 %v3221
        %v3223 = vlaneseq
        %v3224 = vshrl.u32 %v3223, 7
        %v3225 = vsub.s32 %v3222, %v3224
        %v3226 = vrot.slane %v2979, %v3225
        %v3228 = vunpack.c.l.s4 1983009808
        %v3229 = vunpack.c.0.s8 %v3228
        %v3230 = vlaneseq
        %v3231 = vshrl.u32 %v3230, 7
        %v3232 = vsub.s32 %v3229, %v3231
        %v3233 = vrot.slane %v3219, %v3232
        %v3234 = vcombine.high %v2987, %v835
        %v3236 = vunpack.c.l.s4 1983009808
        %v3237 = vunpack.c.0.s8 %v3236
        %v3238 = vlaneseq
        %v3239 = vshrl.u32 %v3238, 7
        %v3240 = vsub.s32 %v3237, %v3239
        %v3241 = vrot.slane %v2987, %v3240
        %v3243 = vunpack.c.l.s4 1983009808
        %v3244 = vunpack.c.0.s8 %v3243
        %v3245 = vlaneseq
        %v3246 = vshrl.u32 %v3245, 7
        %v3247 = vsub.s32 %v3244, %v3246
        %v3248 = vrot.slane %v3234, %v3247
        %v3249 = vcombine.low %v3226, %v3241
        %v3250 = vcombine.high %v3226, %v3241
        %v3252 = vunpack.c.l.s4 1934713408
        %v3253 = vunpack.c.0.s8 %v3252
        %v3254 = vlaneseq
        %v3255 = vshrl.u32 %v3254, 7
        %v3256 = vsub.s32 %v3253, %v3255
        %v3257 = vrot.slane %v3249, %v3256
        %v3259 = vunpack.c.l.s4 1934713408
        %v3260 = vunpack.c.0.s8 %v3259
        %v3261 = vlaneseq
        %v3262 = vshrl.u32 %v3261, 7
        %v3263 = vsub.s32 %v3260, %v3262
        %v3264 = vrot.slane %v3250, %v3263
        %v3265 = vcombine.low %v3233, %v3248
        %v3266 = vcombine.high %v3233, %v3248
        %v3268 = vunpack.c.l.s4 1934713408
        %v3269 = vunpack.c.0.s8 %v3268
        %v3270 = vlaneseq
        %v3271 = vshrl.u32 %v3270, 7
        %v3272 = vsub.s32 %v3269, %v3271
        %v3273 = vrot.slane %v3265, %v3272
        %v3275 = vunpack.c.l.s4 1934713408
        %v3276 = vunpack.c.0.s8 %v3275
        %v3277 = vlaneseq
        %v3278 = vshrl.u32 %v3277, 7
        %v3279 = vsub.s32 %v3276, %v3278
        %v3280 = vrot.slane %v3266, %v3279
        %v3281 = vcombine.high %v3257, 0
        %v3282 = vcombine.high %v3264, 0
        %v3283 = vcombine.high %v3273, 0
        %v3284 = vcombine.high %v3280, 0
        %v3285 = vcombine.high %v2991, %v832
        %v3287 = vunpack.c.l.s4 1983009808
        %v3288 = vunpack.c.0.s8 %v3287
        %v3289 = vlaneseq
        %v3290 = vshrl.u32 %v3289, 7
        %v3291 = vsub.s32 %v3288, %v3290
        %v3292 = vrot.slane %v2991, %v3291
        %v3294 = vunpack.c.l.s4 1983009808
        %v3295 = vunpack.c.0.s8 %v3294
        %v3296 = vlaneseq
        %v3297 = vshrl.u32 %v3296, 7
        %v3298 = vsub.s32 %v3295, %v3297
        %v3299 = vrot.slane %v3285, %v3298
        %v3300 = vcombine.high %v2999, %v832
        %v3302 = vunpack.c.l.s4 1983009808
        %v3303 = vunpack.c.0.s8 %v3302
        %v3304 = vlaneseq
        %v3305 = vshrl.u32 %v3304, 7
        %v3306 = vsub.s32 %v3303, %v3305
        %v3307 = vrot.slane %v2999, %v3306
        %v3309 = vunpack.c.l.s4 1983009808
        %v3310 = vunpack.c.0.s8 %v3309
        %v3311 = vlaneseq
        %v3312 = vshrl.u32 %v3311, 7
        %v3313 = vsub.s32 %v3310, %v3312
        %v3314 = vrot.slane %v3300, %v3313
        %v3315 = vcombine.low %v3292, %v3307
        %v3316 = vcombine.high %v3292, %v3307
        %v3318 = vunpack.c.l.s4 1934713408
        %v3319 = vunpack.c.0.s8 %v3318
        %v3320 = vlaneseq
        %v3321 = vshrl.u32 %v3320, 7
        %v3322 = vsub.s32 %v3319, %v3321
        %v3323 = vrot.slane %v3315, %v3322
        %v3325 = vunpack.c.l.s4 1934713408
        %v3326 = vunpack.c.0.s8 %v3325
        %v3327 = vlaneseq
        %v3328 = vshrl.u32 %v3327, 7
        %v3329 = vsub.s32 %v3326, %v3328
        %v3330 = vrot.slane %v3316, %v3329
        %v3331 = vcombine.low %v3299, %v3314
        %v3332 = vcombine.high %v3299, %v3314
        %v3334 = vunpack.c.l.s4 1934713408
        %v3335 = vunpack.c.0.s8 %v3334
        %v3336 = vlaneseq
        %v3337 = vshrl.u32 %v3336, 7
        %v3338 = vsub.s32 %v3335, %v3337
        %v3339 = vrot.slane %v3331, %v3338
        %v3341 = vunpack.c.l.s4 1934713408
        %v3342 = vunpack.c.0.s8 %v3341
        %v3343 = vlaneseq
        %v3344 = vshrl.u32 %v3343, 7
        %v3345 = vsub.s32 %v3342, %v3344
        %v3346 = vrot.slane %v3332, %v3345
        %v3347 = vcombine.high %v3323, 0
        %v3348 = vcombine.high %v3330, 0
        %v3349 = vcombine.high %v3339, 0
        %v3350 = vcombine.high %v3346, 0
        %v3351 = vcombine.high %v2995, %v835
        %v3353 = vunpack.c.l.s4 1983009808
        %v3354 = vunpack.c.0.s8 %v3353
        %v3355 = vlaneseq
        %v3356 = vshrl.u32 %v3355, 7
        %v3357 = vsub.s32 %v3354, %v3356
        %v3358 = vrot.slane %v2995, %v3357
        %v3360 = vunpack.c.l.s4 1983009808
        %v3361 = vunpack.c.0.s8 %v3360
        %v3362 = vlaneseq
        %v3363 = vshrl.u32 %v3362, 7
        %v3364 = vsub.s32 %v3361, %v3363
        %v3365 = vrot.slane %v3351, %v3364
        %v3366 = vcombine.high %v3003, %v835
        %v3368 = vunpack.c.l.s4 1983009808
        %v3369 = vunpack.c.0.s8 %v3368
        %v3370 = vlaneseq
        %v3371 = vshrl.u32 %v3370, 7
        %v3372 = vsub.s32 %v3369, %v3371
        %v3373 = vrot.slane %v3003, %v3372
        %v3375 = vunpack.c.l.s4 1983009808
        %v3376 = vunpack.c.0.s8 %v3375
        %v3377 = vlaneseq
        %v3378 = vshrl.u32 %v3377, 7
        %v3379 = vsub.s32 %v3376, %v3378
        %v3380 = vrot.slane %v3366, %v3379
        %v3381 = vcombine.low %v3358, %v3373
        %v3382 = vcombine.high %v3358, %v3373
        %v3384 = vunpack.c.l.s4 1934713408
        %v3385 = vunpack.c.0.s8 %v3384
        %v3386 = vlaneseq
        %v3387 = vshrl.u32 %v3386, 7
        %v3388 = vsub.s32 %v3385, %v3387
        %v3389 = vrot.slane %v3381, %v3388
        %v3391 = vunpack.c.l.s4 1934713408
        %v3392 = vunpack.c.0.s8 %v3391
        %v3393 = vlaneseq
        %v3394 = vshrl.u32 %v3393, 7
        %v3395 = vsub.s32 %v3392, %v3394
        %v3396 = vrot.slane %v3382, %v3395
        %v3397 = vcombine.low %v3365, %v3380
        %v3398 = vcombine.high %v3365, %v3380
        %v3400 = vunpack.c.l.s4 1934713408
        %v3401 = vunpack.c.0.s8 %v3400
        %v3402 = vlaneseq
        %v3403 = vshrl.u32 %v3402, 7
        %v3404 = vsub.s32 %v3401, %v3403
        %v3405 = vrot.slane %v3397, %v3404
        %v3407 = vunpack.c.l.s4 1934713408
        %v3408 = vunpack.c.0.s8 %v3407
        %v3409 = vlaneseq
        %v3410 = vshrl.u32 %v3409, 7
        %v3411 = vsub.s32 %v3408, %v3410
        %v3412 = vrot.slane %v3398, %v3411
        %v3413 = vcombine.high %v3389, 0
        %v3414 = vcombine.high %v3396, 0
        %v3415 = vcombine.high %v3405, 0
        %v3416 = vcombine.high %v3412, 0
        %v3417 = vcombine.high %v3007, %v832
        %v3419 = vunpack.c.l.s4 1983009808
        %v3420 = vunpack.c.0.s8 %v3419
        %v3421 = vlaneseq
        %v3422 = vshrl.u32 %v3421, 7
        %v3423 = vsub.s32 %v3420, %v3422
        %v3424 = vrot.slane %v3007, %v3423
        %v3426 = vunpack.c.l.s4 1983009808
        %v3427 = vunpack.c.0.s8 %v3426
        %v3428 = vlaneseq
        %v3429 = vshrl.u32 %v3428, 7
        %v3430 = vsub.s32 %v3427, %v3429
        %v3431 = vrot.slane %v3417, %v3430
        %v3432 = vcombine.high %v3015, %v832
        %v3434 = vunpack.c.l.s4 1983009808
        %v3435 = vunpack.c.0.s8 %v3434
        %v3436 = vlaneseq
        %v3437 = vshrl.u32 %v3436, 7
        %v3438 = vsub.s32 %v3435, %v3437
        %v3439 = vrot.slane %v3015, %v3438
        %v3441 = vunpack.c.l.s4 1983009808
        %v3442 = vunpack.c.0.s8 %v3441
        %v3443 = vlaneseq
        %v3444 = vshrl.u32 %v3443, 7
        %v3445 = vsub.s32 %v3442, %v3444
        %v3446 = vrot.slane %v3432, %v3445
        %v3447 = vcombine.low %v3424, %v3439
        %v3448 = vcombine.high %v3424, %v3439
        %v3450 = vunpack.c.l.s4 1934713408
        %v3451 = vunpack.c.0.s8 %v3450
        %v3452 = vlaneseq
        %v3453 = vshrl.u32 %v3452, 7
        %v3454 = vsub.s32 %v3451, %v3453
        %v3455 = vrot.slane %v3447, %v3454
        %v3457 = vunpack.c.l.s4 1934713408
        %v3458 = vunpack.c.0.s8 %v3457
        %v3459 = vlaneseq
        %v3460 = vshrl.u32 %v3459, 7
        %v3461 = vsub.s32 %v3458, %v3460
        %v3462 = vrot.slane %v3448, %v3461
        %v3463 = vcombine.low %v3431, %v3446
        %v3464 = vcombine.high %v3431, %v3446
        %v3466 = vunpack.c.l.s4 1934713408
        %v3467 = vunpack.c.0.s8 %v3466
        %v3468 = vlaneseq
        %v3469 = vshrl.u32 %v3468, 7
        %v3470 = vsub.s32 %v3467, %v3469
        %v3471 = vrot.slane %v3463, %v3470
        %v3473 = vunpack.c.l.s4 1934713408
        %v3474 = vunpack.c.0.s8 %v3473
        %v3475 = vlaneseq
        %v3476 = vshrl.u32 %v3475, 7
        %v3477 = vsub.s32 %v3474, %v3476
        %v3478 = vrot.slane %v3464, %v3477
        %v3479 = vcombine.high %v3455, 0
        %v3480 = vcombine.high %v3462, 0
        %v3481 = vcombine.high %v3471, 0
        %v3482 = vcombine.high %v3478, 0
        %v3483 = vcombine.high %v3011, %v835
        %v3485 = vunpack.c.l.s4 1983009808
        %v3486 = vunpack.c.0.s8 %v3485
        %v3487 = vlaneseq
        %v3488 = vshrl.u32 %v3487, 7
        %v3489 = vsub.s32 %v3486, %v3488
        %v3490 = vrot.slane %v3011, %v3489
        %v3492 = vunpack.c.l.s4 1983009808
        %v3493 = vunpack.c.0.s8 %v3492
        %v3494 = vlaneseq
        %v3495 = vshrl.u32 %v3494, 7
        %v3496 = vsub.s32 %v3493, %v3495
        %v3497 = vrot.slane %v3483, %v3496
        %v3498 = vcombine.high %v3019, %v835
        %v3500 = vunpack.c.l.s4 1983009808
        %v3501 = vunpack.c.0.s8 %v3500
        %v3502 = vlaneseq
        %v3503 = vshrl.u32 %v3502, 7
        %v3504 = vsub.s32 %v3501, %v3503
        %v3505 = vrot.slane %v3019, %v3504
        %v3507 = vunpack.c.l.s4 1983009808
        %v3508 = vunpack.c.0.s8 %v3507
        %v3509 = vlaneseq
        %v3510 = vshrl.u32 %v3509, 7
        %v3511 = vsub.s32 %v3508, %v3510
        %v3512 = vrot.slane %v3498, %v3511
        %v3513 = vcombine.low %v3490, %v3505
        %v3514 = vcombine.high %v3490, %v3505
        %v3516 = vunpack.c.l.s4 1934713408
        %v3517 = vunpack.c.0.s8 %v3516
        %v3518 = vlaneseq
        %v3519 = vshrl.u32 %v3518, 7
        %v3520 = vsub.s32 %v3517, %v3519
        %v3521 = vrot.slane %v3513, %v3520
        %v3523 = vunpack.c.l.s4 1934713408
        %v3524 = vunpack.c.0.s8 %v3523
        %v3525 = vlaneseq
        %v3526 = vshrl.u32 %v3525, 7
        %v3527 = vsub.s32 %v3524, %v3526
        %v3528 = vrot.slane %v3514, %v3527
        %v3529 = vcombine.low %v3497, %v3512
        %v3530 = vcombine.high %v3497, %v3512
        %v3532 = vunpack.c.l.s4 1934713408
        %v3533 = vunpack.c.0.s8 %v3532
        %v3534 = vlaneseq
        %v3535 = vshrl.u32 %v3534, 7
        %v3536 = vsub.s32 %v3533, %v3535
        %v3537 = vrot.slane %v3529, %v3536
        %v3539 = vunpack.c.l.s4 1934713408
        %v3540 = vunpack.c.0.s8 %v3539
        %v3541 = vlaneseq
        %v3542 = vshrl.u32 %v3541, 7
        %v3543 = vsub.s32 %v3540, %v3542
        %v3544 = vrot.slane %v3530, %v3543
        %v3545 = vcombine.high %v3521, 0
        %v3546 = vcombine.high %v3528, 0
        %v3547 = vcombine.high %v3537, 0
        %v3548 = vcombine.high %v3544, 0
        %v3549 = vcombine.low %v3059, %v3066
        %v3551 = vunpack.c.l.s4 1983009808
        %v3552 = vunpack.c.0.s8 %v3551
        %v3553 = vlaneseq
        %v3554 = vshrl.u32 %v3553, 7
        %v3555 = vsub.s32 %v3552, %v3554
        %v3556 = vrot.slane %v3549, %v3555
        %v3557 = vcombine.low %v3083, %v3084
        %v3559 = vunpack.c.l.s4 1983009808
        %v3560 = vunpack.c.0.s8 %v3559
        %v3561 = vlaneseq
        %v3562 = vshrl.u32 %v3561, 7
        %v3563 = vsub.s32 %v3560, %v3562
        %v3564 = vrot.slane %v3557, %v3563
        %v3565 = vcombine.low %v3075, %v3082
        %v3567 = vunpack.c.l.s4 1983009808
        %v3568 = vunpack.c.0.s8 %v3567
        %v3569 = vlaneseq
        %v3570 = vshrl.u32 %v3569, 7
        %v3571 = vsub.s32 %v3568, %v3570
        %v3572 = vrot.slane %v3565, %v3571
        %v3573 = vcombine.low %v3085, %v3086
        %v3575 = vunpack.c.l.s4 1983009808
        %v3576 = vunpack.c.0.s8 %v3575
        %v3577 = vlaneseq
        %v3578 = vshrl.u32 %v3577, 7
        %v3579 = vsub.s32 %v3576, %v3578
        %v3580 = vrot.slane %v3573, %v3579
        %v3581 = vcombine.low %v3556, %v3564
        %v3583 = vunpack.c.l.s4 1934713408
        %v3584 = vunpack.c.0.s8 %v3583
        %v3585 = vlaneseq
        %v3586 = vshrl.u32 %v3585, 7
        %v3587 = vsub.s32 %v3584, %v3586
        %v3588 = vrot.slane %v3581, %v3587
        %v3589 = vcombine.low %v3572, %v3580
        %v3591 = vunpack.c.l.s4 1934713408
        %v3592 = vunpack.c.0.s8 %v3591
        %v3593 = vlaneseq
        %v3594 = vshrl.u32 %v3593, 7
        %v3595 = vsub.s32 %v3592, %v3594
        %v3596 = vrot.slane %v3589, %v3595
        %v3597 = vcombine.low %v3588, %v3596
        %v3598 = vcombine.high %v3588, %v3596
        %v3599 = vcombine.low %v3125, %v3132
        %v3601 = vunpack.c.l.s4 1983009808
        %v3602 = vunpack.c.0.s8 %v3601
        %v3603 = vlaneseq
        %v3604 = vshrl.u32 %v3603, 7
        %v3605 = vsub.s32 %v3602, %v3604
        %v3606 = vrot.slane %v3599, %v3605
        %v3607 = vcombine.low %v3149, %v3150
        %v3609 = vunpack.c.l.s4 1983009808
        %v3610 = vunpack.c.0.s8 %v3609
        %v3611 = vlaneseq
        %v3612 = vshrl.u32 %v3611, 7
        %v3613 = vsub.s32 %v3610, %v3612
        %v3614 = vrot.slane %v3607, %v3613
        %v3615 = vcombine.low %v3141, %v3148
        %v3617 = vunpack.c.l.s4 1983009808
        %v3618 = vunpack.c.0.s8 %v3617
        %v3619 = vlaneseq
        %v3620 = vshrl.u32 %v3619, 7
        %v3621 = vsub.s32 %v3618, %v3620
        %v3622 = vrot.slane %v3615, %v3621
        %v3623 = vcombine.low %v3151, %v3152
        %v3625 = vunpack.c.l.s4 1983009808
        %v3626 = vunpack.c.0.s8 %v3625
        %v3627 = vlaneseq
        %v3628 = vshrl.u32 %v3627, 7
        %v3629 = vsub.s32 %v3626, %v3628
        %v3630 = vrot.slane %v3623, %v3629
        %v3631 = vcombine.low %v3606, %v3614
        %v3633 = vunpack.c.l.s4 1934713408
        %v3634 = vunpack.c.0.s8 %v3633
        %v3635 = vlaneseq
        %v3636 = vshrl.u32 %v3635, 7
        %v3637 = vsub.s32 %v3634, %v3636
        %v3638 = vrot.slane %v3631, %v3637
        %v3639 = vcombine.low %v3622, %v3630
        %v3641 = vunpack.c.l.s4 1934713408
        %v3642 = vunpack.c.0.s8 %v3641
        %v3643 = vlaneseq
        %v3644 = vshrl.u32 %v3643, 7
        %v3645 = vsub.s32 %v3642, %v3644
        %v3646 = vrot.slane %v3639, %v3645
        %v3647 = vcombine.low %v3638, %v3646
        %v3648 = vcombine.high %v3638, %v3646
        %v3649 = vcombine.low %v3191, %v3198
        %v3651 = vunpack.c.l.s4 1983009808
        %v3652 = vunpack.c.0.s8 %v3651
        %v3653 = vlaneseq
        %v3654 = vshrl.u32 %v3653, 7
        %v3655 = vsub.s32 %v3652, %v3654
        %v3656 = vrot.slane %v3649, %v3655
        %v3657 = vcombine.low %v3215, %v3216
        %v3659 = vunpack.c.l.s4 1983009808
        %v3660 = vunpack.c.0.s8 %v3659
        %v3661 = vlaneseq
        %v3662 = vshrl.u32 %v3661, 7
        %v3663 = vsub.s32 %v3660, %v3662
        %v3664 = vrot.slane %v3657, %v3663
        %v3665 = vcombine.low %v3207, %v3214
        %v3667 = vunpack.c.l.s4 1983009808
        %v3668 = vunpack.c.0.s8 %v3667
        %v3669 = vlaneseq
        %v3670 = vshrl.u32 %v3669, 7
        %v3671 = vsub.s32 %v3668, %v3670
        %v3672 = vrot.slane %v3665, %v3671
        %v3673 = vcombine.low %v3217, %v3218
        %v3675 = vunpack.c.l.s4 1983009808
        %v3676 = vunpack.c.0.s8 %v3675
        %v3677 = vlaneseq
        %v3678 = vshrl.u32 %v3677, 7
        %v3679 = vsub.s32 %v3676, %v3678
        %v3680 = vrot.slane %v3673, %v3679
        %v3681 = vcombine.low %v3656, %v3664
        %v3683 = vunpack.c.l.s4 1934713408
        %v3684 = vunpack.c.0.s8 %v3683
        %v3685 = vlaneseq
        %v3686 = vshrl.u32 %v3685, 7
        %v3687 = vsub.s32 %v3684, %v3686
        %v3688 = vrot.slane %v3681, %v3687
        %v3689 = vcombine.low %v3672, %v3680
        %v3691 = vunpack.c.l.s4 1934713408
        %v3692 = vunpack.c.0.s8 %v3691
        %v3693 = vlaneseq
        %v3694 = vshrl.u32 %v3693, 7
        %v3695 = vsub.s32 %v3692, %v3694
        %v3696 = vrot.slane %v3689, %v3695
        %v3697 = vcombine.low %v3688, %v3696
        %v3698 = vcombine.high %v3688, %v3696
        %v3699 = vcombine.low %v3257, %v3264
        %v3701 = vunpack.c.l.s4 1983009808
        %v3702 = vunpack.c.0.s8 %v3701
        %v3703 = vlaneseq
        %v3704 = vshrl.u32 %v3703, 7
        %v3705 = vsub.s32 %v3702, %v3704
        %v3706 = vrot.slane %v3699, %v3705
        %v3707 = vcombine.low %v3281, %v3282
        %v3709 = vunpack.c.l.s4 1983009808
        %v3710 = vunpack.c.0.s8 %v3709
        %v3711 = vlaneseq
        %v3712 = vshrl.u32 %v3711, 7
        %v3713 = vsub.s32 %v3710, %v3712
        %v3714 = vrot.slane %v3707, %v3713
        %v3715 = vcombine.low %v3273, %v3280
        %v3717 = vunpack.c.l.s4 1983009808
        %v3718 = vunpack.c.0.s8 %v3717
        %v3719 = vlaneseq
        %v3720 = vshrl.u32 %v3719, 7
        %v3721 = vsub.s32 %v3718, %v3720
        %v3722 = vrot.slane %v3715, %v3721
        %v3723 = vcombine.low %v3283, %v3284
        %v3725 = vunpack.c.l.s4 1983009808
        %v3726 = vunpack.c.0.s8 %v3725
        %v3727 = vlaneseq
        %v3728 = vshrl.u32 %v3727, 7
        %v3729 = vsub.s32 %v3726, %v3728
        %v3730 = vrot.slane %v3723, %v3729
        %v3731 = vcombine.low %v3706, %v3714
        %v3733 = vunpack.c.l.s4 1934713408
        %v3734 = vunpack.c.0.s8 %v3733
        %v3735 = vlaneseq
        %v3736 = vshrl.u32 %v3735, 7
        %v3737 = vsub.s32 %v3734, %v3736
        %v3738 = vrot.slane %v3731, %v3737
        %v3739 = vcombine.low %v3722, %v3730
        %v3741 = vunpack.c.l.s4 1934713408
        %v3742 = vunpack.c.0.s8 %v3741
        %v3743 = vlaneseq
        %v3744 = vshrl.u32 %v3743, 7
        %v3745 = vsub.s32 %v3742, %v3744
        %v3746 = vrot.slane %v3739, %v3745
        %v3747 = vcombine.low %v3738, %v3746
        %v3748 = vcombine.high %v3738, %v3746
        %v3749 = vcombine.low %v3323, %v3330
        %v3751 = vunpack.c.l.s4 1983009808
        %v3752 = vunpack.c.0.s8 %v3751
        %v3753 = vlaneseq
        %v3754 = vshrl.u32 %v3753, 7
        %v3755 = vsub.s32 %v3752, %v3754
        %v3756 = vrot.slane %v3749, %v3755
        %v3757 = vcombine.low %v3347, %v3348
        %v3759 = vunpack.c.l.s4 1983009808
        %v3760 = vunpack.c.0.s8 %v3759
        %v3761 = vlaneseq
        %v3762 = vshrl.u32 %v3761, 7
        %v3763 = vsub.s32 %v3760, %v3762
        %v3764 = vrot.slane %v3757, %v3763
        %v3765 = vcombine.low %v3339, %v3346
        %v3767 = vunpack.c.l.s4 1983009808
        %v3768 = vunpack.c.0.s8 %v3767
        %v3769 = vlaneseq
        %v3770 = vshrl.u32 %v3769, 7
        %v3771 = vsub.s32 %v3768, %v3770
        %v3772 = vrot.slane %v3765, %v3771
        %v3773 = vcombine.low %v3349, %v3350
        %v3775 = vunpack.c.l.s4 1983009808
        %v3776 = vunpack.c.0.s8 %v3775
        %v3777 = vlaneseq
        %v3778 = vshrl.u32 %v3777, 7
        %v3779 = vsub.s32 %v3776, %v3778
        %v3780 = vrot.slane %v3773, %v3779
        %v3781 = vcombine.low %v3756, %v3764
        %v3783 = vunpack.c.l.s4 1934713408
        %v3784 = vunpack.c.0.s8 %v3783
        %v3785 = vlaneseq
        %v3786 = vshrl.u32 %v3785, 7
        %v3787 = vsub.s32 %v3784, %v3786
        %v3788 = vrot.slane %v3781, %v3787
        %v3789 = vcombine.low %v3772, %v3780
        %v3791 = vunpack.c.l.s4 1934713408
        %v3792 = vunpack.c.0.s8 %v3791
        %v3793 = vlaneseq
        %v3794 = vshrl.u32 %v3793, 7
        %v3795 = vsub.s32 %v3792, %v3794
        %v3796 = vrot.slane %v3789, %v3795
        %v3797 = vcombine.low %v3788, %v3796
        %v3798 = vcombine.high %v3788, %v3796
        %v3799 = vcombine.low %v3389, %v3396
        %v3801 = vunpack.c.l.s4 1983009808
        %v3802 = vunpack.c.0.s8 %v3801
        %v3803 = vlaneseq
        %v3804 = vshrl.u32 %v3803, 7
        %v3805 = vsub.s32 %v3802, %v3804
        %v3806 = vrot.slane %v3799, %v3805
        %v3807 = vcombine.low %v3413, %v3414
        %v3809 = vunpack.c.l.s4 1983009808
        %v3810 = vunpack.c.0.s8 %v3809
        %v3811 = vlaneseq
        %v3812 = vshrl.u32 %v3811, 7
        %v3813 = vsub.s32 %v3810, %v3812
        %v3814 = vrot.slane %v3807, %v3813
        %v3815 = vcombine.low %v3405, %v3412
        %v3817 = vunpack.c.l.s4 1983009808
        %v3818 = vunpack.c.0.s8 %v3817
        %v3819 = vlaneseq
        %v3820 = vshrl.u32 %v3819, 7
        %v3821 = vsub.s32 %v3818, %v3820
        %v3822 = vrot.slane %v3815, %v3821
        %v3823 = vcombine.low %v3415, %v3416
        %v3825 = vunpack.c.l.s4 1983009808
        %v3826 = vunpack.c.0.s8 %v3825
        %v3827 = vlaneseq
        %v3828 = vshrl.u32 %v3827, 7
        %v3829 = vsub.s32 %v3826, %v3828
        %v3830 = vrot.slane %v3823, %v3829
        %v3831 = vcombine.low %v3806, %v3814
        %v3833 = vunpack.c.l.s4 1934713408
        %v3834 = vunpack.c.0.s8 %v3833
        %v3835 = vlaneseq
        %v3836 = vshrl.u32 %v3835, 7
        %v3837 = vsub.s32 %v3834, %v3836
        %v3838 = vrot.slane %v3831, %v3837
        %v3839 = vcombine.low %v3822, %v3830
        %v3841 = vunpack.c.l.s4 1934713408
        %v3842 = vunpack.c.0.s8 %v3841
        %v3843 = vlaneseq
        %v3844 = vshrl.u32 %v3843, 7
        %v3845 = vsub.s32 %v3842, %v3844
        %v3846 = vrot.slane %v3839, %v3845
        %v3847 = vcombine.low %v3838, %v3846
        %v3848 = vcombine.high %v3838, %v3846
        %v3849 = vcombine.low %v3455, %v3462
        %v3851 = vunpack.c.l.s4 1983009808
        %v3852 = vunpack.c.0.s8 %v3851
        %v3853 = vlaneseq
        %v3854 = vshrl.u32 %v3853, 7
        %v3855 = vsub.s32 %v3852, %v3854
        %v3856 = vrot.slane %v3849, %v3855
        %v3857 = vcombine.low %v3479, %v3480
        %v3859 = vunpack.c.l.s4 1983009808
        %v3860 = vunpack.c.0.s8 %v3859
        %v3861 = vlaneseq
        %v3862 = vshrl.u32 %v3861, 7
        %v3863 = vsub.s32 %v3860, %v3862
        %v3864 = vrot.slane %v3857, %v3863
        %v3865 = vcombine.low %v3471, %v3478
        %v3867 = vunpack.c.l.s4 1983009808
        %v3868 = vunpack.c.0.s8 %v3867
        %v3869 = vlaneseq
        %v3870 = vshrl.u32 %v3869, 7
        %v3871 = vsub.s32 %v3868, %v3870
        %v3872 = vrot.slane %v3865, %v3871
        %v3873 = vcombine.low %v3481, %v3482
        %v3875 = vunpack.c.l.s4 1983009808
        %v3876 = vunpack.c.0.s8 %v3875
        %v3877 = vlaneseq
        %v3878 = vshrl.u32 %v3877, 7
        %v3879 = vsub.s32 %v3876, %v3878
        %v3880 = vrot.slane %v3873, %v3879
        %v3881 = vcombine.low %v3856, %v3864
        %v3883 = vunpack.c.l.s4 1934713408
        %v3884 = vunpack.c.0.s8 %v3883
        %v3885 = vlaneseq
        %v3886 = vshrl.u32 %v3885, 7
        %v3887 = vsub.s32 %v3884, %v3886
        %v3888 = vrot.slane %v3881, %v3887
        %v3889 = vcombine.low %v3872, %v3880
        %v3891 = vunpack.c.l.s4 1934713408
        %v3892 = vunpack.c.0.s8 %v3891
        %v3893 = vlaneseq
        %v3894 = vshrl.u32 %v3893, 7
        %v3895 = vsub.s32 %v3892, %v3894
        %v3896 = vrot.slane %v3889, %v3895
        %v3897 = vcombine.low %v3888, %v3896
        %v3898 = vcombine.high %v3888, %v3896
        %v3899 = vcombine.low %v3521, %v3528
        %v3901 = vunpack.c.l.s4 1983009808
        %v3902 = vunpack.c.0.s8 %v3901
        %v3903 = vlaneseq
        %v3904 = vshrl.u32 %v3903, 7
        %v3905 = vsub.s32 %v3902, %v3904
        %v3906 = vrot.slane %v3899, %v3905
        %v3907 = vcombine.low %v3545, %v3546
        %v3909 = vunpack.c.l.s4 1983009808
        %v3910 = vunpack.c.0.s8 %v3909
        %v3911 = vlaneseq
        %v3912 = vshrl.u32 %v3911, 7
        %v3913 = vsub.s32 %v3910, %v3912
        %v3914 = vrot.slane %v3907, %v3913
        %v3915 = vcombine.low %v3537, %v3544
        %v3917 = vunpack.c.l.s4 1983009808
        %v3918 = vunpack.c.0.s8 %v3917
        %v3919 = vlaneseq
        %v3920 = vshrl.u32 %v3919, 7
        %v3921 = vsub.s32 %v3918, %v3920
        %v3922 = vrot.slane %v3915, %v3921
        %v3923 = vcombine.low %v3547, %v3548
        %v3925 = vunpack.c.l.s4 1983009808
        %v3926 = vunpack.c.0.s8 %v3925
        %v3927 = vlaneseq
        %v3928 = vshrl.u32 %v3927, 7
        %v3929 = vsub.s32 %v3926, %v3928
        %v3930 = vrot.slane %v3923, %v3929
        %v3931 = vcombine.low %v3906, %v3914
        %v3933 = vunpack.c.l.s4 1934713408
        %v3934 = vunpack.c.0.s8 %v3933
        %v3935 = vlaneseq
        %v3936 = vshrl.u32 %v3935, 7
        %v3937 = vsub.s32 %v3934, %v3936
        %v3938 = vrot.slane %v3931, %v3937
        %v3939 = vcombine.low %v3922, %v3930
        %v3941 = vunpack.c.l.s4 1934713408
        %v3942 = vunpack.c.0.s8 %v3941
        %v3943 = vlaneseq
        %v3944 = vshrl.u32 %v3943, 7
        %v3945 = vsub.s32 %v3942, %v3944
        %v3946 = vrot.slane %v3939, %v3945
        %v3947 = vcombine.low %v3938, %v3946
        %v3948 = vcombine.high %v3938, %v3946
        %v3951 = vpack.i.b16 %v3647, %v3597
        %v3953 = vshrl.u32 %v3597, 16
        %v3954 = vshrl.u32 %v3647, 16
        %v3955 = vpack.i.b16 %v3954, %v3953
        %v3959 = vpack.i.b16 %v3648, %v3598
        %v3961 = vshrl.u32 %v3598, 16
        %v3962 = vshrl.u32 %v3648, 16
        %v3963 = vpack.i.b16 %v3962, %v3961
        %v3967 = vpack.i.b16 %v3747, %v3697
        %v3969 = vshrl.u32 %v3697, 16
        %v3970 = vshrl.u32 %v3747, 16
        %v3971 = vpack.i.b16 %v3970, %v3969
        %v3975 = vpack.i.b16 %v3748, %v3698
        %v3977 = vshrl.u32 %v3698, 16
        %v3978 = vshrl.u32 %v3748, 16
        %v3979 = vpack.i.b16 %v3978, %v3977
        %v3983 = vpack.i.b16 %v3847, %v3797
        %v3985 = vshrl.u32 %v3797, 16
        %v3986 = vshrl.u32 %v3847, 16
        %v3987 = vpack.i.b16 %v3986, %v3985
        %v3991 = vpack.i.b16 %v3848, %v3798
        %v3993 = vshrl.u32 %v3798, 16
        %v3994 = vshrl.u32 %v3848, 16
        %v3995 = vpack.i.b16 %v3994, %v3993
        %v3999 = vpack.i.b16 %v3947, %v3897
        %v4001 = vshrl.u32 %v3897, 16
        %v4002 = vshrl.u32 %v3947, 16
        %v4003 = vpack.i.b16 %v4002, %v4001
        %v4007 = vpack.i.b16 %v3948, %v3898
        %v4009 = vshrl.u32 %v3898, 16
        %v4010 = vshrl.u32 %v3948, 16
        %v4011 = vpack.i.b16 %v4010, %v4009
        %vm4013 = vcmask 64512
        %v4015 = vsel %vm4013, %v1815, 0
        %v4018 = vsel %vm4013, %v2883, 0
        %4020 = vmatprep.subr.bf16.mxu0 0
        %4021 = vmatpush1.bf16.xpose.msra.mxu0 0
        %4022 = vmatprep.subr.bf16.mxu0 0
        %4023 = vmatpush1.bf16.xpose.msra.mxu0 0
        %4024 = vmatprep.subr.bf16.mxu0 0
        %4025 = vmatpush1.bf16.xpose.msra.mxu0 0
        %4026 = vmatprep.subr.bf16.mxu0 0
        %4027 = vmatpush1.bf16.xpose.msra.mxu0 0
        %4028 = vmatprep.subr.bf16.mxu0 0
        %4029 = vmatpush1.bf16.xpose.msra.mxu0 0
        %4030 = vmatprep.subr.bf16.mxu0 0
        %4031 = vmatpush1.bf16.xpose.msra.mxu0 0
        %4032 = vmatprep.subr.bf16.mxu0 0
        %4033 = vmatpush1.bf16.xpose.msra.mxu0 0
        %4034 = vmatprep.subr.bf16.mxu0 0
        %4035 = vmatpush1.bf16.xpose.msra.mxu0 %v4018
        %4036 = vmatprep.subr.bf16.mxu0 0
        %4037 = vmatpush2.bf16.xpose.msra.mxu0 0
        %4038 = vmatprep.subr.bf16.mxu0 0
        %4039 = vmatpush2.bf16.xpose.msra.mxu0 0
        %4040 = vmatprep.subr.bf16.mxu0 0
        %4041 = vmatpush2.bf16.xpose.msra.mxu0 0
        %4042 = vmatprep.subr.bf16.mxu0 0
        %4043 = vmatpush2.bf16.xpose.msra.mxu0 0
        %4044 = vmatprep.subr.bf16.mxu0 0
        %4045 = vmatpush2.bf16.xpose.msra.mxu0 0
        %4046 = vmatprep.subr.bf16.mxu0 0
        %4047 = vmatpush2.bf16.xpose.msra.mxu0 0
        %4048 = vmatprep.subr.bf16.mxu0 0
        %4049 = vmatpush2.bf16.xpose.msra.mxu0 0
        %4050 = vmatprep.subr.bf16.mxu0 0
        %4051 = vmatpush2.bf16.xpose.msra.mxu0 0
        %4052 = vmatprep.mubr.bf16.mxu0 0
        %4053 = vmatmul.mubr.bf16.gmra.mxu0 %v4015
        %v4054 = vpop.f32.mrf.mxu0
        %v4055 = vadd.f32 0.0, %v4054
        %v4056 = vpop.f32.mrf.mxu0
        %v4057 = vpop.f32.mrf.mxu0
        %v4058 = vadd.f32 0.0, %v4057
        %v4059 = vpop.f32.mrf.mxu0
        %4060 = vdwg.mxu0
        %v4062 = vsel %vm4013, %v1818, 0
        %v4065 = vsel %vm4013, %v2886, 0
        %4067 = vmatprep.subr.bf16.mxu0 0
        %4068 = vmatpush1.bf16.xpose.msra.mxu0 0
        %4069 = vmatprep.subr.bf16.mxu0 0
        %4070 = vmatpush1.bf16.xpose.msra.mxu0 0
        %4071 = vmatprep.subr.bf16.mxu0 0
        %4072 = vmatpush1.bf16.xpose.msra.mxu0 0
        %4073 = vmatprep.subr.bf16.mxu0 0
        %4074 = vmatpush1.bf16.xpose.msra.mxu0 0
        %4075 = vmatprep.subr.bf16.mxu0 0
        %4076 = vmatpush1.bf16.xpose.msra.mxu0 0
        %4077 = vmatprep.subr.bf16.mxu0 0
        %4078 = vmatpush1.bf16.xpose.msra.mxu0 0
        %4079 = vmatprep.subr.bf16.mxu0 0
        %4080 = vmatpush1.bf16.xpose.msra.mxu0 0
        %4081 = vmatprep.subr.bf16.mxu0 0
        %4082 = vmatpush1.bf16.xpose.msra.mxu0 %v4065
        %4083 = vmatprep.subr.bf16.mxu0 0
        %4084 = vmatpush2.bf16.xpose.msra.mxu0 0
        %4085 = vmatprep.subr.bf16.mxu0 0
        %4086 = vmatpush2.bf16.xpose.msra.mxu0 0
        %4087 = vmatprep.subr.bf16.mxu0 0
        %4088 = vmatpush2.bf16.xpose.msra.mxu0 0
        %4089 = vmatprep.subr.bf16.mxu0 0
        %4090 = vmatpush2.bf16.xpose.msra.mxu0 0
        %4091 = vmatprep.subr.bf16.mxu0 0
        %4092 = vmatpush2.bf16.xpose.msra.mxu0 0
        %4093 = vmatprep.subr.bf16.mxu0 0
        %4094 = vmatpush2.bf16.xpose.msra.mxu0 0
        %4095 = vmatprep.subr.bf16.mxu0 0
        %4096 = vmatpush2.bf16.xpose.msra.mxu0 0
        %4097 = vmatprep.subr.bf16.mxu0 0
        %4098 = vmatpush2.bf16.xpose.msra.mxu0 0
        %4099 = vmatprep.mubr.bf16.mxu0 0
        %4100 = vmatmul.mubr.bf16.gmra.mxu0 %v4062
        %v4101 = vpop.f32.mrf.mxu0
        %v4102 = vadd.f32 0.0, %v4101
        %v4103 = vpop.f32.mrf.mxu0
        %v4104 = vpop.f32.mrf.mxu0
        %v4105 = vadd.f32 0.0, %v4104
        %v4106 = vpop.f32.mrf.mxu0
        %4107 = vdwg.mxu0
        %v4109 = vsel %vm4013, %v1821, 0
        %v4112 = vsel %vm4013, %v2889, 0
        %4114 = vmatprep.subr.bf16.mxu0 0
        %4115 = vmatpush1.bf16.xpose.msra.mxu0 0
        %4116 = vmatprep.subr.bf16.mxu0 0
        %4117 = vmatpush1.bf16.xpose.msra.mxu0 0
        %4118 = vmatprep.subr.bf16.mxu0 0
        %4119 = vmatpush1.bf16.xpose.msra.mxu0 0
        %4120 = vmatprep.subr.bf16.mxu0 0
        %4121 = vmatpush1.bf16.xpose.msra.mxu0 0
        %4122 = vmatprep.subr.bf16.mxu0 0
        %4123 = vmatpush1.bf16.xpose.msra.mxu0 0
        %4124 = vmatprep.subr.bf16.mxu0 0
        %4125 = vmatpush1.bf16.xpose.msra.mxu0 0
        %4126 = vmatprep.subr.bf16.mxu0 0
        %4127 = vmatpush1.bf16.xpose.msra.mxu0 0
        %4128 = vmatprep.subr.bf16.mxu0 0
        %4129 = vmatpush1.bf16.xpose.msra.mxu0 %v4112
        %4130 = vmatprep.subr.bf16.mxu0 0
        %4131 = vmatpush2.bf16.xpose.msra.mxu0 0
        %4132 = vmatprep.subr.bf16.mxu0 0
        %4133 = vmatpush2.bf16.xpose.msra.mxu0 0
        %4134 = vmatprep.subr.bf16.mxu0 0
        %4135 = vmatpush2.bf16.xpose.msra.mxu0 0
        %4136 = vmatprep.subr.bf16.mxu0 0
        %4137 = vmatpush2.bf16.xpose.msra.mxu0 0
        %4138 = vmatprep.subr.bf16.mxu0 0
        %4139 = vmatpush2.bf16.xpose.msra.mxu0 0
        %4140 = vmatprep.subr.bf16.mxu0 0
        %4141 = vmatpush2.bf16.xpose.msra.mxu0 0
        %4142 = vmatprep.subr.bf16.mxu0 0
        %4143 = vmatpush2.bf16.xpose.msra.mxu0 0
        %4144 = vmatprep.subr.bf16.mxu0 0
        %4145 = vmatpush2.bf16.xpose.msra.mxu0 0
        %4146 = vmatprep.mubr.bf16.mxu0 0
        %4147 = vmatmul.mubr.bf16.gmra.mxu0 %v4109
        %v4148 = vpop.f32.mrf.mxu0
        %v4149 = vadd.f32 0.0, %v4148
        %v4150 = vpop.f32.mrf.mxu0
        %v4151 = vpop.f32.mrf.mxu0
        %v4152 = vadd.f32 0.0, %v4151
        %v4153 = vpop.f32.mrf.mxu0
        %4154 = vdwg.mxu0
        %v4156 = vsel %vm4013, %v1824, 0
        %v4159 = vsel %vm4013, %v2892, 0
        %4161 = vmatprep.subr.bf16.mxu0 0
        %4162 = vmatpush1.bf16.xpose.msra.mxu0 0
        %4163 = vmatprep.subr.bf16.mxu0 0
        %4164 = vmatpush1.bf16.xpose.msra.mxu0 0
        %4165 = vmatprep.subr.bf16.mxu0 0
        %4166 = vmatpush1.bf16.xpose.msra.mxu0 0
        %4167 = vmatprep.subr.bf16.mxu0 0
        %4168 = vmatpush1.bf16.xpose.msra.mxu0 0
        %4169 = vmatprep.subr.bf16.mxu0 0
        %4170 = vmatpush1.bf16.xpose.msra.mxu0 0
        %4171 = vmatprep.subr.bf16.mxu0 0
        %4172 = vmatpush1.bf16.xpose.msra.mxu0 0
        %4173 = vmatprep.subr.bf16.mxu0 0
        %4174 = vmatpush1.bf16.xpose.msra.mxu0 0
        %4175 = vmatprep.subr.bf16.mxu0 0
        %4176 = vmatpush1.bf16.xpose.msra.mxu0 %v4159
        %4177 = vmatprep.subr.bf16.mxu0 0
        %4178 = vmatpush2.bf16.xpose.msra.mxu0 0
        %4179 = vmatprep.subr.bf16.mxu0 0
        %4180 = vmatpush2.bf16.xpose.msra.mxu0 0
        %4181 = vmatprep.subr.bf16.mxu0 0
        %4182 = vmatpush2.bf16.xpose.msra.mxu0 0
        %4183 = vmatprep.subr.bf16.mxu0 0
        %4184 = vmatpush2.bf16.xpose.msra.mxu0 0
        %4185 = vmatprep.subr.bf16.mxu0 0
        %4186 = vmatpush2.bf16.xpose.msra.mxu0 0
        %4187 = vmatprep.subr.bf16.mxu0 0
        %4188 = vmatpush2.bf16.xpose.msra.mxu0 0
        %4189 = vmatprep.subr.bf16.mxu0 0
        %4190 = vmatpush2.bf16.xpose.msra.mxu0 0
        %4191 = vmatprep.subr.bf16.mxu0 0
        %4192 = vmatpush2.bf16.xpose.msra.mxu0 0
        %4193 = vmatprep.mubr.bf16.mxu0 0
        %4194 = vmatmul.mubr.bf16.gmra.mxu0 %v4156
        %v4195 = vpop.f32.mrf.mxu0
        %v4196 = vadd.f32 0.0, %v4195
        %v4197 = vpop.f32.mrf.mxu0
        %v4198 = vpop.f32.mrf.mxu0
        %v4199 = vadd.f32 0.0, %v4198
        %v4200 = vpop.f32.mrf.mxu0
        %4201 = vdwg.mxu0
        %v4203 = vsel %vm4013, %v1827, 0
        %v4206 = vsel %vm4013, %v2895, 0
        %4208 = vmatprep.subr.bf16.mxu0 0
        %4209 = vmatpush1.bf16.xpose.msra.mxu0 0
        %4210 = vmatprep.subr.bf16.mxu0 0
        %4211 = vmatpush1.bf16.xpose.msra.mxu0 0
        %4212 = vmatprep.subr.bf16.mxu0 0
        %4213 = vmatpush1.bf16.xpose.msra.mxu0 0
        %4214 = vmatprep.subr.bf16.mxu0 0
        %4215 = vmatpush1.bf16.xpose.msra.mxu0 0
        %4216 = vmatprep.subr.bf16.mxu0 0
        %4217 = vmatpush1.bf16.xpose.msra.mxu0 0
        %4218 = vmatprep.subr.bf16.mxu0 0
        %4219 = vmatpush1.bf16.xpose.msra.mxu0 0
        %4220 = vmatprep.subr.bf16.mxu0 0
        %4221 = vmatpush1.bf16.xpose.msra.mxu0 0
        %4222 = vmatprep.subr.bf16.mxu0 0
        %4223 = vmatpush1.bf16.xpose.msra.mxu0 %v4206
        %4224 = vmatprep.subr.bf16.mxu0 0
        %4225 = vmatpush2.bf16.xpose.msra.mxu0 0
        %4226 = vmatprep.subr.bf16.mxu0 0
        %4227 = vmatpush2.bf16.xpose.msra.mxu0 0
        %4228 = vmatprep.subr.bf16.mxu0 0
        %4229 = vmatpush2.bf16.xpose.msra.mxu0 0
        %4230 = vmatprep.subr.bf16.mxu0 0
        %4231 = vmatpush2.bf16.xpose.msra.mxu0 0
        %4232 = vmatprep.subr.bf16.mxu0 0
        %4233 = vmatpush2.bf16.xpose.msra.mxu0 0
        %4234 = vmatprep.subr.bf16.mxu0 0
        %4235 = vmatpush2.bf16.xpose.msra.mxu0 0
        %4236 = vmatprep.subr.bf16.mxu0 0
        %4237 = vmatpush2.bf16.xpose.msra.mxu0 0
        %4238 = vmatprep.subr.bf16.mxu0 0
        %4239 = vmatpush2.bf16.xpose.msra.mxu0 0
        %4240 = vmatprep.mubr.bf16.mxu0 0
        %4241 = vmatmul.mubr.bf16.gmra.mxu0 %v4203
        %v4242 = vpop.f32.mrf.mxu0
        %v4243 = vadd.f32 0.0, %v4242
        %v4244 = vpop.f32.mrf.mxu0
        %v4245 = vpop.f32.mrf.mxu0
        %v4246 = vadd.f32 0.0, %v4245
        %v4247 = vpop.f32.mrf.mxu0
        %4248 = vdwg.mxu0
        %v4250 = vsel %vm4013, %v1830, 0
        %v4253 = vsel %vm4013, %v2898, 0
        %4255 = vmatprep.subr.bf16.mxu0 0
        %4256 = vmatpush1.bf16.xpose.msra.mxu0 0
        %4257 = vmatprep.subr.bf16.mxu0 0
        %4258 = vmatpush1.bf16.xpose.msra.mxu0 0
        %4259 = vmatprep.subr.bf16.mxu0 0
        %4260 = vmatpush1.bf16.xpose.msra.mxu0 0
        %4261 = vmatprep.subr.bf16.mxu0 0
        %4262 = vmatpush1.bf16.xpose.msra.mxu0 0
        %4263 = vmatprep.subr.bf16.mxu0 0
        %4264 = vmatpush1.bf16.xpose.msra.mxu0 0
        %4265 = vmatprep.subr.bf16.mxu0 0
        %4266 = vmatpush1.bf16.xpose.msra.mxu0 0
        %4267 = vmatprep.subr.bf16.mxu0 0
        %4268 = vmatpush1.bf16.xpose.msra.mxu0 0
        %4269 = vmatprep.subr.bf16.mxu0 0
        %4270 = vmatpush1.bf16.xpose.msra.mxu0 %v4253
        %4271 = vmatprep.subr.bf16.mxu0 0
        %4272 = vmatpush2.bf16.xpose.msra.mxu0 0
        %4273 = vmatprep.subr.bf16.mxu0 0
        %4274 = vmatpush2.bf16.xpose.msra.mxu0 0
        %4275 = vmatprep.subr.bf16.mxu0 0
        %4276 = vmatpush2.bf16.xpose.msra.mxu0 0
        %4277 = vmatprep.subr.bf16.mxu0 0
        %4278 = vmatpush2.bf16.xpose.msra.mxu0 0
        %4279 = vmatprep.subr.bf16.mxu0 0
        %4280 = vmatpush2.bf16.xpose.msra.mxu0 0
        %4281 = vmatprep.subr.bf16.mxu0 0
        %4282 = vmatpush2.bf16.xpose.msra.mxu0 0
        %4283 = vmatprep.subr.bf16.mxu0 0
        %4284 = vmatpush2.bf16.xpose.msra.mxu0 0
        %4285 = vmatprep.subr.bf16.mxu0 0
        %4286 = vmatpush2.bf16.xpose.msra.mxu0 0
        %4287 = vmatprep.mubr.bf16.mxu0 0
        %4288 = vmatmul.mubr.bf16.gmra.mxu0 %v4250
        %v4289 = vpop.f32.mrf.mxu0
        %v4290 = vadd.f32 0.0, %v4289
        %v4291 = vpop.f32.mrf.mxu0
        %v4292 = vpop.f32.mrf.mxu0
        %v4293 = vadd.f32 0.0, %v4292
        %v4294 = vpop.f32.mrf.mxu0
        %4295 = vdwg.mxu0
        %v4297 = vsel %vm4013, %v1833, 0
        %v4300 = vsel %vm4013, %v2901, 0
        %4302 = vmatprep.subr.bf16.mxu0 0
        %4303 = vmatpush1.bf16.xpose.msra.mxu0 0
        %4304 = vmatprep.subr.bf16.mxu0 0
        %4305 = vmatpush1.bf16.xpose.msra.mxu0 0
        %4306 = vmatprep.subr.bf16.mxu0 0
        %4307 = vmatpush1.bf16.xpose.msra.mxu0 0
        %4308 = vmatprep.subr.bf16.mxu0 0
        %4309 = vmatpush1.bf16.xpose.msra.mxu0 0
        %4310 = vmatprep.subr.bf16.mxu0 0
        %4311 = vmatpush1.bf16.xpose.msra.mxu0 0
        %4312 = vmatprep.subr.bf16.mxu0 0
        %4313 = vmatpush1.bf16.xpose.msra.mxu0 0
        %4314 = vmatprep.subr.bf16.mxu0 0
        %4315 = vmatpush1.bf16.xpose.msra.mxu0 0
        %4316 = vmatprep.subr.bf16.mxu0 0
        %4317 = vmatpush1.bf16.xpose.msra.mxu0 %v4300
        %4318 = vmatprep.subr.bf16.mxu0 0
        %4319 = vmatpush2.bf16.xpose.msra.mxu0 0
        %4320 = vmatprep.subr.bf16.mxu0 0
        %4321 = vmatpush2.bf16.xpose.msra.mxu0 0
        %4322 = vmatprep.subr.bf16.mxu0 0
        %4323 = vmatpush2.bf16.xpose.msra.mxu0 0
        %4324 = vmatprep.subr.bf16.mxu0 0
        %4325 = vmatpush2.bf16.xpose.msra.mxu0 0
        %4326 = vmatprep.subr.bf16.mxu0 0
        %4327 = vmatpush2.bf16.xpose.msra.mxu0 0
        %4328 = vmatprep.subr.bf16.mxu0 0
        %4329 = vmatpush2.bf16.xpose.msra.mxu0 0
        %4330 = vmatprep.subr.bf16.mxu0 0
        %4331 = vmatpush2.bf16.xpose.msra.mxu0 0
        %4332 = vmatprep.subr.bf16.mxu0 0
        %4333 = vmatpush2.bf16.xpose.msra.mxu0 0
        %4334 = vmatprep.mubr.bf16.mxu0 0
        %4335 = vmatmul.mubr.bf16.gmra.mxu0 %v4297
        %v4336 = vpop.f32.mrf.mxu0
        %v4337 = vadd.f32 0.0, %v4336
        %v4338 = vpop.f32.mrf.mxu0
        %v4339 = vpop.f32.mrf.mxu0
        %v4340 = vadd.f32 0.0, %v4339
        %v4341 = vpop.f32.mrf.mxu0
        %4342 = vdwg.mxu0
        %v4344 = vsel %vm4013, %v1836, 0
        %v4347 = vsel %vm4013, %v2904, 0
        %4349 = vmatprep.subr.bf16.mxu0 0
        %4350 = vmatpush1.bf16.xpose.msra.mxu0 0
        %4351 = vmatprep.subr.bf16.mxu0 0
        %4352 = vmatpush1.bf16.xpose.msra.mxu0 0
        %4353 = vmatprep.subr.bf16.mxu0 0
        %4354 = vmatpush1.bf16.xpose.msra.mxu0 0
        %4355 = vmatprep.subr.bf16.mxu0 0
        %4356 = vmatpush1.bf16.xpose.msra.mxu0 0
        %4357 = vmatprep.subr.bf16.mxu0 0
        %4358 = vmatpush1.bf16.xpose.msra.mxu0 0
        %4359 = vmatprep.subr.bf16.mxu0 0
        %4360 = vmatpush1.bf16.xpose.msra.mxu0 0
        %4361 = vmatprep.subr.bf16.mxu0 0
        %4362 = vmatpush1.bf16.xpose.msra.mxu0 0
        %4363 = vmatprep.subr.bf16.mxu0 0
        %4364 = vmatpush1.bf16.xpose.msra.mxu0 %v4347
        %4365 = vmatprep.subr.bf16.mxu0 0
        %4366 = vmatpush2.bf16.xpose.msra.mxu0 0
        %4367 = vmatprep.subr.bf16.mxu0 0
        %4368 = vmatpush2.bf16.xpose.msra.mxu0 0
        %4369 = vmatprep.subr.bf16.mxu0 0
        %4370 = vmatpush2.bf16.xpose.msra.mxu0 0
        %4371 = vmatprep.subr.bf16.mxu0 0
        %4372 = vmatpush2.bf16.xpose.msra.mxu0 0
        %4373 = vmatprep.subr.bf16.mxu0 0
        %4374 = vmatpush2.bf16.xpose.msra.mxu0 0
        %4375 = vmatprep.subr.bf16.mxu0 0
        %4376 = vmatpush2.bf16.xpose.msra.mxu0 0
        %4377 = vmatprep.subr.bf16.mxu0 0
        %4378 = vmatpush2.bf16.xpose.msra.mxu0 0
        %4379 = vmatprep.subr.bf16.mxu0 0
        %4380 = vmatpush2.bf16.xpose.msra.mxu0 0
        %4381 = vmatprep.mubr.bf16.mxu0 0
        %4382 = vmatmul.mubr.bf16.gmra.mxu0 %v4344
        %v4383 = vpop.f32.mrf.mxu0
        %v4384 = vadd.f32 0.0, %v4383
        %v4385 = vpop.f32.mrf.mxu0
        %v4386 = vpop.f32.mrf.mxu0
        %v4387 = vadd.f32 0.0, %v4386
        %v4388 = vpop.f32.mrf.mxu0
        %4389 = vdwg.mxu0
        %v4391 = vsel %vm4013, %v1839, 0
        %v4394 = vsel %vm4013, %v2907, 0
        %4396 = vmatprep.subr.bf16.mxu0 0
        %4397 = vmatpush1.bf16.xpose.msra.mxu0 0
        %4398 = vmatprep.subr.bf16.mxu0 0
        %4399 = vmatpush1.bf16.xpose.msra.mxu0 0
        %4400 = vmatprep.subr.bf16.mxu0 0
        %4401 = vmatpush1.bf16.xpose.msra.mxu0 0
        %4402 = vmatprep.subr.bf16.mxu0 0
        %4403 = vmatpush1.bf16.xpose.msra.mxu0 0
        %4404 = vmatprep.subr.bf16.mxu0 0
        %4405 = vmatpush1.bf16.xpose.msra.mxu0 0
        %4406 = vmatprep.subr.bf16.mxu0 0
        %4407 = vmatpush1.bf16.xpose.msra.mxu0 0
        %4408 = vmatprep.subr.bf16.mxu0 0
        %4409 = vmatpush1.bf16.xpose.msra.mxu0 0
        %4410 = vmatprep.subr.bf16.mxu0 0
        %4411 = vmatpush1.bf16.xpose.msra.mxu0 %v4394
        %4412 = vmatprep.subr.bf16.mxu0 0
        %4413 = vmatpush2.bf16.xpose.msra.mxu0 0
        %4414 = vmatprep.subr.bf16.mxu0 0
        %4415 = vmatpush2.bf16.xpose.msra.mxu0 0
        %4416 = vmatprep.subr.bf16.mxu0 0
        %4417 = vmatpush2.bf16.xpose.msra.mxu0 0
        %4418 = vmatprep.subr.bf16.mxu0 0
        %4419 = vmatpush2.bf16.xpose.msra.mxu0 0
        %4420 = vmatprep.subr.bf16.mxu0 0
        %4421 = vmatpush2.bf16.xpose.msra.mxu0 0
        %4422 = vmatprep.subr.bf16.mxu0 0
        %4423 = vmatpush2.bf16.xpose.msra.mxu0 0
        %4424 = vmatprep.subr.bf16.mxu0 0
        %4425 = vmatpush2.bf16.xpose.msra.mxu0 0
        %4426 = vmatprep.subr.bf16.mxu0 0
        %4427 = vmatpush2.bf16.xpose.msra.mxu0 0
        %4428 = vmatprep.mubr.bf16.mxu0 0
        %4429 = vmatmul.mubr.bf16.gmra.mxu0 %v4391
        %v4430 = vpop.f32.mrf.mxu0
        %v4431 = vadd.f32 0.0, %v4430
        %v4432 = vpop.f32.mrf.mxu0
        %v4433 = vpop.f32.mrf.mxu0
        %v4434 = vadd.f32 0.0, %v4433
        %v4435 = vpop.f32.mrf.mxu0
        %4436 = vdwg.mxu0
        %v4438 = vsel %vm4013, %v1842, 0
        %v4441 = vsel %vm4013, %v2910, 0
        %4443 = vmatprep.subr.bf16.mxu0 0
        %4444 = vmatpush1.bf16.xpose.msra.mxu0 0
        %4445 = vmatprep.subr.bf16.mxu0 0
        %4446 = vmatpush1.bf16.xpose.msra.mxu0 0
        %4447 = vmatprep.subr.bf16.mxu0 0
        %4448 = vmatpush1.bf16.xpose.msra.mxu0 0
        %4449 = vmatprep.subr.bf16.mxu0 0
        %4450 = vmatpush1.bf16.xpose.msra.mxu0 0
        %4451 = vmatprep.subr.bf16.mxu0 0
        %4452 = vmatpush1.bf16.xpose.msra.mxu0 0
        %4453 = vmatprep.subr.bf16.mxu0 0
        %4454 = vmatpush1.bf16.xpose.msra.mxu0 0
        %4455 = vmatprep.subr.bf16.mxu0 0
        %4456 = vmatpush1.bf16.xpose.msra.mxu0 0
        %4457 = vmatprep.subr.bf16.mxu0 0
        %4458 = vmatpush1.bf16.xpose.msra.mxu0 %v4441
        %4459 = vmatprep.subr.bf16.mxu0 0
        %4460 = vmatpush2.bf16.xpose.msra.mxu0 0
        %4461 = vmatprep.subr.bf16.mxu0 0
        %4462 = vmatpush2.bf16.xpose.msra.mxu0 0
        %4463 = vmatprep.subr.bf16.mxu0 0
        %4464 = vmatpush2.bf16.xpose.msra.mxu0 0
        %4465 = vmatprep.subr.bf16.mxu0 0
        %4466 = vmatpush2.bf16.xpose.msra.mxu0 0
        %4467 = vmatprep.subr.bf16.mxu0 0
        %4468 = vmatpush2.bf16.xpose.msra.mxu0 0
        %4469 = vmatprep.subr.bf16.mxu0 0
        %4470 = vmatpush2.bf16.xpose.msra.mxu0 0
        %4471 = vmatprep.subr.bf16.mxu0 0
        %4472 = vmatpush2.bf16.xpose.msra.mxu0 0
        %4473 = vmatprep.subr.bf16.mxu0 0
        %4474 = vmatpush2.bf16.xpose.msra.mxu0 0
        %4475 = vmatprep.mubr.bf16.mxu0 0
        %4476 = vmatmul.mubr.bf16.gmra.mxu0 %v4438
        %v4477 = vpop.f32.mrf.mxu0
        %v4478 = vadd.f32 0.0, %v4477
        %v4479 = vpop.f32.mrf.mxu0
        %v4480 = vpop.f32.mrf.mxu0
        %v4481 = vadd.f32 0.0, %v4480
        %v4482 = vpop.f32.mrf.mxu0
        %4483 = vdwg.mxu0
        %v4485 = vsel %vm4013, %v1845, 0
        %v4488 = vsel %vm4013, %v2913, 0
        %4490 = vmatprep.subr.bf16.mxu0 0
        %4491 = vmatpush1.bf16.xpose.msra.mxu0 0
        %4492 = vmatprep.subr.bf16.mxu0 0
        %4493 = vmatpush1.bf16.xpose.msra.mxu0 0
        %4494 = vmatprep.subr.bf16.mxu0 0
        %4495 = vmatpush1.bf16.xpose.msra.mxu0 0
        %4496 = vmatprep.subr.bf16.mxu0 0
        %4497 = vmatpush1.bf16.xpose.msra.mxu0 0
        %4498 = vmatprep.subr.bf16.mxu0 0
        %4499 = vmatpush1.bf16.xpose.msra.mxu0 0
        %4500 = vmatprep.subr.bf16.mxu0 0
        %4501 = vmatpush1.bf16.xpose.msra.mxu0 0
        %4502 = vmatprep.subr.bf16.mxu0 0
        %4503 = vmatpush1.bf16.xpose.msra.mxu0 0
        %4504 = vmatprep.subr.bf16.mxu0 0
        %4505 = vmatpush1.bf16.xpose.msra.mxu0 %v4488
        %4506 = vmatprep.subr.bf16.mxu0 0
        %4507 = vmatpush2.bf16.xpose.msra.mxu0 0
        %4508 = vmatprep.subr.bf16.mxu0 0
        %4509 = vmatpush2.bf16.xpose.msra.mxu0 0
        %4510 = vmatprep.subr.bf16.mxu0 0
        %4511 = vmatpush2.bf16.xpose.msra.mxu0 0
        %4512 = vmatprep.subr.bf16.mxu0 0
        %4513 = vmatpush2.bf16.xpose.msra.mxu0 0
        %4514 = vmatprep.subr.bf16.mxu0 0
        %4515 = vmatpush2.bf16.xpose.msra.mxu0 0
        %4516 = vmatprep.subr.bf16.mxu0 0
        %4517 = vmatpush2.bf16.xpose.msra.mxu0 0
        %4518 = vmatprep.subr.bf16.mxu0 0
        %4519 = vmatpush2.bf16.xpose.msra.mxu0 0
        %4520 = vmatprep.subr.bf16.mxu0 0
        %4521 = vmatpush2.bf16.xpose.msra.mxu0 0
        %4522 = vmatprep.mubr.bf16.mxu0 0
        %4523 = vmatmul.mubr.bf16.gmra.mxu0 %v4485
        %v4524 = vpop.f32.mrf.mxu0
        %v4525 = vadd.f32 0.0, %v4524
        %v4526 = vpop.f32.mrf.mxu0
        %v4527 = vpop.f32.mrf.mxu0
        %v4528 = vadd.f32 0.0, %v4527
        %v4529 = vpop.f32.mrf.mxu0
        %4530 = vdwg.mxu0
        %v4532 = vsel %vm4013, %v1848, 0
        %v4535 = vsel %vm4013, %v2916, 0
        %4537 = vmatprep.subr.bf16.mxu0 0
        %4538 = vmatpush1.bf16.xpose.msra.mxu0 0
        %4539 = vmatprep.subr.bf16.mxu0 0
        %4540 = vmatpush1.bf16.xpose.msra.mxu0 0
        %4541 = vmatprep.subr.bf16.mxu0 0
        %4542 = vmatpush1.bf16.xpose.msra.mxu0 0
        %4543 = vmatprep.subr.bf16.mxu0 0
        %4544 = vmatpush1.bf16.xpose.msra.mxu0 0
        %4545 = vmatprep.subr.bf16.mxu0 0
        %4546 = vmatpush1.bf16.xpose.msra.mxu0 0
        %4547 = vmatprep.subr.bf16.mxu0 0
        %4548 = vmatpush1.bf16.xpose.msra.mxu0 0
        %4549 = vmatprep.subr.bf16.mxu0 0
        %4550 = vmatpush1.bf16.xpose.msra.mxu0 0
        %4551 = vmatprep.subr.bf16.mxu0 0
        %4552 = vmatpush1.bf16.xpose.msra.mxu0 %v4535
        %4553 = vmatprep.subr.bf16.mxu0 0
        %4554 = vmatpush2.bf16.xpose.msra.mxu0 0
        %4555 = vmatprep.subr.bf16.mxu0 0
        %4556 = vmatpush2.bf16.xpose.msra.mxu0 0
        %4557 = vmatprep.subr.bf16.mxu0 0
        %4558 = vmatpush2.bf16.xpose.msra.mxu0 0
        %4559 = vmatprep.subr.bf16.mxu0 0
        %4560 = vmatpush2.bf16.xpose.msra.mxu0 0
        %4561 = vmatprep.subr.bf16.mxu0 0
        %4562 = vmatpush2.bf16.xpose.msra.mxu0 0
        %4563 = vmatprep.subr.bf16.mxu0 0
        %4564 = vmatpush2.bf16.xpose.msra.mxu0 0
        %4565 = vmatprep.subr.bf16.mxu0 0
        %4566 = vmatpush2.bf16.xpose.msra.mxu0 0
        %4567 = vmatprep.subr.bf16.mxu0 0
        %4568 = vmatpush2.bf16.xpose.msra.mxu0 0
        %4569 = vmatprep.mubr.bf16.mxu0 0
        %4570 = vmatmul.mubr.bf16.gmra.mxu0 %v4532
        %v4571 = vpop.f32.mrf.mxu0
        %v4572 = vadd.f32 0.0, %v4571
        %v4573 = vpop.f32.mrf.mxu0
        %v4574 = vpop.f32.mrf.mxu0
        %v4575 = vadd.f32 0.0, %v4574
        %v4576 = vpop.f32.mrf.mxu0
        %4577 = vdwg.mxu0
        %v4579 = vsel %vm4013, %v1851, 0
        %v4582 = vsel %vm4013, %v2919, 0
        %4584 = vmatprep.subr.bf16.mxu0 0
        %4585 = vmatpush1.bf16.xpose.msra.mxu0 0
        %4586 = vmatprep.subr.bf16.mxu0 0
        %4587 = vmatpush1.bf16.xpose.msra.mxu0 0
        %4588 = vmatprep.subr.bf16.mxu0 0
        %4589 = vmatpush1.bf16.xpose.msra.mxu0 0
        %4590 = vmatprep.subr.bf16.mxu0 0
        %4591 = vmatpush1.bf16.xpose.msra.mxu0 0
        %4592 = vmatprep.subr.bf16.mxu0 0
        %4593 = vmatpush1.bf16.xpose.msra.mxu0 0
        %4594 = vmatprep.subr.bf16.mxu0 0
        %4595 = vmatpush1.bf16.xpose.msra.mxu0 0
        %4596 = vmatprep.subr.bf16.mxu0 0
        %4597 = vmatpush1.bf16.xpose.msra.mxu0 0
        %4598 = vmatprep.subr.bf16.mxu0 0
        %4599 = vmatpush1.bf16.xpose.msra.mxu0 %v4582
        %4600 = vmatprep.subr.bf16.mxu0 0
        %4601 = vmatpush2.bf16.xpose.msra.mxu0 0
        %4602 = vmatprep.subr.bf16.mxu0 0
        %4603 = vmatpush2.bf16.xpose.msra.mxu0 0
        %4604 = vmatprep.subr.bf16.mxu0 0
        %4605 = vmatpush2.bf16.xpose.msra.mxu0 0
        %4606 = vmatprep.subr.bf16.mxu0 0
        %4607 = vmatpush2.bf16.xpose.msra.mxu0 0
        %4608 = vmatprep.subr.bf16.mxu0 0
        %4609 = vmatpush2.bf16.xpose.msra.mxu0 0
        %4610 = vmatprep.subr.bf16.mxu0 0
        %4611 = vmatpush2.bf16.xpose.msra.mxu0 0
        %4612 = vmatprep.subr.bf16.mxu0 0
        %4613 = vmatpush2.bf16.xpose.msra.mxu0 0
        %4614 = vmatprep.subr.bf16.mxu0 0
        %4615 = vmatpush2.bf16.xpose.msra.mxu0 0
        %4616 = vmatprep.mubr.bf16.mxu0 0
        %4617 = vmatmul.mubr.bf16.gmra.mxu0 %v4579
        %v4618 = vpop.f32.mrf.mxu0
        %v4619 = vadd.f32 0.0, %v4618
        %v4620 = vpop.f32.mrf.mxu0
        %v4621 = vpop.f32.mrf.mxu0
        %v4622 = vadd.f32 0.0, %v4621
        %v4623 = vpop.f32.mrf.mxu0
        %4624 = vdwg.mxu0
        %v4626 = vsel %vm4013, %v1854, 0
        %v4629 = vsel %vm4013, %v2922, 0
        %4631 = vmatprep.subr.bf16.mxu0 0
        %4632 = vmatpush1.bf16.xpose.msra.mxu0 0
        %4633 = vmatprep.subr.bf16.mxu0 0
        %4634 = vmatpush1.bf16.xpose.msra.mxu0 0
        %4635 = vmatprep.subr.bf16.mxu0 0
        %4636 = vmatpush1.bf16.xpose.msra.mxu0 0
        %4637 = vmatprep.subr.bf16.mxu0 0
        %4638 = vmatpush1.bf16.xpose.msra.mxu0 0
        %4639 = vmatprep.subr.bf16.mxu0 0
        %4640 = vmatpush1.bf16.xpose.msra.mxu0 0
        %4641 = vmatprep.subr.bf16.mxu0 0
        %4642 = vmatpush1.bf16.xpose.msra.mxu0 0
        %4643 = vmatprep.subr.bf16.mxu0 0
        %4644 = vmatpush1.bf16.xpose.msra.mxu0 0
        %4645 = vmatprep.subr.bf16.mxu0 0
        %4646 = vmatpush1.bf16.xpose.msra.mxu0 %v4629
        %4647 = vmatprep.subr.bf16.mxu0 0
        %4648 = vmatpush2.bf16.xpose.msra.mxu0 0
        %4649 = vmatprep.subr.bf16.mxu0 0
        %4650 = vmatpush2.bf16.xpose.msra.mxu0 0
        %4651 = vmatprep.subr.bf16.mxu0 0
        %4652 = vmatpush2.bf16.xpose.msra.mxu0 0
        %4653 = vmatprep.subr.bf16.mxu0 0
        %4654 = vmatpush2.bf16.xpose.msra.mxu0 0
        %4655 = vmatprep.subr.bf16.mxu0 0
        %4656 = vmatpush2.bf16.xpose.msra.mxu0 0
        %4657 = vmatprep.subr.bf16.mxu0 0
        %4658 = vmatpush2.bf16.xpose.msra.mxu0 0
        %4659 = vmatprep.subr.bf16.mxu0 0
        %4660 = vmatpush2.bf16.xpose.msra.mxu0 0
        %4661 = vmatprep.subr.bf16.mxu0 0
        %4662 = vmatpush2.bf16.xpose.msra.mxu0 0
        %4663 = vmatprep.mubr.bf16.mxu0 0
        %4664 = vmatmul.mubr.bf16.gmra.mxu0 %v4626
        %v4665 = vpop.f32.mrf.mxu0
        %v4666 = vadd.f32 0.0, %v4665
        %v4667 = vpop.f32.mrf.mxu0
        %v4668 = vpop.f32.mrf.mxu0
        %v4669 = vadd.f32 0.0, %v4668
        %v4670 = vpop.f32.mrf.mxu0
        %4671 = vdwg.mxu0
        %v4673 = vsel %vm4013, %v1857, 0
        %v4676 = vsel %vm4013, %v2925, 0
        %4678 = vmatprep.subr.bf16.mxu0 0
        %4679 = vmatpush1.bf16.xpose.msra.mxu0 0
        %4680 = vmatprep.subr.bf16.mxu0 0
        %4681 = vmatpush1.bf16.xpose.msra.mxu0 0
        %4682 = vmatprep.subr.bf16.mxu0 0
        %4683 = vmatpush1.bf16.xpose.msra.mxu0 0
        %4684 = vmatprep.subr.bf16.mxu0 0
        %4685 = vmatpush1.bf16.xpose.msra.mxu0 0
        %4686 = vmatprep.subr.bf16.mxu0 0
        %4687 = vmatpush1.bf16.xpose.msra.mxu0 0
        %4688 = vmatprep.subr.bf16.mxu0 0
        %4689 = vmatpush1.bf16.xpose.msra.mxu0 0
        %4690 = vmatprep.subr.bf16.mxu0 0
        %4691 = vmatpush1.bf16.xpose.msra.mxu0 0
        %4692 = vmatprep.subr.bf16.mxu0 0
        %4693 = vmatpush1.bf16.xpose.msra.mxu0 %v4676
        %4694 = vmatprep.subr.bf16.mxu0 0
        %4695 = vmatpush2.bf16.xpose.msra.mxu0 0
        %4696 = vmatprep.subr.bf16.mxu0 0
        %4697 = vmatpush2.bf16.xpose.msra.mxu0 0
        %4698 = vmatprep.subr.bf16.mxu0 0
        %4699 = vmatpush2.bf16.xpose.msra.mxu0 0
        %4700 = vmatprep.subr.bf16.mxu0 0
        %4701 = vmatpush2.bf16.xpose.msra.mxu0 0
        %4702 = vmatprep.subr.bf16.mxu0 0
        %4703 = vmatpush2.bf16.xpose.msra.mxu0 0
        %4704 = vmatprep.subr.bf16.mxu0 0
        %4705 = vmatpush2.bf16.xpose.msra.mxu0 0
        %4706 = vmatprep.subr.bf16.mxu0 0
        %4707 = vmatpush2.bf16.xpose.msra.mxu0 0
        %4708 = vmatprep.subr.bf16.mxu0 0
        %4709 = vmatpush2.bf16.xpose.msra.mxu0 0
        %4710 = vmatprep.mubr.bf16.mxu0 0
        %4711 = vmatmul.mubr.bf16.gmra.mxu0 %v4673
        %v4712 = vpop.f32.mrf.mxu0
        %v4713 = vadd.f32 0.0, %v4712
        %v4714 = vpop.f32.mrf.mxu0
        %v4715 = vpop.f32.mrf.mxu0
        %v4716 = vadd.f32 0.0, %v4715
        %v4717 = vpop.f32.mrf.mxu0
        %4718 = vdwg.mxu0
        %v4720 = vsel %vm4013, %v1860, 0
        %v4723 = vsel %vm4013, %v2928, 0
        %4725 = vmatprep.subr.bf16.mxu0 0
        %4726 = vmatpush1.bf16.xpose.msra.mxu0 0
        %4727 = vmatprep.subr.bf16.mxu0 0
        %4728 = vmatpush1.bf16.xpose.msra.mxu0 0
        %4729 = vmatprep.subr.bf16.mxu0 0
        %4730 = vmatpush1.bf16.xpose.msra.mxu0 0
        %4731 = vmatprep.subr.bf16.mxu0 0
        %4732 = vmatpush1.bf16.xpose.msra.mxu0 0
        %4733 = vmatprep.subr.bf16.mxu0 0
        %4734 = vmatpush1.bf16.xpose.msra.mxu0 0
        %4735 = vmatprep.subr.bf16.mxu0 0
        %4736 = vmatpush1.bf16.xpose.msra.mxu0 0
        %4737 = vmatprep.subr.bf16.mxu0 0
        %4738 = vmatpush1.bf16.xpose.msra.mxu0 0
        %4739 = vmatprep.subr.bf16.mxu0 0
        %4740 = vmatpush1.bf16.xpose.msra.mxu0 %v4723
        %4741 = vmatprep.subr.bf16.mxu0 0
        %4742 = vmatpush2.bf16.xpose.msra.mxu0 0
        %4743 = vmatprep.subr.bf16.mxu0 0
        %4744 = vmatpush2.bf16.xpose.msra.mxu0 0
        %4745 = vmatprep.subr.bf16.mxu0 0
        %4746 = vmatpush2.bf16.xpose.msra.mxu0 0
        %4747 = vmatprep.subr.bf16.mxu0 0
        %4748 = vmatpush2.bf16.xpose.msra.mxu0 0
        %4749 = vmatprep.subr.bf16.mxu0 0
        %4750 = vmatpush2.bf16.xpose.msra.mxu0 0
        %4751 = vmatprep.subr.bf16.mxu0 0
        %4752 = vmatpush2.bf16.xpose.msra.mxu0 0
        %4753 = vmatprep.subr.bf16.mxu0 0
        %4754 = vmatpush2.bf16.xpose.msra.mxu0 0
        %4755 = vmatprep.subr.bf16.mxu0 0
        %4756 = vmatpush2.bf16.xpose.msra.mxu0 0
        %4757 = vmatprep.mubr.bf16.mxu0 0
        %4758 = vmatmul.mubr.bf16.gmra.mxu0 %v4720
        %v4759 = vpop.f32.mrf.mxu0
        %v4760 = vadd.f32 0.0, %v4759
        %v4761 = vpop.f32.mrf.mxu0
        %v4762 = vpop.f32.mrf.mxu0
        %v4763 = vadd.f32 0.0, %v4762
        %v4764 = vpop.f32.mrf.mxu0
        %4765 = vdwg.mxu0
        %vm4766 = vcmask 130048
        %v4767 = vsel %vm4766, %v4055, -inf
        %4768 = vmax.xlane.f32.xlu0 %v4767
        %v4769 = vpop.xlane.xlu0 %4768
        %v4770 = vsel %vm4766, %v4058, -inf
        %4771 = vmax.xlane.f32.xlu0 %v4770
        %v4772 = vpop.xlane.xlu0 %4771
        %v4773 = vsel %vm4766, %v4102, -inf
        %4774 = vmax.xlane.f32.xlu0 %v4773
        %v4775 = vpop.xlane.xlu0 %4774
        %v4776 = vsel %vm4766, %v4105, -inf
        %4777 = vmax.xlane.f32.xlu0 %v4776
        %v4778 = vpop.xlane.xlu0 %4777
        %v4779 = vsel %vm4766, %v4149, -inf
        %4780 = vmax.xlane.f32.xlu0 %v4779
        %v4781 = vpop.xlane.xlu0 %4780
        %v4782 = vsel %vm4766, %v4152, -inf
        %4783 = vmax.xlane.f32.xlu0 %v4782
        %v4784 = vpop.xlane.xlu0 %4783
        %v4785 = vsel %vm4766, %v4196, -inf
        %4786 = vmax.xlane.f32.xlu0 %v4785
        %v4787 = vpop.xlane.xlu0 %4786
        %v4788 = vsel %vm4766, %v4199, -inf
        %4789 = vmax.xlane.f32.xlu0 %v4788
        %v4790 = vpop.xlane.xlu0 %4789
        %v4791 = vsel %vm4766, %v4243, -inf
        %4792 = vmax.xlane.f32.xlu0 %v4791
        %v4793 = vpop.xlane.xlu0 %4792
        %v4794 = vsel %vm4766, %v4246, -inf
        %4795 = vmax.xlane.f32.xlu0 %v4794
        %v4796 = vpop.xlane.xlu0 %4795
        %v4797 = vsel %vm4766, %v4290, -inf
        %4798 = vmax.xlane.f32.xlu0 %v4797
        %v4799 = vpop.xlane.xlu0 %4798
        %v4800 = vsel %vm4766, %v4293, -inf
        %4801 = vmax.xlane.f32.xlu0 %v4800
        %v4802 = vpop.xlane.xlu0 %4801
        %v4803 = vsel %vm4766, %v4337, -inf
        %4804 = vmax.xlane.f32.xlu0 %v4803
        %v4805 = vpop.xlane.xlu0 %4804
        %v4806 = vsel %vm4766, %v4340, -inf
        %4807 = vmax.xlane.f32.xlu0 %v4806
        %v4808 = vpop.xlane.xlu0 %4807
        %v4809 = vsel %vm4766, %v4384, -inf
        %4810 = vmax.xlane.f32.xlu0 %v4809
        %v4811 = vpop.xlane.xlu0 %4810
        %v4812 = vsel %vm4766, %v4387, -inf
        %4813 = vmax.xlane.f32.xlu0 %v4812
        %v4814 = vpop.xlane.xlu0 %4813
        %v4815 = vsel %vm4766, %v4431, -inf
        %4816 = vmax.xlane.f32.xlu0 %v4815
        %v4817 = vpop.xlane.xlu0 %4816
        %v4818 = vsel %vm4766, %v4434, -inf
        %4819 = vmax.xlane.f32.xlu0 %v4818
        %v4820 = vpop.xlane.xlu0 %4819
        %v4821 = vsel %vm4766, %v4478, -inf
        %4822 = vmax.xlane.f32.xlu0 %v4821
        %v4823 = vpop.xlane.xlu0 %4822
        %v4824 = vsel %vm4766, %v4481, -inf
        %4825 = vmax.xlane.f32.xlu0 %v4824
        %v4826 = vpop.xlane.xlu0 %4825
        %v4827 = vsel %vm4766, %v4525, -inf
        %4828 = vmax.xlane.f32.xlu0 %v4827
        %v4829 = vpop.xlane.xlu0 %4828
        %v4830 = vsel %vm4766, %v4528, -inf
        %4831 = vmax.xlane.f32.xlu0 %v4830
        %v4832 = vpop.xlane.xlu0 %4831
        %v4833 = vsel %vm4766, %v4572, -inf
        %4834 = vmax.xlane.f32.xlu0 %v4833
        %v4835 = vpop.xlane.xlu0 %4834
        %v4836 = vsel %vm4766, %v4575, -inf
        %4837 = vmax.xlane.f32.xlu0 %v4836
        %v4838 = vpop.xlane.xlu0 %4837
        %v4839 = vsel %vm4766, %v4619, -inf
        %4840 = vmax.xlane.f32.xlu0 %v4839
        %v4841 = vpop.xlane.xlu0 %4840
        %v4842 = vsel %vm4766, %v4622, -inf
        %4843 = vmax.xlane.f32.xlu0 %v4842
        %v4844 = vpop.xlane.xlu0 %4843
        %v4845 = vsel %vm4766, %v4666, -inf
        %4846 = vmax.xlane.f32.xlu0 %v4845
        %v4847 = vpop.xlane.xlu0 %4846
        %v4848 = vsel %vm4766, %v4669, -inf
        %4849 = vmax.xlane.f32.xlu0 %v4848
        %v4850 = vpop.xlane.xlu0 %4849
        %v4851 = vsel %vm4766, %v4713, -inf
        %4852 = vmax.xlane.f32.xlu0 %v4851
        %v4853 = vpop.xlane.xlu0 %4852
        %v4854 = vsel %vm4766, %v4716, -inf
        %4855 = vmax.xlane.f32.xlu0 %v4854
        %v4856 = vpop.xlane.xlu0 %4855
        %v4857 = vsel %vm4766, %v4760, -inf
        %4858 = vmax.xlane.f32.xlu0 %v4857
        %v4859 = vpop.xlane.xlu0 %4858
        %v4860 = vsel %vm4766, %v4763, -inf
        %4861 = vmax.xlane.f32.xlu0 %v4860
        %v4862 = vpop.xlane.xlu0 %4861
        %v4863 = vsub.f32 %v4055, %v4769
        %v4864 = vsub.f32 %v4058, %v4772
        %v4865 = vsub.f32 %v4102, %v4775
        %v4866 = vsub.f32 %v4105, %v4778
        %v4867 = vsub.f32 %v4149, %v4781
        %v4868 = vsub.f32 %v4152, %v4784
        %v4869 = vsub.f32 %v4196, %v4787
        %v4870 = vsub.f32 %v4199, %v4790
        %v4871 = vsub.f32 %v4243, %v4793
        %v4872 = vsub.f32 %v4246, %v4796
        %v4873 = vsub.f32 %v4290, %v4799
        %v4874 = vsub.f32 %v4293, %v4802
        %v4875 = vsub.f32 %v4337, %v4805
        %v4876 = vsub.f32 %v4340, %v4808
        %v4877 = vsub.f32 %v4384, %v4811
        %v4878 = vsub.f32 %v4387, %v4814
        %v4879 = vsub.f32 %v4431, %v4817
        %v4880 = vsub.f32 %v4434, %v4820
        %v4881 = vsub.f32 %v4478, %v4823
        %v4882 = vsub.f32 %v4481, %v4826
        %v4883 = vsub.f32 %v4525, %v4829
        %v4884 = vsub.f32 %v4528, %v4832
        %v4885 = vsub.f32 %v4572, %v4835
        %v4886 = vsub.f32 %v4575, %v4838
        %v4887 = vsub.f32 %v4619, %v4841
        %v4888 = vsub.f32 %v4622, %v4844
        %v4889 = vsub.f32 %v4666, %v4847
        %v4890 = vsub.f32 %v4669, %v4850
        %v4891 = vsub.f32 %v4713, %v4853
        %v4892 = vsub.f32 %v4716, %v4856
        %v4893 = vsub.f32 %v4760, %v4859
        %v4894 = vsub.f32 %v4763, %v4862
        %v4895 = vmul.f32 %v4863, 1.442695
        %v4896 = vpow.pop %v4895
        %v4897 = vmul.f32 %v4864, 1.442695
        %v4898 = vpow.pop %v4897
        %v4899 = vmul.f32 %v4865, 1.442695
        %v4900 = vpow.pop %v4899
        %v4901 = vmul.f32 %v4866, 1.442695
        %v4902 = vpow.pop %v4901
        %v4903 = vmul.f32 %v4867, 1.442695
        %v4904 = vpow.pop %v4903
        %v4905 = vmul.f32 %v4868, 1.442695
        %v4906 = vpow.pop %v4905
        %v4907 = vmul.f32 %v4869, 1.442695
        %v4908 = vpow.pop %v4907
        %v4909 = vmul.f32 %v4870, 1.442695
        %v4910 = vpow.pop %v4909
        %v4911 = vmul.f32 %v4871, 1.442695
        %v4912 = vpow.pop %v4911
        %v4913 = vmul.f32 %v4872, 1.442695
        %v4914 = vpow.pop %v4913
        %v4915 = vmul.f32 %v4873, 1.442695
        %v4916 = vpow.pop %v4915
        %v4917 = vmul.f32 %v4874, 1.442695
        %v4918 = vpow.pop %v4917
        %v4919 = vmul.f32 %v4875, 1.442695
        %v4920 = vpow.pop %v4919
        %v4921 = vmul.f32 %v4876, 1.442695
        %v4922 = vpow.pop %v4921
        %v4923 = vmul.f32 %v4877, 1.442695
        %v4924 = vpow.pop %v4923
        %v4925 = vmul.f32 %v4878, 1.442695
        %v4926 = vpow.pop %v4925
        %v4927 = vmul.f32 %v4879, 1.442695
        %v4928 = vpow.pop %v4927
        %v4929 = vmul.f32 %v4880, 1.442695
        %v4930 = vpow.pop %v4929
        %v4931 = vmul.f32 %v4881, 1.442695
        %v4932 = vpow.pop %v4931
        %v4933 = vmul.f32 %v4882, 1.442695
        %v4934 = vpow.pop %v4933
        %v4935 = vmul.f32 %v4883, 1.442695
        %v4936 = vpow.pop %v4935
        %v4937 = vmul.f32 %v4884, 1.442695
        %v4938 = vpow.pop %v4937
        %v4939 = vmul.f32 %v4885, 1.442695
        %v4940 = vpow.pop %v4939
        %v4941 = vmul.f32 %v4886, 1.442695
        %v4942 = vpow.pop %v4941
        %v4943 = vmul.f32 %v4887, 1.442695
        %v4944 = vpow.pop %v4943
        %v4945 = vmul.f32 %v4888, 1.442695
        %v4946 = vpow.pop %v4945
        %v4947 = vmul.f32 %v4889, 1.442695
        %v4948 = vpow.pop %v4947
        %v4949 = vmul.f32 %v4890, 1.442695
        %v4950 = vpow.pop %v4949
        %v4951 = vmul.f32 %v4891, 1.442695
        %v4952 = vpow.pop %v4951
        %v4953 = vmul.f32 %v4892, 1.442695
        %v4954 = vpow.pop %v4953
        %v4955 = vmul.f32 %v4893, 1.442695
        %v4956 = vpow.pop %v4955
        %v4957 = vmul.f32 %v4894, 1.442695
        %v4958 = vpow.pop %v4957
        %v4959 = vsel %vm4766, %v4896, 0.0
        %4960 = vadd.xlane.f32.xlu0 %v4959
        %v4961 = vpop.xlane.xlu0 %4960
        %v4962 = vsel %vm4766, %v4898, 0.0
        %4963 = vadd.xlane.f32.xlu0 %v4962
        %v4964 = vpop.xlane.xlu0 %4963
        %v4965 = vsel %vm4766, %v4900, 0.0
        %4966 = vadd.xlane.f32.xlu0 %v4965
        %v4967 = vpop.xlane.xlu0 %4966
        %v4968 = vsel %vm4766, %v4902, 0.0
        %4969 = vadd.xlane.f32.xlu0 %v4968
        %v4970 = vpop.xlane.xlu0 %4969
        %v4971 = vsel %vm4766, %v4904, 0.0
        %4972 = vadd.xlane.f32.xlu0 %v4971
        %v4973 = vpop.xlane.xlu0 %4972
        %v4974 = vsel %vm4766, %v4906, 0.0
        %4975 = vadd.xlane.f32.xlu0 %v4974
        %v4976 = vpop.xlane.xlu0 %4975
        %v4977 = vsel %vm4766, %v4908, 0.0
        %4978 = vadd.xlane.f32.xlu0 %v4977
        %v4979 = vpop.xlane.xlu0 %4978
        %v4980 = vsel %vm4766, %v4910, 0.0
        %4981 = vadd.xlane.f32.xlu0 %v4980
        %v4982 = vpop.xlane.xlu0 %4981
        %v4983 = vsel %vm4766, %v4912, 0.0
        %4984 = vadd.xlane.f32.xlu0 %v4983
        %v4985 = vpop.xlane.xlu0 %4984
        %v4986 = vsel %vm4766, %v4914, 0.0
        %4987 = vadd.xlane.f32.xlu0 %v4986
        %v4988 = vpop.xlane.xlu0 %4987
        %v4989 = vsel %vm4766, %v4916, 0.0
        %4990 = vadd.xlane.f32.xlu0 %v4989
        %v4991 = vpop.xlane.xlu0 %4990
        %v4992 = vsel %vm4766, %v4918, 0.0
        %4993 = vadd.xlane.f32.xlu0 %v4992
        %v4994 = vpop.xlane.xlu0 %4993
        %v4995 = vsel %vm4766, %v4920, 0.0
        %4996 = vadd.xlane.f32.xlu0 %v4995
        %v4997 = vpop.xlane.xlu0 %4996
        %v4998 = vsel %vm4766, %v4922, 0.0
        %4999 = vadd.xlane.f32.xlu0 %v4998
        %v5000 = vpop.xlane.xlu0 %4999
        %v5001 = vsel %vm4766, %v4924, 0.0
        %5002 = vadd.xlane.f32.xlu0 %v5001
        %v5003 = vpop.xlane.xlu0 %5002
        %v5004 = vsel %vm4766, %v4926, 0.0
        %5005 = vadd.xlane.f32.xlu0 %v5004
        %v5006 = vpop.xlane.xlu0 %5005
        %v5007 = vsel %vm4766, %v4928, 0.0
        %5008 = vadd.xlane.f32.xlu0 %v5007
        %v5009 = vpop.xlane.xlu0 %5008
        %v5010 = vsel %vm4766, %v4930, 0.0
        %5011 = vadd.xlane.f32.xlu0 %v5010
        %v5012 = vpop.xlane.xlu0 %5011
        %v5013 = vsel %vm4766, %v4932, 0.0
        %5014 = vadd.xlane.f32.xlu0 %v5013
        %v5015 = vpop.xlane.xlu0 %5014
        %v5016 = vsel %vm4766, %v4934, 0.0
        %5017 = vadd.xlane.f32.xlu0 %v5016
        %v5018 = vpop.xlane.xlu0 %5017
        %v5019 = vsel %vm4766, %v4936, 0.0
        %5020 = vadd.xlane.f32.xlu0 %v5019
        %v5021 = vpop.xlane.xlu0 %5020
        %v5022 = vsel %vm4766, %v4938, 0.0
        %5023 = vadd.xlane.f32.xlu0 %v5022
        %v5024 = vpop.xlane.xlu0 %5023
        %v5025 = vsel %vm4766, %v4940, 0.0
        %5026 = vadd.xlane.f32.xlu0 %v5025
        %v5027 = vpop.xlane.xlu0 %5026
        %v5028 = vsel %vm4766, %v4942, 0.0
        %5029 = vadd.xlane.f32.xlu0 %v5028
        %v5030 = vpop.xlane.xlu0 %5029
        %v5031 = vsel %vm4766, %v4944, 0.0
        %5032 = vadd.xlane.f32.xlu0 %v5031
        %v5033 = vpop.xlane.xlu0 %5032
        %v5034 = vsel %vm4766, %v4946, 0.0
        %5035 = vadd.xlane.f32.xlu0 %v5034
        %v5036 = vpop.xlane.xlu0 %5035
        %v5037 = vsel %vm4766, %v4948, 0.0
        %5038 = vadd.xlane.f32.xlu0 %v5037
        %v5039 = vpop.xlane.xlu0 %5038
        %v5040 = vsel %vm4766, %v4950, 0.0
        %5041 = vadd.xlane.f32.xlu0 %v5040
        %v5042 = vpop.xlane.xlu0 %5041
        %v5043 = vsel %vm4766, %v4952, 0.0
        %5044 = vadd.xlane.f32.xlu0 %v5043
        %v5045 = vpop.xlane.xlu0 %5044
        %v5046 = vsel %vm4766, %v4954, 0.0
        %5047 = vadd.xlane.f32.xlu0 %v5046
        %v5048 = vpop.xlane.xlu0 %5047
        %v5049 = vsel %vm4766, %v4956, 0.0
        %5050 = vadd.xlane.f32.xlu0 %v5049
        %v5051 = vpop.xlane.xlu0 %5050
        %v5052 = vsel %vm4766, %v4958, 0.0
        %5053 = vadd.xlane.f32.xlu0 %v5052
        %v5054 = vpop.xlane.xlu0 %5053
        %v5055 = vrcp.pop %v4961
        %v5056 = vrcp.pop %v4964
        %v5057 = vrcp.pop %v4967
        %v5058 = vrcp.pop %v4970
        %v5059 = vrcp.pop %v4973
        %v5060 = vrcp.pop %v4976
        %v5061 = vrcp.pop %v4979
        %v5062 = vrcp.pop %v4982
        %v5063 = vrcp.pop %v4985
        %v5064 = vrcp.pop %v4988
        %v5065 = vrcp.pop %v4991
        %v5066 = vrcp.pop %v4994
        %v5067 = vrcp.pop %v4997
        %v5068 = vrcp.pop %v5000
        %v5069 = vrcp.pop %v5003
        %v5070 = vrcp.pop %v5006
        %v5071 = vrcp.pop %v5009
        %v5072 = vrcp.pop %v5012
        %v5073 = vrcp.pop %v5015
        %v5074 = vrcp.pop %v5018
        %v5075 = vrcp.pop %v5021
        %v5076 = vrcp.pop %v5024
        %v5077 = vrcp.pop %v5027
        %v5078 = vrcp.pop %v5030
        %v5079 = vrcp.pop %v5033
        %v5080 = vrcp.pop %v5036
        %v5081 = vrcp.pop %v5039
        %v5082 = vrcp.pop %v5042
        %v5083 = vrcp.pop %v5045
        %v5084 = vrcp.pop %v5048
        %v5085 = vrcp.pop %v5051
        %v5086 = vrcp.pop %v5054
        %v5087 = vmul.f32 %v4896, %v5055
        %v5088 = vmul.f32 %v4898, %v5056
        %v5089 = vmul.f32 %v4900, %v5057
        %v5090 = vmul.f32 %v4902, %v5058
        %v5091 = vmul.f32 %v4904, %v5059
        %v5092 = vmul.f32 %v4906, %v5060
        %v5093 = vmul.f32 %v4908, %v5061
        %v5094 = vmul.f32 %v4910, %v5062
        %v5095 = vmul.f32 %v4912, %v5063
        %v5096 = vmul.f32 %v4914, %v5064
        %v5097 = vmul.f32 %v4916, %v5065
        %v5098 = vmul.f32 %v4918, %v5066
        %v5099 = vmul.f32 %v4920, %v5067
        %v5100 = vmul.f32 %v4922, %v5068
        %v5101 = vmul.f32 %v4924, %v5069
        %v5102 = vmul.f32 %v4926, %v5070
        %v5103 = vmul.f32 %v4928, %v5071
        %v5104 = vmul.f32 %v4930, %v5072
        %v5105 = vmul.f32 %v4932, %v5073
        %v5106 = vmul.f32 %v4934, %v5074
        %v5107 = vmul.f32 %v4936, %v5075
        %v5108 = vmul.f32 %v4938, %v5076
        %v5109 = vmul.f32 %v4940, %v5077
        %v5110 = vmul.f32 %v4942, %v5078
        %v5111 = vmul.f32 %v4944, %v5079
        %v5112 = vmul.f32 %v4946, %v5080
        %v5113 = vmul.f32 %v4948, %v5081
        %v5114 = vmul.f32 %v4950, %v5082
        %v5115 = vmul.f32 %v4952, %v5083
        %v5116 = vmul.f32 %v4954, %v5084
        %v5117 = vmul.f32 %v4956, %v5085
        %v5118 = vmul.f32 %v4958, %v5086
        %v5119 = vpack.c.bf16 %v5088, %v5087
        %v5120 = vpack.c.bf16 %v5090, %v5089
        %v5121 = vpack.c.bf16 %v5092, %v5091
        %v5122 = vpack.c.bf16 %v5094, %v5093
        %v5123 = vpack.c.bf16 %v5096, %v5095
        %v5124 = vpack.c.bf16 %v5098, %v5097
        %v5125 = vpack.c.bf16 %v5100, %v5099
        %v5126 = vpack.c.bf16 %v5102, %v5101
        %v5127 = vpack.c.bf16 %v5104, %v5103
        %v5128 = vpack.c.bf16 %v5106, %v5105
        %v5129 = vpack.c.bf16 %v5108, %v5107
        %v5130 = vpack.c.bf16 %v5110, %v5109
        %v5131 = vpack.c.bf16 %v5112, %v5111
        %v5132 = vpack.c.bf16 %v5114, %v5113
        %v5133 = vpack.c.bf16 %v5116, %v5115
        %v5134 = vpack.c.bf16 %v5118, %v5117
        %v5136 = vsel %vm4766, %v5119, 0
        %5138 = vmatprep.subr.bf16.mxu0 0
        %5139 = vmatpush1.bf16.msra.mxu0 0
        %5140 = vmatprep.subr.bf16.mxu0 0
        %5141 = vmatpush1.bf16.msra.mxu0 0
        %5142 = vmatprep.subr.bf16.mxu0 0
        %5143 = vmatpush1.bf16.msra.mxu0 0
        %5144 = vmatprep.subr.bf16.mxu0 0
        %5145 = vmatpush1.bf16.msra.mxu0 0
        %5146 = vmatprep.subr.bf16.mxu0 0
        %5147 = vmatpush1.bf16.msra.mxu0 0
        %5148 = vmatprep.subr.bf16.mxu0 0
        %5149 = vmatpush1.bf16.msra.mxu0 0
        %5150 = vmatprep.subr.bf16.mxu0 0
        %5151 = vmatpush1.bf16.msra.mxu0 0
        %5152 = vmatprep.subr.bf16.mxu0 0
        %5153 = vmatpush1.bf16.msra.mxu0 %v3951
        %5154 = vmatprep.subr.bf16.mxu0 0
        %5155 = vmatpush2.bf16.msra.mxu0 0
        %5156 = vmatprep.subr.bf16.mxu0 0
        %5157 = vmatpush2.bf16.msra.mxu0 0
        %5158 = vmatprep.subr.bf16.mxu0 0
        %5159 = vmatpush2.bf16.msra.mxu0 0
        %5160 = vmatprep.subr.bf16.mxu0 0
        %5161 = vmatpush2.bf16.msra.mxu0 0
        %5162 = vmatprep.subr.bf16.mxu0 0
        %5163 = vmatpush2.bf16.msra.mxu0 0
        %5164 = vmatprep.subr.bf16.mxu0 0
        %5165 = vmatpush2.bf16.msra.mxu0 0
        %5166 = vmatprep.subr.bf16.mxu0 0
        %5167 = vmatpush2.bf16.msra.mxu0 0
        %5168 = vmatprep.subr.bf16.mxu0 0
        %5169 = vmatpush2.bf16.msra.mxu0 0
        %5170 = vmatprep.mubr.bf16.mxu0 0
        %5171 = vmatmul.mubr.bf16.gmra.mxu0 %v5136
        %v5172 = vpop.f32.mrf.mxu0
        %v5173 = vadd.f32 0.0, %v5172
        %v5174 = vpop.f32.mrf.mxu0
        %v5175 = vpop.f32.mrf.mxu0
        %v5176 = vadd.f32 0.0, %v5175
        %v5177 = vpop.f32.mrf.mxu0
        %5178 = vdwg.mxu0
        %v5180 = vsel %vm4766, %v5120, 0
        %5182 = vmatprep.subr.bf16.mxu0 0
        %5183 = vmatpush1.bf16.msra.mxu0 0
        %5184 = vmatprep.subr.bf16.mxu0 0
        %5185 = vmatpush1.bf16.msra.mxu0 0
        %5186 = vmatprep.subr.bf16.mxu0 0
        %5187 = vmatpush1.bf16.msra.mxu0 0
        %5188 = vmatprep.subr.bf16.mxu0 0
        %5189 = vmatpush1.bf16.msra.mxu0 0
        %5190 = vmatprep.subr.bf16.mxu0 0
        %5191 = vmatpush1.bf16.msra.mxu0 0
        %5192 = vmatprep.subr.bf16.mxu0 0
        %5193 = vmatpush1.bf16.msra.mxu0 0
        %5194 = vmatprep.subr.bf16.mxu0 0
        %5195 = vmatpush1.bf16.msra.mxu0 0
        %5196 = vmatprep.subr.bf16.mxu0 0
        %5197 = vmatpush1.bf16.msra.mxu0 %v3955
        %5198 = vmatprep.subr.bf16.mxu0 0
        %5199 = vmatpush2.bf16.msra.mxu0 0
        %5200 = vmatprep.subr.bf16.mxu0 0
        %5201 = vmatpush2.bf16.msra.mxu0 0
        %5202 = vmatprep.subr.bf16.mxu0 0
        %5203 = vmatpush2.bf16.msra.mxu0 0
        %5204 = vmatprep.subr.bf16.mxu0 0
        %5205 = vmatpush2.bf16.msra.mxu0 0
        %5206 = vmatprep.subr.bf16.mxu0 0
        %5207 = vmatpush2.bf16.msra.mxu0 0
        %5208 = vmatprep.subr.bf16.mxu0 0
        %5209 = vmatpush2.bf16.msra.mxu0 0
        %5210 = vmatprep.subr.bf16.mxu0 0
        %5211 = vmatpush2.bf16.msra.mxu0 0
        %5212 = vmatprep.subr.bf16.mxu0 0
        %5213 = vmatpush2.bf16.msra.mxu0 0
        %5214 = vmatprep.mubr.bf16.mxu0 0
        %5215 = vmatmul.mubr.bf16.gmra.mxu0 %v5180
        %v5216 = vpop.f32.mrf.mxu0
        %v5217 = vadd.f32 0.0, %v5216
        %v5218 = vpop.f32.mrf.mxu0
        %v5219 = vpop.f32.mrf.mxu0
        %v5220 = vadd.f32 0.0, %v5219
        %v5221 = vpop.f32.mrf.mxu0
        %5222 = vdwg.mxu0
        %v5224 = vsel %vm4766, %v5121, 0
        %5226 = vmatprep.subr.bf16.mxu0 0
        %5227 = vmatpush1.bf16.msra.mxu0 0
        %5228 = vmatprep.subr.bf16.mxu0 0
        %5229 = vmatpush1.bf16.msra.mxu0 0
        %5230 = vmatprep.subr.bf16.mxu0 0
        %5231 = vmatpush1.bf16.msra.mxu0 0
        %5232 = vmatprep.subr.bf16.mxu0 0
        %5233 = vmatpush1.bf16.msra.mxu0 0
        %5234 = vmatprep.subr.bf16.mxu0 0
        %5235 = vmatpush1.bf16.msra.mxu0 0
        %5236 = vmatprep.subr.bf16.mxu0 0
        %5237 = vmatpush1.bf16.msra.mxu0 0
        %5238 = vmatprep.subr.bf16.mxu0 0
        %5239 = vmatpush1.bf16.msra.mxu0 0
        %5240 = vmatprep.subr.bf16.mxu0 0
        %5241 = vmatpush1.bf16.msra.mxu0 %v3959
        %5242 = vmatprep.subr.bf16.mxu0 0
        %5243 = vmatpush2.bf16.msra.mxu0 0
        %5244 = vmatprep.subr.bf16.mxu0 0
        %5245 = vmatpush2.bf16.msra.mxu0 0
        %5246 = vmatprep.subr.bf16.mxu0 0
        %5247 = vmatpush2.bf16.msra.mxu0 0
        %5248 = vmatprep.subr.bf16.mxu0 0
        %5249 = vmatpush2.bf16.msra.mxu0 0
        %5250 = vmatprep.subr.bf16.mxu0 0
        %5251 = vmatpush2.bf16.msra.mxu0 0
        %5252 = vmatprep.subr.bf16.mxu0 0
        %5253 = vmatpush2.bf16.msra.mxu0 0
        %5254 = vmatprep.subr.bf16.mxu0 0
        %5255 = vmatpush2.bf16.msra.mxu0 0
        %5256 = vmatprep.subr.bf16.mxu0 0
        %5257 = vmatpush2.bf16.msra.mxu0 0
        %5258 = vmatprep.mubr.bf16.mxu0 0
        %5259 = vmatmul.mubr.bf16.gmra.mxu0 %v5224
        %v5260 = vpop.f32.mrf.mxu0
        %v5261 = vadd.f32 0.0, %v5260
        %v5262 = vpop.f32.mrf.mxu0
        %v5263 = vpop.f32.mrf.mxu0
        %v5264 = vadd.f32 0.0, %v5263
        %v5265 = vpop.f32.mrf.mxu0
        %5266 = vdwg.mxu0
        %v5268 = vsel %vm4766, %v5122, 0
        %5270 = vmatprep.subr.bf16.mxu0 0
        %5271 = vmatpush1.bf16.msra.mxu0 0
        %5272 = vmatprep.subr.bf16.mxu0 0
        %5273 = vmatpush1.bf16.msra.mxu0 0
        %5274 = vmatprep.subr.bf16.mxu0 0
        %5275 = vmatpush1.bf16.msra.mxu0 0
        %5276 = vmatprep.subr.bf16.mxu0 0
        %5277 = vmatpush1.bf16.msra.mxu0 0
        %5278 = vmatprep.subr.bf16.mxu0 0
        %5279 = vmatpush1.bf16.msra.mxu0 0
        %5280 = vmatprep.subr.bf16.mxu0 0
        %5281 = vmatpush1.bf16.msra.mxu0 0
        %5282 = vmatprep.subr.bf16.mxu0 0
        %5283 = vmatpush1.bf16.msra.mxu0 0
        %5284 = vmatprep.subr.bf16.mxu0 0
        %5285 = vmatpush1.bf16.msra.mxu0 %v3963
        %5286 = vmatprep.subr.bf16.mxu0 0
        %5287 = vmatpush2.bf16.msra.mxu0 0
        %5288 = vmatprep.subr.bf16.mxu0 0
        %5289 = vmatpush2.bf16.msra.mxu0 0
        %5290 = vmatprep.subr.bf16.mxu0 0
        %5291 = vmatpush2.bf16.msra.mxu0 0
        %5292 = vmatprep.subr.bf16.mxu0 0
        %5293 = vmatpush2.bf16.msra.mxu0 0
        %5294 = vmatprep.subr.bf16.mxu0 0
        %5295 = vmatpush2.bf16.msra.mxu0 0
        %5296 = vmatprep.subr.bf16.mxu0 0
        %5297 = vmatpush2.bf16.msra.mxu0 0
        %5298 = vmatprep.subr.bf16.mxu0 0
        %5299 = vmatpush2.bf16.msra.mxu0 0
        %5300 = vmatprep.subr.bf16.mxu0 0
        %5301 = vmatpush2.bf16.msra.mxu0 0
        %5302 = vmatprep.mubr.bf16.mxu0 0
        %5303 = vmatmul.mubr.bf16.gmra.mxu0 %v5268
        %v5304 = vpop.f32.mrf.mxu0
        %v5305 = vadd.f32 0.0, %v5304
        %v5306 = vpop.f32.mrf.mxu0
        %v5307 = vpop.f32.mrf.mxu0
        %v5308 = vadd.f32 0.0, %v5307
        %v5309 = vpop.f32.mrf.mxu0
        %5310 = vdwg.mxu0
        %v5312 = vsel %vm4766, %v5123, 0
        %5314 = vmatprep.subr.bf16.mxu0 0
        %5315 = vmatpush1.bf16.msra.mxu0 0
        %5316 = vmatprep.subr.bf16.mxu0 0
        %5317 = vmatpush1.bf16.msra.mxu0 0
        %5318 = vmatprep.subr.bf16.mxu0 0
        %5319 = vmatpush1.bf16.msra.mxu0 0
        %5320 = vmatprep.subr.bf16.mxu0 0
        %5321 = vmatpush1.bf16.msra.mxu0 0
        %5322 = vmatprep.subr.bf16.mxu0 0
        %5323 = vmatpush1.bf16.msra.mxu0 0
        %5324 = vmatprep.subr.bf16.mxu0 0
        %5325 = vmatpush1.bf16.msra.mxu0 0
        %5326 = vmatprep.subr.bf16.mxu0 0
        %5327 = vmatpush1.bf16.msra.mxu0 0
        %5328 = vmatprep.subr.bf16.mxu0 0
        %5329 = vmatpush1.bf16.msra.mxu0 %v3967
        %5330 = vmatprep.subr.bf16.mxu0 0
        %5331 = vmatpush2.bf16.msra.mxu0 0
        %5332 = vmatprep.subr.bf16.mxu0 0
        %5333 = vmatpush2.bf16.msra.mxu0 0
        %5334 = vmatprep.subr.bf16.mxu0 0
        %5335 = vmatpush2.bf16.msra.mxu0 0
        %5336 = vmatprep.subr.bf16.mxu0 0
        %5337 = vmatpush2.bf16.msra.mxu0 0
        %5338 = vmatprep.subr.bf16.mxu0 0
        %5339 = vmatpush2.bf16.msra.mxu0 0
        %5340 = vmatprep.subr.bf16.mxu0 0
        %5341 = vmatpush2.bf16.msra.mxu0 0
        %5342 = vmatprep.subr.bf16.mxu0 0
        %5343 = vmatpush2.bf16.msra.mxu0 0
        %5344 = vmatprep.subr.bf16.mxu0 0
        %5345 = vmatpush2.bf16.msra.mxu0 0
        %5346 = vmatprep.mubr.bf16.mxu0 0
        %5347 = vmatmul.mubr.bf16.gmra.mxu0 %v5312
        %v5348 = vpop.f32.mrf.mxu0
        %v5349 = vadd.f32 0.0, %v5348
        %v5350 = vpop.f32.mrf.mxu0
        %v5351 = vpop.f32.mrf.mxu0
        %v5352 = vadd.f32 0.0, %v5351
        %v5353 = vpop.f32.mrf.mxu0
        %5354 = vdwg.mxu0
        %v5356 = vsel %vm4766, %v5124, 0
        %5358 = vmatprep.subr.bf16.mxu0 0
        %5359 = vmatpush1.bf16.msra.mxu0 0
        %5360 = vmatprep.subr.bf16.mxu0 0
        %5361 = vmatpush1.bf16.msra.mxu0 0
        %5362 = vmatprep.subr.bf16.mxu0 0
        %5363 = vmatpush1.bf16.msra.mxu0 0
        %5364 = vmatprep.subr.bf16.mxu0 0
        %5365 = vmatpush1.bf16.msra.mxu0 0
        %5366 = vmatprep.subr.bf16.mxu0 0
        %5367 = vmatpush1.bf16.msra.mxu0 0
        %5368 = vmatprep.subr.bf16.mxu0 0
        %5369 = vmatpush1.bf16.msra.mxu0 0
        %5370 = vmatprep.subr.bf16.mxu0 0
        %5371 = vmatpush1.bf16.msra.mxu0 0
        %5372 = vmatprep.subr.bf16.mxu0 0
        %5373 = vmatpush1.bf16.msra.mxu0 %v3971
        %5374 = vmatprep.subr.bf16.mxu0 0
        %5375 = vmatpush2.bf16.msra.mxu0 0
        %5376 = vmatprep.subr.bf16.mxu0 0
        %5377 = vmatpush2.bf16.msra.mxu0 0
        %5378 = vmatprep.subr.bf16.mxu0 0
        %5379 = vmatpush2.bf16.msra.mxu0 0
        %5380 = vmatprep.subr.bf16.mxu0 0
        %5381 = vmatpush2.bf16.msra.mxu0 0
        %5382 = vmatprep.subr.bf16.mxu0 0
        %5383 = vmatpush2.bf16.msra.mxu0 0
        %5384 = vmatprep.subr.bf16.mxu0 0
        %5385 = vmatpush2.bf16.msra.mxu0 0
        %5386 = vmatprep.subr.bf16.mxu0 0
        %5387 = vmatpush2.bf16.msra.mxu0 0
        %5388 = vmatprep.subr.bf16.mxu0 0
        %5389 = vmatpush2.bf16.msra.mxu0 0
        %5390 = vmatprep.mubr.bf16.mxu0 0
        %5391 = vmatmul.mubr.bf16.gmra.mxu0 %v5356
        %v5392 = vpop.f32.mrf.mxu0
        %v5393 = vadd.f32 0.0, %v5392
        %v5394 = vpop.f32.mrf.mxu0
        %v5395 = vpop.f32.mrf.mxu0
        %v5396 = vadd.f32 0.0, %v5395
        %v5397 = vpop.f32.mrf.mxu0
        %5398 = vdwg.mxu0
        %v5400 = vsel %vm4766, %v5125, 0
        %5402 = vmatprep.subr.bf16.mxu0 0
        %5403 = vmatpush1.bf16.msra.mxu0 0
        %5404 = vmatprep.subr.bf16.mxu0 0
        %5405 = vmatpush1.bf16.msra.mxu0 0
        %5406 = vmatprep.subr.bf16.mxu0 0
        %5407 = vmatpush1.bf16.msra.mxu0 0
        %5408 = vmatprep.subr.bf16.mxu0 0
        %5409 = vmatpush1.bf16.msra.mxu0 0
        %5410 = vmatprep.subr.bf16.mxu0 0
        %5411 = vmatpush1.bf16.msra.mxu0 0
        %5412 = vmatprep.subr.bf16.mxu0 0
        %5413 = vmatpush1.bf16.msra.mxu0 0
        %5414 = vmatprep.subr.bf16.mxu0 0
        %5415 = vmatpush1.bf16.msra.mxu0 0
        %5416 = vmatprep.subr.bf16.mxu0 0
        %5417 = vmatpush1.bf16.msra.mxu0 %v3975
        %5418 = vmatprep.subr.bf16.mxu0 0
        %5419 = vmatpush2.bf16.msra.mxu0 0
        %5420 = vmatprep.subr.bf16.mxu0 0
        %5421 = vmatpush2.bf16.msra.mxu0 0
        %5422 = vmatprep.subr.bf16.mxu0 0
        %5423 = vmatpush2.bf16.msra.mxu0 0
        %5424 = vmatprep.subr.bf16.mxu0 0
        %5425 = vmatpush2.bf16.msra.mxu0 0
        %5426 = vmatprep.subr.bf16.mxu0 0
        %5427 = vmatpush2.bf16.msra.mxu0 0
        %5428 = vmatprep.subr.bf16.mxu0 0
        %5429 = vmatpush2.bf16.msra.mxu0 0
        %5430 = vmatprep.subr.bf16.mxu0 0
        %5431 = vmatpush2.bf16.msra.mxu0 0
        %5432 = vmatprep.subr.bf16.mxu0 0
        %5433 = vmatpush2.bf16.msra.mxu0 0
        %5434 = vmatprep.mubr.bf16.mxu0 0
        %5435 = vmatmul.mubr.bf16.gmra.mxu0 %v5400
        %v5436 = vpop.f32.mrf.mxu0
        %v5437 = vadd.f32 0.0, %v5436
        %v5438 = vpop.f32.mrf.mxu0
        %v5439 = vpop.f32.mrf.mxu0
        %v5440 = vadd.f32 0.0, %v5439
        %v5441 = vpop.f32.mrf.mxu0
        %5442 = vdwg.mxu0
        %v5444 = vsel %vm4766, %v5126, 0
        %5446 = vmatprep.subr.bf16.mxu0 0
        %5447 = vmatpush1.bf16.msra.mxu0 0
        %5448 = vmatprep.subr.bf16.mxu0 0
        %5449 = vmatpush1.bf16.msra.mxu0 0
        %5450 = vmatprep.subr.bf16.mxu0 0
        %5451 = vmatpush1.bf16.msra.mxu0 0
        %5452 = vmatprep.subr.bf16.mxu0 0
        %5453 = vmatpush1.bf16.msra.mxu0 0
        %5454 = vmatprep.subr.bf16.mxu0 0
        %5455 = vmatpush1.bf16.msra.mxu0 0
        %5456 = vmatprep.subr.bf16.mxu0 0
        %5457 = vmatpush1.bf16.msra.mxu0 0
        %5458 = vmatprep.subr.bf16.mxu0 0
        %5459 = vmatpush1.bf16.msra.mxu0 0
        %5460 = vmatprep.subr.bf16.mxu0 0
        %5461 = vmatpush1.bf16.msra.mxu0 %v3979
        %5462 = vmatprep.subr.bf16.mxu0 0
        %5463 = vmatpush2.bf16.msra.mxu0 0
        %5464 = vmatprep.subr.bf16.mxu0 0
        %5465 = vmatpush2.bf16.msra.mxu0 0
        %5466 = vmatprep.subr.bf16.mxu0 0
        %5467 = vmatpush2.bf16.msra.mxu0 0
        %5468 = vmatprep.subr.bf16.mxu0 0
        %5469 = vmatpush2.bf16.msra.mxu0 0
        %5470 = vmatprep.subr.bf16.mxu0 0
        %5471 = vmatpush2.bf16.msra.mxu0 0
        %5472 = vmatprep.subr.bf16.mxu0 0
        %5473 = vmatpush2.bf16.msra.mxu0 0
        %5474 = vmatprep.subr.bf16.mxu0 0
        %5475 = vmatpush2.bf16.msra.mxu0 0
        %5476 = vmatprep.subr.bf16.mxu0 0
        %5477 = vmatpush2.bf16.msra.mxu0 0
        %5478 = vmatprep.mubr.bf16.mxu0 0
        %5479 = vmatmul.mubr.bf16.gmra.mxu0 %v5444
        %v5480 = vpop.f32.mrf.mxu0
        %v5481 = vadd.f32 0.0, %v5480
        %v5482 = vpop.f32.mrf.mxu0
        %v5483 = vpop.f32.mrf.mxu0
        %v5484 = vadd.f32 0.0, %v5483
        %v5485 = vpop.f32.mrf.mxu0
        %5486 = vdwg.mxu0
        %v5488 = vsel %vm4766, %v5127, 0
        %5490 = vmatprep.subr.bf16.mxu0 0
        %5491 = vmatpush1.bf16.msra.mxu0 0
        %5492 = vmatprep.subr.bf16.mxu0 0
        %5493 = vmatpush1.bf16.msra.mxu0 0
        %5494 = vmatprep.subr.bf16.mxu0 0
        %5495 = vmatpush1.bf16.msra.mxu0 0
        %5496 = vmatprep.subr.bf16.mxu0 0
        %5497 = vmatpush1.bf16.msra.mxu0 0
        %5498 = vmatprep.subr.bf16.mxu0 0
        %5499 = vmatpush1.bf16.msra.mxu0 0
        %5500 = vmatprep.subr.bf16.mxu0 0
        %5501 = vmatpush1.bf16.msra.mxu0 0
        %5502 = vmatprep.subr.bf16.mxu0 0
        %5503 = vmatpush1.bf16.msra.mxu0 0
        %5504 = vmatprep.subr.bf16.mxu0 0
        %5505 = vmatpush1.bf16.msra.mxu0 %v3983
        %5506 = vmatprep.subr.bf16.mxu0 0
        %5507 = vmatpush2.bf16.msra.mxu0 0
        %5508 = vmatprep.subr.bf16.mxu0 0
        %5509 = vmatpush2.bf16.msra.mxu0 0
        %5510 = vmatprep.subr.bf16.mxu0 0
        %5511 = vmatpush2.bf16.msra.mxu0 0
        %5512 = vmatprep.subr.bf16.mxu0 0
        %5513 = vmatpush2.bf16.msra.mxu0 0
        %5514 = vmatprep.subr.bf16.mxu0 0
        %5515 = vmatpush2.bf16.msra.mxu0 0
        %5516 = vmatprep.subr.bf16.mxu0 0
        %5517 = vmatpush2.bf16.msra.mxu0 0
        %5518 = vmatprep.subr.bf16.mxu0 0
        %5519 = vmatpush2.bf16.msra.mxu0 0
        %5520 = vmatprep.subr.bf16.mxu0 0
        %5521 = vmatpush2.bf16.msra.mxu0 0
        %5522 = vmatprep.mubr.bf16.mxu0 0
        %5523 = vmatmul.mubr.bf16.gmra.mxu0 %v5488
        %v5524 = vpop.f32.mrf.mxu0
        %v5525 = vadd.f32 0.0, %v5524
        %v5526 = vpop.f32.mrf.mxu0
        %v5527 = vpop.f32.mrf.mxu0
        %v5528 = vadd.f32 0.0, %v5527
        %v5529 = vpop.f32.mrf.mxu0
        %5530 = vdwg.mxu0
        %v5532 = vsel %vm4766, %v5128, 0
        %5534 = vmatprep.subr.bf16.mxu0 0
        %5535 = vmatpush1.bf16.msra.mxu0 0
        %5536 = vmatprep.subr.bf16.mxu0 0
        %5537 = vmatpush1.bf16.msra.mxu0 0
        %5538 = vmatprep.subr.bf16.mxu0 0
        %5539 = vmatpush1.bf16.msra.mxu0 0
        %5540 = vmatprep.subr.bf16.mxu0 0
        %5541 = vmatpush1.bf16.msra.mxu0 0
        %5542 = vmatprep.subr.bf16.mxu0 0
        %5543 = vmatpush1.bf16.msra.mxu0 0
        %5544 = vmatprep.subr.bf16.mxu0 0
        %5545 = vmatpush1.bf16.msra.mxu0 0
        %5546 = vmatprep.subr.bf16.mxu0 0
        %5547 = vmatpush1.bf16.msra.mxu0 0
        %5548 = vmatprep.subr.bf16.mxu0 0
        %5549 = vmatpush1.bf16.msra.mxu0 %v3987
        %5550 = vmatprep.subr.bf16.mxu0 0
        %5551 = vmatpush2.bf16.msra.mxu0 0
        %5552 = vmatprep.subr.bf16.mxu0 0
        %5553 = vmatpush2.bf16.msra.mxu0 0
        %5554 = vmatprep.subr.bf16.mxu0 0
        %5555 = vmatpush2.bf16.msra.mxu0 0
        %5556 = vmatprep.subr.bf16.mxu0 0
        %5557 = vmatpush2.bf16.msra.mxu0 0
        %5558 = vmatprep.subr.bf16.mxu0 0
        %5559 = vmatpush2.bf16.msra.mxu0 0
        %5560 = vmatprep.subr.bf16.mxu0 0
        %5561 = vmatpush2.bf16.msra.mxu0 0
        %5562 = vmatprep.subr.bf16.mxu0 0
        %5563 = vmatpush2.bf16.msra.mxu0 0
        %5564 = vmatprep.subr.bf16.mxu0 0
        %5565 = vmatpush2.bf16.msra.mxu0 0
        %5566 = vmatprep.mubr.bf16.mxu0 0
        %5567 = vmatmul.mubr.bf16.gmra.mxu0 %v5532
        %v5568 = vpop.f32.mrf.mxu0
        %v5569 = vadd.f32 0.0, %v5568
        %v5570 = vpop.f32.mrf.mxu0
        %v5571 = vpop.f32.mrf.mxu0
        %v5572 = vadd.f32 0.0, %v5571
        %v5573 = vpop.f32.mrf.mxu0
        %5574 = vdwg.mxu0
        %v5576 = vsel %vm4766, %v5129, 0
        %5578 = vmatprep.subr.bf16.mxu0 0
        %5579 = vmatpush1.bf16.msra.mxu0 0
        %5580 = vmatprep.subr.bf16.mxu0 0
        %5581 = vmatpush1.bf16.msra.mxu0 0
        %5582 = vmatprep.subr.bf16.mxu0 0
        %5583 = vmatpush1.bf16.msra.mxu0 0
        %5584 = vmatprep.subr.bf16.mxu0 0
        %5585 = vmatpush1.bf16.msra.mxu0 0
        %5586 = vmatprep.subr.bf16.mxu0 0
        %5587 = vmatpush1.bf16.msra.mxu0 0
        %5588 = vmatprep.subr.bf16.mxu0 0
        %5589 = vmatpush1.bf16.msra.mxu0 0
        %5590 = vmatprep.subr.bf16.mxu0 0
        %5591 = vmatpush1.bf16.msra.mxu0 0
        %5592 = vmatprep.subr.bf16.mxu0 0
        %5593 = vmatpush1.bf16.msra.mxu0 %v3991
        %5594 = vmatprep.subr.bf16.mxu0 0
        %5595 = vmatpush2.bf16.msra.mxu0 0
        %5596 = vmatprep.subr.bf16.mxu0 0
        %5597 = vmatpush2.bf16.msra.mxu0 0
        %5598 = vmatprep.subr.bf16.mxu0 0
        %5599 = vmatpush2.bf16.msra.mxu0 0
        %5600 = vmatprep.subr.bf16.mxu0 0
        %5601 = vmatpush2.bf16.msra.mxu0 0
        %5602 = vmatprep.subr.bf16.mxu0 0
        %5603 = vmatpush2.bf16.msra.mxu0 0
        %5604 = vmatprep.subr.bf16.mxu0 0
        %5605 = vmatpush2.bf16.msra.mxu0 0
        %5606 = vmatprep.subr.bf16.mxu0 0
        %5607 = vmatpush2.bf16.msra.mxu0 0
        %5608 = vmatprep.subr.bf16.mxu0 0
        %5609 = vmatpush2.bf16.msra.mxu0 0
        %5610 = vmatprep.mubr.bf16.mxu0 0
        %5611 = vmatmul.mubr.bf16.gmra.mxu0 %v5576
        %v5612 = vpop.f32.mrf.mxu0
        %v5613 = vadd.f32 0.0, %v5612
        %v5614 = vpop.f32.mrf.mxu0
        %v5615 = vpop.f32.mrf.mxu0
        %v5616 = vadd.f32 0.0, %v5615
        %v5617 = vpop.f32.mrf.mxu0
        %5618 = vdwg.mxu0
        %v5620 = vsel %vm4766, %v5130, 0
        %5622 = vmatprep.subr.bf16.mxu0 0
        %5623 = vmatpush1.bf16.msra.mxu0 0
        %5624 = vmatprep.subr.bf16.mxu0 0
        %5625 = vmatpush1.bf16.msra.mxu0 0
        %5626 = vmatprep.subr.bf16.mxu0 0
        %5627 = vmatpush1.bf16.msra.mxu0 0
        %5628 = vmatprep.subr.bf16.mxu0 0
        %5629 = vmatpush1.bf16.msra.mxu0 0
        %5630 = vmatprep.subr.bf16.mxu0 0
        %5631 = vmatpush1.bf16.msra.mxu0 0
        %5632 = vmatprep.subr.bf16.mxu0 0
        %5633 = vmatpush1.bf16.msra.mxu0 0
        %5634 = vmatprep.subr.bf16.mxu0 0
        %5635 = vmatpush1.bf16.msra.mxu0 0
        %5636 = vmatprep.subr.bf16.mxu0 0
        %5637 = vmatpush1.bf16.msra.mxu0 %v3995
        %5638 = vmatprep.subr.bf16.mxu0 0
        %5639 = vmatpush2.bf16.msra.mxu0 0
        %5640 = vmatprep.subr.bf16.mxu0 0
        %5641 = vmatpush2.bf16.msra.mxu0 0
        %5642 = vmatprep.subr.bf16.mxu0 0
        %5643 = vmatpush2.bf16.msra.mxu0 0
        %5644 = vmatprep.subr.bf16.mxu0 0
        %5645 = vmatpush2.bf16.msra.mxu0 0
        %5646 = vmatprep.subr.bf16.mxu0 0
        %5647 = vmatpush2.bf16.msra.mxu0 0
        %5648 = vmatprep.subr.bf16.mxu0 0
        %5649 = vmatpush2.bf16.msra.mxu0 0
        %5650 = vmatprep.subr.bf16.mxu0 0
        %5651 = vmatpush2.bf16.msra.mxu0 0
        %5652 = vmatprep.subr.bf16.mxu0 0
        %5653 = vmatpush2.bf16.msra.mxu0 0
        %5654 = vmatprep.mubr.bf16.mxu0 0
        %5655 = vmatmul.mubr.bf16.gmra.mxu0 %v5620
        %v5656 = vpop.f32.mrf.mxu0
        %v5657 = vadd.f32 0.0, %v5656
        %v5658 = vpop.f32.mrf.mxu0
        %v5659 = vpop.f32.mrf.mxu0
        %v5660 = vadd.f32 0.0, %v5659
        %v5661 = vpop.f32.mrf.mxu0
        %5662 = vdwg.mxu0
        %v5664 = vsel %vm4766, %v5131, 0
        %5666 = vmatprep.subr.bf16.mxu0 0
        %5667 = vmatpush1.bf16.msra.mxu0 0
        %5668 = vmatprep.subr.bf16.mxu0 0
        %5669 = vmatpush1.bf16.msra.mxu0 0
        %5670 = vmatprep.subr.bf16.mxu0 0
        %5671 = vmatpush1.bf16.msra.mxu0 0
        %5672 = vmatprep.subr.bf16.mxu0 0
        %5673 = vmatpush1.bf16.msra.mxu0 0
        %5674 = vmatprep.subr.bf16.mxu0 0
        %5675 = vmatpush1.bf16.msra.mxu0 0
        %5676 = vmatprep.subr.bf16.mxu0 0
        %5677 = vmatpush1.bf16.msra.mxu0 0
        %5678 = vmatprep.subr.bf16.mxu0 0
        %5679 = vmatpush1.bf16.msra.mxu0 0
        %5680 = vmatprep.subr.bf16.mxu0 0
        %5681 = vmatpush1.bf16.msra.mxu0 %v3999
        %5682 = vmatprep.subr.bf16.mxu0 0
        %5683 = vmatpush2.bf16.msra.mxu0 0
        %5684 = vmatprep.subr.bf16.mxu0 0
        %5685 = vmatpush2.bf16.msra.mxu0 0
        %5686 = vmatprep.subr.bf16.mxu0 0
        %5687 = vmatpush2.bf16.msra.mxu0 0
        %5688 = vmatprep.subr.bf16.mxu0 0
        %5689 = vmatpush2.bf16.msra.mxu0 0
        %5690 = vmatprep.subr.bf16.mxu0 0
        %5691 = vmatpush2.bf16.msra.mxu0 0
        %5692 = vmatprep.subr.bf16.mxu0 0
        %5693 = vmatpush2.bf16.msra.mxu0 0
        %5694 = vmatprep.subr.bf16.mxu0 0
        %5695 = vmatpush2.bf16.msra.mxu0 0
        %5696 = vmatprep.subr.bf16.mxu0 0
        %5697 = vmatpush2.bf16.msra.mxu0 0
        %5698 = vmatprep.mubr.bf16.mxu0 0
        %5699 = vmatmul.mubr.bf16.gmra.mxu0 %v5664
        %v5700 = vpop.f32.mrf.mxu0
        %v5701 = vadd.f32 0.0, %v5700
        %v5702 = vpop.f32.mrf.mxu0
        %v5703 = vpop.f32.mrf.mxu0
        %v5704 = vadd.f32 0.0, %v5703
        %v5705 = vpop.f32.mrf.mxu0
        %5706 = vdwg.mxu0
        %v5708 = vsel %vm4766, %v5132, 0
        %5710 = vmatprep.subr.bf16.mxu0 0
        %5711 = vmatpush1.bf16.msra.mxu0 0
        %5712 = vmatprep.subr.bf16.mxu0 0
        %5713 = vmatpush1.bf16.msra.mxu0 0
        %5714 = vmatprep.subr.bf16.mxu0 0
        %5715 = vmatpush1.bf16.msra.mxu0 0
        %5716 = vmatprep.subr.bf16.mxu0 0
        %5717 = vmatpush1.bf16.msra.mxu0 0
        %5718 = vmatprep.subr.bf16.mxu0 0
        %5719 = vmatpush1.bf16.msra.mxu0 0
        %5720 = vmatprep.subr.bf16.mxu0 0
        %5721 = vmatpush1.bf16.msra.mxu0 0
        %5722 = vmatprep.subr.bf16.mxu0 0
        %5723 = vmatpush1.bf16.msra.mxu0 0
        %5724 = vmatprep.subr.bf16.mxu0 0
        %5725 = vmatpush1.bf16.msra.mxu0 %v4003
        %5726 = vmatprep.subr.bf16.mxu0 0
        %5727 = vmatpush2.bf16.msra.mxu0 0
        %5728 = vmatprep.subr.bf16.mxu0 0
        %5729 = vmatpush2.bf16.msra.mxu0 0
        %5730 = vmatprep.subr.bf16.mxu0 0
        %5731 = vmatpush2.bf16.msra.mxu0 0
        %5732 = vmatprep.subr.bf16.mxu0 0
        %5733 = vmatpush2.bf16.msra.mxu0 0
        %5734 = vmatprep.subr.bf16.mxu0 0
        %5735 = vmatpush2.bf16.msra.mxu0 0
        %5736 = vmatprep.subr.bf16.mxu0 0
        %5737 = vmatpush2.bf16.msra.mxu0 0
        %5738 = vmatprep.subr.bf16.mxu0 0
        %5739 = vmatpush2.bf16.msra.mxu0 0
        %5740 = vmatprep.subr.bf16.mxu0 0
        %5741 = vmatpush2.bf16.msra.mxu0 0
        %5742 = vmatprep.mubr.bf16.mxu0 0
        %5743 = vmatmul.mubr.bf16.gmra.mxu0 %v5708
        %v5744 = vpop.f32.mrf.mxu0
        %v5745 = vadd.f32 0.0, %v5744
        %v5746 = vpop.f32.mrf.mxu0
        %v5747 = vpop.f32.mrf.mxu0
        %v5748 = vadd.f32 0.0, %v5747
        %v5749 = vpop.f32.mrf.mxu0
        %5750 = vdwg.mxu0
        %v5752 = vsel %vm4766, %v5133, 0
        %5754 = vmatprep.subr.bf16.mxu0 0
        %5755 = vmatpush1.bf16.msra.mxu0 0
        %5756 = vmatprep.subr.bf16.mxu0 0
        %5757 = vmatpush1.bf16.msra.mxu0 0
        %5758 = vmatprep.subr.bf16.mxu0 0
        %5759 = vmatpush1.bf16.msra.mxu0 0
        %5760 = vmatprep.subr.bf16.mxu0 0
        %5761 = vmatpush1.bf16.msra.mxu0 0
        %5762 = vmatprep.subr.bf16.mxu0 0
        %5763 = vmatpush1.bf16.msra.mxu0 0
        %5764 = vmatprep.subr.bf16.mxu0 0
        %5765 = vmatpush1.bf16.msra.mxu0 0
        %5766 = vmatprep.subr.bf16.mxu0 0
        %5767 = vmatpush1.bf16.msra.mxu0 0
        %5768 = vmatprep.subr.bf16.mxu0 0
        %5769 = vmatpush1.bf16.msra.mxu0 %v4007
        %5770 = vmatprep.subr.bf16.mxu0 0
        %5771 = vmatpush2.bf16.msra.mxu0 0
        %5772 = vmatprep.subr.bf16.mxu0 0
        %5773 = vmatpush2.bf16.msra.mxu0 0
        %5774 = vmatprep.subr.bf16.mxu0 0
        %5775 = vmatpush2.bf16.msra.mxu0 0
        %5776 = vmatprep.subr.bf16.mxu0 0
        %5777 = vmatpush2.bf16.msra.mxu0 0
        %5778 = vmatprep.subr.bf16.mxu0 0
        %5779 = vmatpush2.bf16.msra.mxu0 0
        %5780 = vmatprep.subr.bf16.mxu0 0
        %5781 = vmatpush2.bf16.msra.mxu0 0
        %5782 = vmatprep.subr.bf16.mxu0 0
        %5783 = vmatpush2.bf16.msra.mxu0 0
        %5784 = vmatprep.subr.bf16.mxu0 0
        %5785 = vmatpush2.bf16.msra.mxu0 0
        %5786 = vmatprep.mubr.bf16.mxu0 0
        %5787 = vmatmul.mubr.bf16.gmra.mxu0 %v5752
        %v5788 = vpop.f32.mrf.mxu0
        %v5789 = vadd.f32 0.0, %v5788
        %v5790 = vpop.f32.mrf.mxu0
        %v5791 = vpop.f32.mrf.mxu0
        %v5792 = vadd.f32 0.0, %v5791
        %v5793 = vpop.f32.mrf.mxu0
        %5794 = vdwg.mxu0
        %v5796 = vsel %vm4766, %v5134, 0
        %5798 = vmatprep.subr.bf16.mxu0 0
        %5799 = vmatpush1.bf16.msra.mxu0 0
        %5800 = vmatprep.subr.bf16.mxu0 0
        %5801 = vmatpush1.bf16.msra.mxu0 0
        %5802 = vmatprep.subr.bf16.mxu0 0
        %5803 = vmatpush1.bf16.msra.mxu0 0
        %5804 = vmatprep.subr.bf16.mxu0 0
        %5805 = vmatpush1.bf16.msra.mxu0 0
        %5806 = vmatprep.subr.bf16.mxu0 0
        %5807 = vmatpush1.bf16.msra.mxu0 0
        %5808 = vmatprep.subr.bf16.mxu0 0
        %5809 = vmatpush1.bf16.msra.mxu0 0
        %5810 = vmatprep.subr.bf16.mxu0 0
        %5811 = vmatpush1.bf16.msra.mxu0 0
        %5812 = vmatprep.subr.bf16.mxu0 0
        %5813 = vmatpush1.bf16.msra.mxu0 %v4011
        %5814 = vmatprep.subr.bf16.mxu0 0
        %5815 = vmatpush2.bf16.msra.mxu0 0
        %5816 = vmatprep.subr.bf16.mxu0 0
        %5817 = vmatpush2.bf16.msra.mxu0 0
        %5818 = vmatprep.subr.bf16.mxu0 0
        %5819 = vmatpush2.bf16.msra.mxu0 0
        %5820 = vmatprep.subr.bf16.mxu0 0
        %5821 = vmatpush2.bf16.msra.mxu0 0
        %5822 = vmatprep.subr.bf16.mxu0 0
        %5823 = vmatpush2.bf16.msra.mxu0 0
        %5824 = vmatprep.subr.bf16.mxu0 0
        %5825 = vmatpush2.bf16.msra.mxu0 0
        %5826 = vmatprep.subr.bf16.mxu0 0
        %5827 = vmatpush2.bf16.msra.mxu0 0
        %5828 = vmatprep.subr.bf16.mxu0 0
        %5829 = vmatpush2.bf16.msra.mxu0 0
        %5830 = vmatprep.mubr.bf16.mxu0 0
        %5831 = vmatmul.mubr.bf16.gmra.mxu0 %v5796
        %v5832 = vpop.f32.mrf.mxu0
        %v5833 = vadd.f32 0.0, %v5832
        %v5834 = vpop.f32.mrf.mxu0
        %v5835 = vpop.f32.mrf.mxu0
        %v5836 = vadd.f32 0.0, %v5835
        %v5837 = vpop.f32.mrf.mxu0
        %5838 = vdwg.mxu0
        %v5839 = vcombine.low %v5173, %v5261
        %v5840 = vcombine.high %v5173, %v5261
        %v5842 = vunpack.c.l.s4 1983009808
        %v5843 = vunpack.c.0.s8 %v5842
        %v5844 = vlaneseq
        %v5845 = vshrl.u32 %v5844, 7
        %v5846 = vsub.s32 %v5843, %v5845
        %v5847 = vrot.slane %v5839, %v5846
        %v5849 = vunpack.c.l.s4 1983009808
        %v5850 = vunpack.c.0.s8 %v5849
        %v5851 = vlaneseq
        %v5852 = vshrl.u32 %v5851, 7
        %v5853 = vsub.s32 %v5850, %v5852
        %v5854 = vrot.slane %v5840, %v5853
        %v5855 = vcombine.low %v5217, %v5305
        %v5856 = vcombine.high %v5217, %v5305
        %v5858 = vunpack.c.l.s4 1983009808
        %v5859 = vunpack.c.0.s8 %v5858
        %v5860 = vlaneseq
        %v5861 = vshrl.u32 %v5860, 7
        %v5862 = vsub.s32 %v5859, %v5861
        %v5863 = vrot.slane %v5855, %v5862
        %v5865 = vunpack.c.l.s4 1983009808
        %v5866 = vunpack.c.0.s8 %v5865
        %v5867 = vlaneseq
        %v5868 = vshrl.u32 %v5867, 7
        %v5869 = vsub.s32 %v5866, %v5868
        %v5870 = vrot.slane %v5856, %v5869
        %v5871 = vcombine.low %v5847, %v5863
        %v5872 = vcombine.high %v5847, %v5863
        %v5874 = vunpack.c.l.s4 1934713408
        %v5875 = vunpack.c.0.s8 %v5874
        %v5876 = vlaneseq
        %v5877 = vshrl.u32 %v5876, 7
        %v5878 = vsub.s32 %v5875, %v5877
        %v5879 = vrot.slane %v5871, %v5878
        %v5881 = vunpack.c.l.s4 1934713408
        %v5882 = vunpack.c.0.s8 %v5881
        %v5883 = vlaneseq
        %v5884 = vshrl.u32 %v5883, 7
        %v5885 = vsub.s32 %v5882, %v5884
        %v5886 = vrot.slane %v5872, %v5885
        %v5887 = vcombine.low %v5854, %v5870
        %v5888 = vcombine.high %v5854, %v5870
        %v5890 = vunpack.c.l.s4 1934713408
        %v5891 = vunpack.c.0.s8 %v5890
        %v5892 = vlaneseq
        %v5893 = vshrl.u32 %v5892, 7
        %v5894 = vsub.s32 %v5891, %v5893
        %v5895 = vrot.slane %v5887, %v5894
        %v5897 = vunpack.c.l.s4 1934713408
        %v5898 = vunpack.c.0.s8 %v5897
        %v5899 = vlaneseq
        %v5900 = vshrl.u32 %v5899, 7
        %v5901 = vsub.s32 %v5898, %v5900
        %v5902 = vrot.slane %v5888, %v5901
        %v5903 = vcombine.high %v5879, 0.0
        %v5904 = vcombine.high %v5886, 0.0
        %v5905 = vcombine.high %v5895, 0.0
        %v5906 = vcombine.high %v5902, 0.0
        %v5907 = vcombine.low %v5176, %v5264
        %v5908 = vcombine.high %v5176, %v5264
        %v5910 = vunpack.c.l.s4 1983009808
        %v5911 = vunpack.c.0.s8 %v5910
        %v5912 = vlaneseq
        %v5913 = vshrl.u32 %v5912, 7
        %v5914 = vsub.s32 %v5911, %v5913
        %v5915 = vrot.slane %v5907, %v5914
        %v5917 = vunpack.c.l.s4 1983009808
        %v5918 = vunpack.c.0.s8 %v5917
        %v5919 = vlaneseq
        %v5920 = vshrl.u32 %v5919, 7
        %v5921 = vsub.s32 %v5918, %v5920
        %v5922 = vrot.slane %v5908, %v5921
        %v5923 = vcombine.low %v5220, %v5308
        %v5924 = vcombine.high %v5220, %v5308
        %v5926 = vunpack.c.l.s4 1983009808
        %v5927 = vunpack.c.0.s8 %v5926
        %v5928 = vlaneseq
        %v5929 = vshrl.u32 %v5928, 7
        %v5930 = vsub.s32 %v5927, %v5929
        %v5931 = vrot.slane %v5923, %v5930
        %v5933 = vunpack.c.l.s4 1983009808
        %v5934 = vunpack.c.0.s8 %v5933
        %v5935 = vlaneseq
        %v5936 = vshrl.u32 %v5935, 7
        %v5937 = vsub.s32 %v5934, %v5936
        %v5938 = vrot.slane %v5924, %v5937
        %v5939 = vcombine.low %v5915, %v5931
        %v5940 = vcombine.high %v5915, %v5931
        %v5942 = vunpack.c.l.s4 1934713408
        %v5943 = vunpack.c.0.s8 %v5942
        %v5944 = vlaneseq
        %v5945 = vshrl.u32 %v5944, 7
        %v5946 = vsub.s32 %v5943, %v5945
        %v5947 = vrot.slane %v5939, %v5946
        %v5949 = vunpack.c.l.s4 1934713408
        %v5950 = vunpack.c.0.s8 %v5949
        %v5951 = vlaneseq
        %v5952 = vshrl.u32 %v5951, 7
        %v5953 = vsub.s32 %v5950, %v5952
        %v5954 = vrot.slane %v5940, %v5953
        %v5955 = vcombine.low %v5922, %v5938
        %v5956 = vcombine.high %v5922, %v5938
        %v5958 = vunpack.c.l.s4 1934713408
        %v5959 = vunpack.c.0.s8 %v5958
        %v5960 = vlaneseq
        %v5961 = vshrl.u32 %v5960, 7
        %v5962 = vsub.s32 %v5959, %v5961
        %v5963 = vrot.slane %v5955, %v5962
        %v5965 = vunpack.c.l.s4 1934713408
        %v5966 = vunpack.c.0.s8 %v5965
        %v5967 = vlaneseq
        %v5968 = vshrl.u32 %v5967, 7
        %v5969 = vsub.s32 %v5966, %v5968
        %v5970 = vrot.slane %v5956, %v5969
        %v5971 = vcombine.high %v5947, 0.0
        %v5972 = vcombine.high %v5954, 0.0
        %v5973 = vcombine.high %v5963, 0.0
        %v5974 = vcombine.high %v5970, 0.0
        %v5975 = vcombine.low %v5349, %v5437
        %v5976 = vcombine.high %v5349, %v5437
        %v5978 = vunpack.c.l.s4 1983009808
        %v5979 = vunpack.c.0.s8 %v5978
        %v5980 = vlaneseq
        %v5981 = vshrl.u32 %v5980, 7
        %v5982 = vsub.s32 %v5979, %v5981
        %v5983 = vrot.slane %v5975, %v5982
        %v5985 = vunpack.c.l.s4 1983009808
        %v5986 = vunpack.c.0.s8 %v5985
        %v5987 = vlaneseq
        %v5988 = vshrl.u32 %v5987, 7
        %v5989 = vsub.s32 %v5986, %v5988
        %v5990 = vrot.slane %v5976, %v5989
        %v5991 = vcombine.low %v5393, %v5481
        %v5992 = vcombine.high %v5393, %v5481
        %v5994 = vunpack.c.l.s4 1983009808
        %v5995 = vunpack.c.0.s8 %v5994
        %v5996 = vlaneseq
        %v5997 = vshrl.u32 %v5996, 7
        %v5998 = vsub.s32 %v5995, %v5997
        %v5999 = vrot.slane %v5991, %v5998
        %v6001 = vunpack.c.l.s4 1983009808
        %v6002 = vunpack.c.0.s8 %v6001
        %v6003 = vlaneseq
        %v6004 = vshrl.u32 %v6003, 7
        %v6005 = vsub.s32 %v6002, %v6004
        %v6006 = vrot.slane %v5992, %v6005
        %v6007 = vcombine.low %v5983, %v5999
        %v6008 = vcombine.high %v5983, %v5999
        %v6010 = vunpack.c.l.s4 1934713408
        %v6011 = vunpack.c.0.s8 %v6010
        %v6012 = vlaneseq
        %v6013 = vshrl.u32 %v6012, 7
        %v6014 = vsub.s32 %v6011, %v6013
        %v6015 = vrot.slane %v6007, %v6014
        %v6017 = vunpack.c.l.s4 1934713408
        %v6018 = vunpack.c.0.s8 %v6017
        %v6019 = vlaneseq
        %v6020 = vshrl.u32 %v6019, 7
        %v6021 = vsub.s32 %v6018, %v6020
        %v6022 = vrot.slane %v6008, %v6021
        %v6023 = vcombine.low %v5990, %v6006
        %v6024 = vcombine.high %v5990, %v6006
        %v6026 = vunpack.c.l.s4 1934713408
        %v6027 = vunpack.c.0.s8 %v6026
        %v6028 = vlaneseq
        %v6029 = vshrl.u32 %v6028, 7
        %v6030 = vsub.s32 %v6027, %v6029
        %v6031 = vrot.slane %v6023, %v6030
        %v6033 = vunpack.c.l.s4 1934713408
        %v6034 = vunpack.c.0.s8 %v6033
        %v6035 = vlaneseq
        %v6036 = vshrl.u32 %v6035, 7
        %v6037 = vsub.s32 %v6034, %v6036
        %v6038 = vrot.slane %v6024, %v6037
        %v6039 = vcombine.high %v6015, 0.0
        %v6040 = vcombine.high %v6022, 0.0
        %v6041 = vcombine.high %v6031, 0.0
        %v6042 = vcombine.high %v6038, 0.0
        %v6043 = vcombine.low %v5352, %v5440
        %v6044 = vcombine.high %v5352, %v5440
        %v6046 = vunpack.c.l.s4 1983009808
        %v6047 = vunpack.c.0.s8 %v6046
        %v6048 = vlaneseq
        %v6049 = vshrl.u32 %v6048, 7
        %v6050 = vsub.s32 %v6047, %v6049
        %v6051 = vrot.slane %v6043, %v6050
        %v6053 = vunpack.c.l.s4 1983009808
        %v6054 = vunpack.c.0.s8 %v6053
        %v6055 = vlaneseq
        %v6056 = vshrl.u32 %v6055, 7
        %v6057 = vsub.s32 %v6054, %v6056
        %v6058 = vrot.slane %v6044, %v6057
        %v6059 = vcombine.low %v5396, %v5484
        %v6060 = vcombine.high %v5396, %v5484
        %v6062 = vunpack.c.l.s4 1983009808
        %v6063 = vunpack.c.0.s8 %v6062
        %v6064 = vlaneseq
        %v6065 = vshrl.u32 %v6064, 7
        %v6066 = vsub.s32 %v6063, %v6065
        %v6067 = vrot.slane %v6059, %v6066
        %v6069 = vunpack.c.l.s4 1983009808
        %v6070 = vunpack.c.0.s8 %v6069
        %v6071 = vlaneseq
        %v6072 = vshrl.u32 %v6071, 7
        %v6073 = vsub.s32 %v6070, %v6072
        %v6074 = vrot.slane %v6060, %v6073
        %v6075 = vcombine.low %v6051, %v6067
        %v6076 = vcombine.high %v6051, %v6067
        %v6078 = vunpack.c.l.s4 1934713408
        %v6079 = vunpack.c.0.s8 %v6078
        %v6080 = vlaneseq
        %v6081 = vshrl.u32 %v6080, 7
        %v6082 = vsub.s32 %v6079, %v6081
        %v6083 = vrot.slane %v6075, %v6082
        %v6085 = vunpack.c.l.s4 1934713408
        %v6086 = vunpack.c.0.s8 %v6085
        %v6087 = vlaneseq
        %v6088 = vshrl.u32 %v6087, 7
        %v6089 = vsub.s32 %v6086, %v6088
        %v6090 = vrot.slane %v6076, %v6089
        %v6091 = vcombine.low %v6058, %v6074
        %v6092 = vcombine.high %v6058, %v6074
        %v6094 = vunpack.c.l.s4 1934713408
        %v6095 = vunpack.c.0.s8 %v6094
        %v6096 = vlaneseq
        %v6097 = vshrl.u32 %v6096, 7
        %v6098 = vsub.s32 %v6095, %v6097
        %v6099 = vrot.slane %v6091, %v6098
        %v6101 = vunpack.c.l.s4 1934713408
        %v6102 = vunpack.c.0.s8 %v6101
        %v6103 = vlaneseq
        %v6104 = vshrl.u32 %v6103, 7
        %v6105 = vsub.s32 %v6102, %v6104
        %v6106 = vrot.slane %v6092, %v6105
        %v6107 = vcombine.high %v6083, 0.0
        %v6108 = vcombine.high %v6090, 0.0
        %v6109 = vcombine.high %v6099, 0.0
        %v6110 = vcombine.high %v6106, 0.0
        %v6111 = vcombine.low %v5525, %v5613
        %v6112 = vcombine.high %v5525, %v5613
        %v6114 = vunpack.c.l.s4 1983009808
        %v6115 = vunpack.c.0.s8 %v6114
        %v6116 = vlaneseq
        %v6117 = vshrl.u32 %v6116, 7
        %v6118 = vsub.s32 %v6115, %v6117
        %v6119 = vrot.slane %v6111, %v6118
        %v6121 = vunpack.c.l.s4 1983009808
        %v6122 = vunpack.c.0.s8 %v6121
        %v6123 = vlaneseq
        %v6124 = vshrl.u32 %v6123, 7
        %v6125 = vsub.s32 %v6122, %v6124
        %v6126 = vrot.slane %v6112, %v6125
        %v6127 = vcombine.low %v5569, %v5657
        %v6128 = vcombine.high %v5569, %v5657
        %v6130 = vunpack.c.l.s4 1983009808
        %v6131 = vunpack.c.0.s8 %v6130
        %v6132 = vlaneseq
        %v6133 = vshrl.u32 %v6132, 7
        %v6134 = vsub.s32 %v6131, %v6133
        %v6135 = vrot.slane %v6127, %v6134
        %v6137 = vunpack.c.l.s4 1983009808
        %v6138 = vunpack.c.0.s8 %v6137
        %v6139 = vlaneseq
        %v6140 = vshrl.u32 %v6139, 7
        %v6141 = vsub.s32 %v6138, %v6140
        %v6142 = vrot.slane %v6128, %v6141
        %v6143 = vcombine.low %v6119, %v6135
        %v6144 = vcombine.high %v6119, %v6135
        %v6146 = vunpack.c.l.s4 1934713408
        %v6147 = vunpack.c.0.s8 %v6146
        %v6148 = vlaneseq
        %v6149 = vshrl.u32 %v6148, 7
        %v6150 = vsub.s32 %v6147, %v6149
        %v6151 = vrot.slane %v6143, %v6150
        %v6153 = vunpack.c.l.s4 1934713408
        %v6154 = vunpack.c.0.s8 %v6153
        %v6155 = vlaneseq
        %v6156 = vshrl.u32 %v6155, 7
        %v6157 = vsub.s32 %v6154, %v6156
        %v6158 = vrot.slane %v6144, %v6157
        %v6159 = vcombine.low %v6126, %v6142
        %v6160 = vcombine.high %v6126, %v6142
        %v6162 = vunpack.c.l.s4 1934713408
        %v6163 = vunpack.c.0.s8 %v6162
        %v6164 = vlaneseq
        %v6165 = vshrl.u32 %v6164, 7
        %v6166 = vsub.s32 %v6163, %v6165
        %v6167 = vrot.slane %v6159, %v6166
        %v6169 = vunpack.c.l.s4 1934713408
        %v6170 = vunpack.c.0.s8 %v6169
        %v6171 = vlaneseq
        %v6172 = vshrl.u32 %v6171, 7
        %v6173 = vsub.s32 %v6170, %v6172
        %v6174 = vrot.slane %v6160, %v6173
        %v6175 = vcombine.high %v6151, 0.0
        %v6176 = vcombine.high %v6158, 0.0
        %v6177 = vcombine.high %v6167, 0.0
        %v6178 = vcombine.high %v6174, 0.0
        %v6179 = vcombine.low %v5528, %v5616
        %v6180 = vcombine.high %v5528, %v5616
        %v6182 = vunpack.c.l.s4 1983009808
        %v6183 = vunpack.c.0.s8 %v6182
        %v6184 = vlaneseq
        %v6185 = vshrl.u32 %v6184, 7
        %v6186 = vsub.s32 %v6183, %v6185
        %v6187 = vrot.slane %v6179, %v6186
        %v6189 = vunpack.c.l.s4 1983009808
        %v6190 = vunpack.c.0.s8 %v6189
        %v6191 = vlaneseq
        %v6192 = vshrl.u32 %v6191, 7
        %v6193 = vsub.s32 %v6190, %v6192
        %v6194 = vrot.slane %v6180, %v6193
        %v6195 = vcombine.low %v5572, %v5660
        %v6196 = vcombine.high %v5572, %v5660
        %v6198 = vunpack.c.l.s4 1983009808
        %v6199 = vunpack.c.0.s8 %v6198
        %v6200 = vlaneseq
        %v6201 = vshrl.u32 %v6200, 7
        %v6202 = vsub.s32 %v6199, %v6201
        %v6203 = vrot.slane %v6195, %v6202
        %v6205 = vunpack.c.l.s4 1983009808
        %v6206 = vunpack.c.0.s8 %v6205
        %v6207 = vlaneseq
        %v6208 = vshrl.u32 %v6207, 7
        %v6209 = vsub.s32 %v6206, %v6208
        %v6210 = vrot.slane %v6196, %v6209
        %v6211 = vcombine.low %v6187, %v6203
        %v6212 = vcombine.high %v6187, %v6203
        %v6214 = vunpack.c.l.s4 1934713408
        %v6215 = vunpack.c.0.s8 %v6214
        %v6216 = vlaneseq
        %v6217 = vshrl.u32 %v6216, 7
        %v6218 = vsub.s32 %v6215, %v6217
        %v6219 = vrot.slane %v6211, %v6218
        %v6221 = vunpack.c.l.s4 1934713408
        %v6222 = vunpack.c.0.s8 %v6221
        %v6223 = vlaneseq
        %v6224 = vshrl.u32 %v6223, 7
        %v6225 = vsub.s32 %v6222, %v6224
        %v6226 = vrot.slane %v6212, %v6225
        %v6227 = vcombine.low %v6194, %v6210
        %v6228 = vcombine.high %v6194, %v6210
        %v6230 = vunpack.c.l.s4 1934713408
        %v6231 = vunpack.c.0.s8 %v6230
        %v6232 = vlaneseq
        %v6233 = vshrl.u32 %v6232, 7
        %v6234 = vsub.s32 %v6231, %v6233
        %v6235 = vrot.slane %v6227, %v6234
        %v6237 = vunpack.c.l.s4 1934713408
        %v6238 = vunpack.c.0.s8 %v6237
        %v6239 = vlaneseq
        %v6240 = vshrl.u32 %v6239, 7
        %v6241 = vsub.s32 %v6238, %v6240
        %v6242 = vrot.slane %v6228, %v6241
        %v6243 = vcombine.high %v6219, 0.0
        %v6244 = vcombine.high %v6226, 0.0
        %v6245 = vcombine.high %v6235, 0.0
        %v6246 = vcombine.high %v6242, 0.0
        %v6247 = vcombine.low %v5701, %v5789
        %v6248 = vcombine.high %v5701, %v5789
        %v6250 = vunpack.c.l.s4 1983009808
        %v6251 = vunpack.c.0.s8 %v6250
        %v6252 = vlaneseq
        %v6253 = vshrl.u32 %v6252, 7
        %v6254 = vsub.s32 %v6251, %v6253
        %v6255 = vrot.slane %v6247, %v6254
        %v6257 = vunpack.c.l.s4 1983009808
        %v6258 = vunpack.c.0.s8 %v6257
        %v6259 = vlaneseq
        %v6260 = vshrl.u32 %v6259, 7
        %v6261 = vsub.s32 %v6258, %v6260
        %v6262 = vrot.slane %v6248, %v6261
        %v6263 = vcombine.low %v5745, %v5833
        %v6264 = vcombine.high %v5745, %v5833
        %v6266 = vunpack.c.l.s4 1983009808
        %v6267 = vunpack.c.0.s8 %v6266
        %v6268 = vlaneseq
        %v6269 = vshrl.u32 %v6268, 7
        %v6270 = vsub.s32 %v6267, %v6269
        %v6271 = vrot.slane %v6263, %v6270
        %v6273 = vunpack.c.l.s4 1983009808
        %v6274 = vunpack.c.0.s8 %v6273
        %v6275 = vlaneseq
        %v6276 = vshrl.u32 %v6275, 7
        %v6277 = vsub.s32 %v6274, %v6276
        %v6278 = vrot.slane %v6264, %v6277
        %v6279 = vcombine.low %v6255, %v6271
        %v6280 = vcombine.high %v6255, %v6271
        %v6282 = vunpack.c.l.s4 1934713408
        %v6283 = vunpack.c.0.s8 %v6282
        %v6284 = vlaneseq
        %v6285 = vshrl.u32 %v6284, 7
        %v6286 = vsub.s32 %v6283, %v6285
        %v6287 = vrot.slane %v6279, %v6286
        %v6289 = vunpack.c.l.s4 1934713408
        %v6290 = vunpack.c.0.s8 %v6289
        %v6291 = vlaneseq
        %v6292 = vshrl.u32 %v6291, 7
        %v6293 = vsub.s32 %v6290, %v6292
        %v6294 = vrot.slane %v6280, %v6293
        %v6295 = vcombine.low %v6262, %v6278
        %v6296 = vcombine.high %v6262, %v6278
        %v6298 = vunpack.c.l.s4 1934713408
        %v6299 = vunpack.c.0.s8 %v6298
        %v6300 = vlaneseq
        %v6301 = vshrl.u32 %v6300, 7
        %v6302 = vsub.s32 %v6299, %v6301
        %v6303 = vrot.slane %v6295, %v6302
        %v6305 = vunpack.c.l.s4 1934713408
        %v6306 = vunpack.c.0.s8 %v6305
        %v6307 = vlaneseq
        %v6308 = vshrl.u32 %v6307, 7
        %v6309 = vsub.s32 %v6306, %v6308
        %v6310 = vrot.slane %v6296, %v6309
        %v6311 = vcombine.high %v6287, 0.0
        %v6312 = vcombine.high %v6294, 0.0
        %v6313 = vcombine.high %v6303, 0.0
        %v6314 = vcombine.high %v6310, 0.0
        %v6315 = vcombine.low %v5704, %v5792
        %v6316 = vcombine.high %v5704, %v5792
        %v6318 = vunpack.c.l.s4 1983009808
        %v6319 = vunpack.c.0.s8 %v6318
        %v6320 = vlaneseq
        %v6321 = vshrl.u32 %v6320, 7
        %v6322 = vsub.s32 %v6319, %v6321
        %v6323 = vrot.slane %v6315, %v6322
        %v6325 = vunpack.c.l.s4 1983009808
        %v6326 = vunpack.c.0.s8 %v6325
        %v6327 = vlaneseq
        %v6328 = vshrl.u32 %v6327, 7
        %v6329 = vsub.s32 %v6326, %v6328
        %v6330 = vrot.slane %v6316, %v6329
        %v6331 = vcombine.low %v5748, %v5836
        %v6332 = vcombine.high %v5748, %v5836
        %v6334 = vunpack.c.l.s4 1983009808
        %v6335 = vunpack.c.0.s8 %v6334
        %v6336 = vlaneseq
        %v6337 = vshrl.u32 %v6336, 7
        %v6338 = vsub.s32 %v6335, %v6337
        %v6339 = vrot.slane %v6331, %v6338
        %v6341 = vunpack.c.l.s4 1983009808
        %v6342 = vunpack.c.0.s8 %v6341
        %v6343 = vlaneseq
        %v6344 = vshrl.u32 %v6343, 7
        %v6345 = vsub.s32 %v6342, %v6344
        %v6346 = vrot.slane %v6332, %v6345
        %v6347 = vcombine.low %v6323, %v6339
        %v6348 = vcombine.high %v6323, %v6339
        %v6350 = vunpack.c.l.s4 1934713408
        %v6351 = vunpack.c.0.s8 %v6350
        %v6352 = vlaneseq
        %v6353 = vshrl.u32 %v6352, 7
        %v6354 = vsub.s32 %v6351, %v6353
        %v6355 = vrot.slane %v6347, %v6354
        %v6357 = vunpack.c.l.s4 1934713408
        %v6358 = vunpack.c.0.s8 %v6357
        %v6359 = vlaneseq
        %v6360 = vshrl.u32 %v6359, 7
        %v6361 = vsub.s32 %v6358, %v6360
        %v6362 = vrot.slane %v6348, %v6361
        %v6363 = vcombine.low %v6330, %v6346
        %v6364 = vcombine.high %v6330, %v6346
        %v6366 = vunpack.c.l.s4 1934713408
        %v6367 = vunpack.c.0.s8 %v6366
        %v6368 = vlaneseq
        %v6369 = vshrl.u32 %v6368, 7
        %v6370 = vsub.s32 %v6367, %v6369
        %v6371 = vrot.slane %v6363, %v6370
        %v6373 = vunpack.c.l.s4 1934713408
        %v6374 = vunpack.c.0.s8 %v6373
        %v6375 = vlaneseq
        %v6376 = vshrl.u32 %v6375, 7
        %v6377 = vsub.s32 %v6374, %v6376
        %v6378 = vrot.slane %v6364, %v6377
        %v6379 = vcombine.high %v6355, 0.0
        %v6380 = vcombine.high %v6362, 0.0
        %v6381 = vcombine.high %v6371, 0.0
        %v6382 = vcombine.high %v6378, 0.0
        %v6383 = vcombine.low %v5879, %v5886
        %v6385 = vunpack.c.l.s4 1983009808
        %v6386 = vunpack.c.0.s8 %v6385
        %v6387 = vlaneseq
        %v6388 = vshrl.u32 %v6387, 7
        %v6389 = vsub.s32 %v6386, %v6388
        %v6390 = vrot.slane %v6383, %v6389
        %v6391 = vcombine.low %v5903, %v5904
        %v6393 = vunpack.c.l.s4 1983009808
        %v6394 = vunpack.c.0.s8 %v6393
        %v6395 = vlaneseq
        %v6396 = vshrl.u32 %v6395, 7
        %v6397 = vsub.s32 %v6394, %v6396
        %v6398 = vrot.slane %v6391, %v6397
        %v6399 = vcombine.low %v5895, %v5902
        %v6401 = vunpack.c.l.s4 1983009808
        %v6402 = vunpack.c.0.s8 %v6401
        %v6403 = vlaneseq
        %v6404 = vshrl.u32 %v6403, 7
        %v6405 = vsub.s32 %v6402, %v6404
        %v6406 = vrot.slane %v6399, %v6405
        %v6407 = vcombine.low %v5905, %v5906
        %v6409 = vunpack.c.l.s4 1983009808
        %v6410 = vunpack.c.0.s8 %v6409
        %v6411 = vlaneseq
        %v6412 = vshrl.u32 %v6411, 7
        %v6413 = vsub.s32 %v6410, %v6412
        %v6414 = vrot.slane %v6407, %v6413
        %v6415 = vcombine.low %v6390, %v6398
        %v6416 = vcombine.high %v6390, %v6398
        %v6418 = vunpack.c.l.s4 1934713408
        %v6419 = vunpack.c.0.s8 %v6418
        %v6420 = vlaneseq
        %v6421 = vshrl.u32 %v6420, 7
        %v6422 = vsub.s32 %v6419, %v6421
        %v6423 = vrot.slane %v6415, %v6422
        %v6425 = vunpack.c.l.s4 1934713408
        %v6426 = vunpack.c.0.s8 %v6425
        %v6427 = vlaneseq
        %v6428 = vshrl.u32 %v6427, 7
        %v6429 = vsub.s32 %v6426, %v6428
        %v6430 = vrot.slane %v6416, %v6429
        %v6431 = vcombine.low %v6406, %v6414
        %v6432 = vcombine.high %v6406, %v6414
        %v6434 = vunpack.c.l.s4 1934713408
        %v6435 = vunpack.c.0.s8 %v6434
        %v6436 = vlaneseq
        %v6437 = vshrl.u32 %v6436, 7
        %v6438 = vsub.s32 %v6435, %v6437
        %v6439 = vrot.slane %v6431, %v6438
        %v6441 = vunpack.c.l.s4 1934713408
        %v6442 = vunpack.c.0.s8 %v6441
        %v6443 = vlaneseq
        %v6444 = vshrl.u32 %v6443, 7
        %v6445 = vsub.s32 %v6442, %v6444
        %v6446 = vrot.slane %v6432, %v6445
        %v6447 = vcombine.low %v6423, %v6439
        %v6448 = vcombine.high %v6423, %v6439
        %v6449 = vcombine.low %v6430, %v6446
        %v6450 = vcombine.high %v6430, %v6446
        %v6451 = vcombine.low %v5947, %v5954
        %v6453 = vunpack.c.l.s4 1983009808
        %v6454 = vunpack.c.0.s8 %v6453
        %v6455 = vlaneseq
        %v6456 = vshrl.u32 %v6455, 7
        %v6457 = vsub.s32 %v6454, %v6456
        %v6458 = vrot.slane %v6451, %v6457
        %v6459 = vcombine.low %v5971, %v5972
        %v6461 = vunpack.c.l.s4 1983009808
        %v6462 = vunpack.c.0.s8 %v6461
        %v6463 = vlaneseq
        %v6464 = vshrl.u32 %v6463, 7
        %v6465 = vsub.s32 %v6462, %v6464
        %v6466 = vrot.slane %v6459, %v6465
        %v6467 = vcombine.low %v5963, %v5970
        %v6469 = vunpack.c.l.s4 1983009808
        %v6470 = vunpack.c.0.s8 %v6469
        %v6471 = vlaneseq
        %v6472 = vshrl.u32 %v6471, 7
        %v6473 = vsub.s32 %v6470, %v6472
        %v6474 = vrot.slane %v6467, %v6473
        %v6475 = vcombine.low %v5973, %v5974
        %v6477 = vunpack.c.l.s4 1983009808
        %v6478 = vunpack.c.0.s8 %v6477
        %v6479 = vlaneseq
        %v6480 = vshrl.u32 %v6479, 7
        %v6481 = vsub.s32 %v6478, %v6480
        %v6482 = vrot.slane %v6475, %v6481
        %v6483 = vcombine.low %v6458, %v6466
        %v6484 = vcombine.high %v6458, %v6466
        %v6486 = vunpack.c.l.s4 1934713408
        %v6487 = vunpack.c.0.s8 %v6486
        %v6488 = vlaneseq
        %v6489 = vshrl.u32 %v6488, 7
        %v6490 = vsub.s32 %v6487, %v6489
        %v6491 = vrot.slane %v6483, %v6490
        %v6493 = vunpack.c.l.s4 1934713408
        %v6494 = vunpack.c.0.s8 %v6493
        %v6495 = vlaneseq
        %v6496 = vshrl.u32 %v6495, 7
        %v6497 = vsub.s32 %v6494, %v6496
        %v6498 = vrot.slane %v6484, %v6497
        %v6499 = vcombine.low %v6474, %v6482
        %v6500 = vcombine.high %v6474, %v6482
        %v6502 = vunpack.c.l.s4 1934713408
        %v6503 = vunpack.c.0.s8 %v6502
        %v6504 = vlaneseq
        %v6505 = vshrl.u32 %v6504, 7
        %v6506 = vsub.s32 %v6503, %v6505
        %v6507 = vrot.slane %v6499, %v6506
        %v6509 = vunpack.c.l.s4 1934713408
        %v6510 = vunpack.c.0.s8 %v6509
        %v6511 = vlaneseq
        %v6512 = vshrl.u32 %v6511, 7
        %v6513 = vsub.s32 %v6510, %v6512
        %v6514 = vrot.slane %v6500, %v6513
        %v6515 = vcombine.low %v6491, %v6507
        %v6516 = vcombine.high %v6491, %v6507
        %v6517 = vcombine.low %v6498, %v6514
        %v6518 = vcombine.high %v6498, %v6514
        %v6519 = vcombine.low %v6015, %v6022
        %v6521 = vunpack.c.l.s4 1983009808
        %v6522 = vunpack.c.0.s8 %v6521
        %v6523 = vlaneseq
        %v6524 = vshrl.u32 %v6523, 7
        %v6525 = vsub.s32 %v6522, %v6524
        %v6526 = vrot.slane %v6519, %v6525
        %v6527 = vcombine.low %v6039, %v6040
        %v6529 = vunpack.c.l.s4 1983009808
        %v6530 = vunpack.c.0.s8 %v6529
        %v6531 = vlaneseq
        %v6532 = vshrl.u32 %v6531, 7
        %v6533 = vsub.s32 %v6530, %v6532
        %v6534 = vrot.slane %v6527, %v6533
        %v6535 = vcombine.low %v6031, %v6038
        %v6537 = vunpack.c.l.s4 1983009808
        %v6538 = vunpack.c.0.s8 %v6537
        %v6539 = vlaneseq
        %v6540 = vshrl.u32 %v6539, 7
        %v6541 = vsub.s32 %v6538, %v6540
        %v6542 = vrot.slane %v6535, %v6541
        %v6543 = vcombine.low %v6041, %v6042
        %v6545 = vunpack.c.l.s4 1983009808
        %v6546 = vunpack.c.0.s8 %v6545
        %v6547 = vlaneseq
        %v6548 = vshrl.u32 %v6547, 7
        %v6549 = vsub.s32 %v6546, %v6548
        %v6550 = vrot.slane %v6543, %v6549
        %v6551 = vcombine.low %v6526, %v6534
        %v6552 = vcombine.high %v6526, %v6534
        %v6554 = vunpack.c.l.s4 1934713408
        %v6555 = vunpack.c.0.s8 %v6554
        %v6556 = vlaneseq
        %v6557 = vshrl.u32 %v6556, 7
        %v6558 = vsub.s32 %v6555, %v6557
        %v6559 = vrot.slane %v6551, %v6558
        %v6561 = vunpack.c.l.s4 1934713408
        %v6562 = vunpack.c.0.s8 %v6561
        %v6563 = vlaneseq
        %v6564 = vshrl.u32 %v6563, 7
        %v6565 = vsub.s32 %v6562, %v6564
        %v6566 = vrot.slane %v6552, %v6565
        %v6567 = vcombine.low %v6542, %v6550
        %v6568 = vcombine.high %v6542, %v6550
        %v6570 = vunpack.c.l.s4 1934713408
        %v6571 = vunpack.c.0.s8 %v6570
        %v6572 = vlaneseq
        %v6573 = vshrl.u32 %v6572, 7
        %v6574 = vsub.s32 %v6571, %v6573
        %v6575 = vrot.slane %v6567, %v6574
        %v6577 = vunpack.c.l.s4 1934713408
        %v6578 = vunpack.c.0.s8 %v6577
        %v6579 = vlaneseq
        %v6580 = vshrl.u32 %v6579, 7
        %v6581 = vsub.s32 %v6578, %v6580
        %v6582 = vrot.slane %v6568, %v6581
        %v6583 = vcombine.low %v6559, %v6575
        %v6584 = vcombine.high %v6559, %v6575
        %v6585 = vcombine.low %v6566, %v6582
        %v6586 = vcombine.high %v6566, %v6582
        %v6587 = vcombine.low %v6083, %v6090
        %v6589 = vunpack.c.l.s4 1983009808
        %v6590 = vunpack.c.0.s8 %v6589
        %v6591 = vlaneseq
        %v6592 = vshrl.u32 %v6591, 7
        %v6593 = vsub.s32 %v6590, %v6592
        %v6594 = vrot.slane %v6587, %v6593
        %v6595 = vcombine.low %v6107, %v6108
        %v6597 = vunpack.c.l.s4 1983009808
        %v6598 = vunpack.c.0.s8 %v6597
        %v6599 = vlaneseq
        %v6600 = vshrl.u32 %v6599, 7
        %v6601 = vsub.s32 %v6598, %v6600
        %v6602 = vrot.slane %v6595, %v6601
        %v6603 = vcombine.low %v6099, %v6106
        %v6605 = vunpack.c.l.s4 1983009808
        %v6606 = vunpack.c.0.s8 %v6605
        %v6607 = vlaneseq
        %v6608 = vshrl.u32 %v6607, 7
        %v6609 = vsub.s32 %v6606, %v6608
        %v6610 = vrot.slane %v6603, %v6609
        %v6611 = vcombine.low %v6109, %v6110
        %v6613 = vunpack.c.l.s4 1983009808
        %v6614 = vunpack.c.0.s8 %v6613
        %v6615 = vlaneseq
        %v6616 = vshrl.u32 %v6615, 7
        %v6617 = vsub.s32 %v6614, %v6616
        %v6618 = vrot.slane %v6611, %v6617
        %v6619 = vcombine.low %v6594, %v6602
        %v6620 = vcombine.high %v6594, %v6602
        %v6622 = vunpack.c.l.s4 1934713408
        %v6623 = vunpack.c.0.s8 %v6622
        %v6624 = vlaneseq
        %v6625 = vshrl.u32 %v6624, 7
        %v6626 = vsub.s32 %v6623, %v6625
        %v6627 = vrot.slane %v6619, %v6626
        %v6629 = vunpack.c.l.s4 1934713408
        %v6630 = vunpack.c.0.s8 %v6629
        %v6631 = vlaneseq
        %v6632 = vshrl.u32 %v6631, 7
        %v6633 = vsub.s32 %v6630, %v6632
        %v6634 = vrot.slane %v6620, %v6633
        %v6635 = vcombine.low %v6610, %v6618
        %v6636 = vcombine.high %v6610, %v6618
        %v6638 = vunpack.c.l.s4 1934713408
        %v6639 = vunpack.c.0.s8 %v6638
        %v6640 = vlaneseq
        %v6641 = vshrl.u32 %v6640, 7
        %v6642 = vsub.s32 %v6639, %v6641
        %v6643 = vrot.slane %v6635, %v6642
        %v6645 = vunpack.c.l.s4 1934713408
        %v6646 = vunpack.c.0.s8 %v6645
        %v6647 = vlaneseq
        %v6648 = vshrl.u32 %v6647, 7
        %v6649 = vsub.s32 %v6646, %v6648
        %v6650 = vrot.slane %v6636, %v6649
        %v6651 = vcombine.low %v6627, %v6643
        %v6652 = vcombine.high %v6627, %v6643
        %v6653 = vcombine.low %v6634, %v6650
        %v6654 = vcombine.high %v6634, %v6650
        %v6655 = vcombine.low %v6151, %v6158
        %v6657 = vunpack.c.l.s4 1983009808
        %v6658 = vunpack.c.0.s8 %v6657
        %v6659 = vlaneseq
        %v6660 = vshrl.u32 %v6659, 7
        %v6661 = vsub.s32 %v6658, %v6660
        %v6662 = vrot.slane %v6655, %v6661
        %v6663 = vcombine.low %v6175, %v6176
        %v6665 = vunpack.c.l.s4 1983009808
        %v6666 = vunpack.c.0.s8 %v6665
        %v6667 = vlaneseq
        %v6668 = vshrl.u32 %v6667, 7
        %v6669 = vsub.s32 %v6666, %v6668
        %v6670 = vrot.slane %v6663, %v6669
        %v6671 = vcombine.low %v6167, %v6174
        %v6673 = vunpack.c.l.s4 1983009808
        %v6674 = vunpack.c.0.s8 %v6673
        %v6675 = vlaneseq
        %v6676 = vshrl.u32 %v6675, 7
        %v6677 = vsub.s32 %v6674, %v6676
        %v6678 = vrot.slane %v6671, %v6677
        %v6679 = vcombine.low %v6177, %v6178
        %v6681 = vunpack.c.l.s4 1983009808
        %v6682 = vunpack.c.0.s8 %v6681
        %v6683 = vlaneseq
        %v6684 = vshrl.u32 %v6683, 7
        %v6685 = vsub.s32 %v6682, %v6684
        %v6686 = vrot.slane %v6679, %v6685
        %v6687 = vcombine.low %v6662, %v6670
        %v6688 = vcombine.high %v6662, %v6670
        %v6690 = vunpack.c.l.s4 1934713408
        %v6691 = vunpack.c.0.s8 %v6690
        %v6692 = vlaneseq
        %v6693 = vshrl.u32 %v6692, 7
        %v6694 = vsub.s32 %v6691, %v6693
        %v6695 = vrot.slane %v6687, %v6694
        %v6697 = vunpack.c.l.s4 1934713408
        %v6698 = vunpack.c.0.s8 %v6697
        %v6699 = vlaneseq
        %v6700 = vshrl.u32 %v6699, 7
        %v6701 = vsub.s32 %v6698, %v6700
        %v6702 = vrot.slane %v6688, %v6701
        %v6703 = vcombine.low %v6678, %v6686
        %v6704 = vcombine.high %v6678, %v6686
        %v6706 = vunpack.c.l.s4 1934713408
        %v6707 = vunpack.c.0.s8 %v6706
        %v6708 = vlaneseq
        %v6709 = vshrl.u32 %v6708, 7
        %v6710 = vsub.s32 %v6707, %v6709
        %v6711 = vrot.slane %v6703, %v6710
        %v6713 = vunpack.c.l.s4 1934713408
        %v6714 = vunpack.c.0.s8 %v6713
        %v6715 = vlaneseq
        %v6716 = vshrl.u32 %v6715, 7
        %v6717 = vsub.s32 %v6714, %v6716
        %v6718 = vrot.slane %v6704, %v6717
        %v6719 = vcombine.low %v6695, %v6711
        %v6720 = vcombine.high %v6695, %v6711
        %v6721 = vcombine.low %v6702, %v6718
        %v6722 = vcombine.high %v6702, %v6718
        %v6723 = vcombine.low %v6219, %v6226
        %v6725 = vunpack.c.l.s4 1983009808
        %v6726 = vunpack.c.0.s8 %v6725
        %v6727 = vlaneseq
        %v6728 = vshrl.u32 %v6727, 7
        %v6729 = vsub.s32 %v6726, %v6728
        %v6730 = vrot.slane %v6723, %v6729
        %v6731 = vcombine.low %v6243, %v6244
        %v6733 = vunpack.c.l.s4 1983009808
        %v6734 = vunpack.c.0.s8 %v6733
        %v6735 = vlaneseq
        %v6736 = vshrl.u32 %v6735, 7
        %v6737 = vsub.s32 %v6734, %v6736
        %v6738 = vrot.slane %v6731, %v6737
        %v6739 = vcombine.low %v6235, %v6242
        %v6741 = vunpack.c.l.s4 1983009808
        %v6742 = vunpack.c.0.s8 %v6741
        %v6743 = vlaneseq
        %v6744 = vshrl.u32 %v6743, 7
        %v6745 = vsub.s32 %v6742, %v6744
        %v6746 = vrot.slane %v6739, %v6745
        %v6747 = vcombine.low %v6245, %v6246
        %v6749 = vunpack.c.l.s4 1983009808
        %v6750 = vunpack.c.0.s8 %v6749
        %v6751 = vlaneseq
        %v6752 = vshrl.u32 %v6751, 7
        %v6753 = vsub.s32 %v6750, %v6752
        %v6754 = vrot.slane %v6747, %v6753
        %v6755 = vcombine.low %v6730, %v6738
        %v6756 = vcombine.high %v6730, %v6738
        %v6758 = vunpack.c.l.s4 1934713408
        %v6759 = vunpack.c.0.s8 %v6758
        %v6760 = vlaneseq
        %v6761 = vshrl.u32 %v6760, 7
        %v6762 = vsub.s32 %v6759, %v6761
        %v6763 = vrot.slane %v6755, %v6762
        %v6765 = vunpack.c.l.s4 1934713408
        %v6766 = vunpack.c.0.s8 %v6765
        %v6767 = vlaneseq
        %v6768 = vshrl.u32 %v6767, 7
        %v6769 = vsub.s32 %v6766, %v6768
        %v6770 = vrot.slane %v6756, %v6769
        %v6771 = vcombine.low %v6746, %v6754
        %v6772 = vcombine.high %v6746, %v6754
        %v6774 = vunpack.c.l.s4 1934713408
        %v6775 = vunpack.c.0.s8 %v6774
        %v6776 = vlaneseq
        %v6777 = vshrl.u32 %v6776, 7
        %v6778 = vsub.s32 %v6775, %v6777
        %v6779 = vrot.slane %v6771, %v6778
        %v6781 = vunpack.c.l.s4 1934713408
        %v6782 = vunpack.c.0.s8 %v6781
        %v6783 = vlaneseq
        %v6784 = vshrl.u32 %v6783, 7
        %v6785 = vsub.s32 %v6782, %v6784
        %v6786 = vrot.slane %v6772, %v6785
        %v6787 = vcombine.low %v6763, %v6779
        %v6788 = vcombine.high %v6763, %v6779
        %v6789 = vcombine.low %v6770, %v6786
        %v6790 = vcombine.high %v6770, %v6786
        %v6791 = vcombine.low %v6287, %v6294
        %v6793 = vunpack.c.l.s4 1983009808
        %v6794 = vunpack.c.0.s8 %v6793
        %v6795 = vlaneseq
        %v6796 = vshrl.u32 %v6795, 7
        %v6797 = vsub.s32 %v6794, %v6796
        %v6798 = vrot.slane %v6791, %v6797
        %v6799 = vcombine.low %v6311, %v6312
        %v6801 = vunpack.c.l.s4 1983009808
        %v6802 = vunpack.c.0.s8 %v6801
        %v6803 = vlaneseq
        %v6804 = vshrl.u32 %v6803, 7
        %v6805 = vsub.s32 %v6802, %v6804
        %v6806 = vrot.slane %v6799, %v6805
        %v6807 = vcombine.low %v6303, %v6310
        %v6809 = vunpack.c.l.s4 1983009808
        %v6810 = vunpack.c.0.s8 %v6809
        %v6811 = vlaneseq
        %v6812 = vshrl.u32 %v6811, 7
        %v6813 = vsub.s32 %v6810, %v6812
        %v6814 = vrot.slane %v6807, %v6813
        %v6815 = vcombine.low %v6313, %v6314
        %v6817 = vunpack.c.l.s4 1983009808
        %v6818 = vunpack.c.0.s8 %v6817
        %v6819 = vlaneseq
        %v6820 = vshrl.u32 %v6819, 7
        %v6821 = vsub.s32 %v6818, %v6820
        %v6822 = vrot.slane %v6815, %v6821
        %v6823 = vcombine.low %v6798, %v6806
        %v6824 = vcombine.high %v6798, %v6806
        %v6826 = vunpack.c.l.s4 1934713408
        %v6827 = vunpack.c.0.s8 %v6826
        %v6828 = vlaneseq
        %v6829 = vshrl.u32 %v6828, 7
        %v6830 = vsub.s32 %v6827, %v6829
        %v6831 = vrot.slane %v6823, %v6830
        %v6833 = vunpack.c.l.s4 1934713408
        %v6834 = vunpack.c.0.s8 %v6833
        %v6835 = vlaneseq
        %v6836 = vshrl.u32 %v6835, 7
        %v6837 = vsub.s32 %v6834, %v6836
        %v6838 = vrot.slane %v6824, %v6837
        %v6839 = vcombine.low %v6814, %v6822
        %v6840 = vcombine.high %v6814, %v6822
        %v6842 = vunpack.c.l.s4 1934713408
        %v6843 = vunpack.c.0.s8 %v6842
        %v6844 = vlaneseq
        %v6845 = vshrl.u32 %v6844, 7
        %v6846 = vsub.s32 %v6843, %v6845
        %v6847 = vrot.slane %v6839, %v6846
        %v6849 = vunpack.c.l.s4 1934713408
        %v6850 = vunpack.c.0.s8 %v6849
        %v6851 = vlaneseq
        %v6852 = vshrl.u32 %v6851, 7
        %v6853 = vsub.s32 %v6850, %v6852
        %v6854 = vrot.slane %v6840, %v6853
        %v6855 = vcombine.low %v6831, %v6847
        %v6856 = vcombine.high %v6831, %v6847
        %v6857 = vcombine.low %v6838, %v6854
        %v6858 = vcombine.high %v6838, %v6854
        %v6859 = vcombine.low %v6355, %v6362
        %v6861 = vunpack.c.l.s4 1983009808
        %v6862 = vunpack.c.0.s8 %v6861
        %v6863 = vlaneseq
        %v6864 = vshrl.u32 %v6863, 7
        %v6865 = vsub.s32 %v6862, %v6864
        %v6866 = vrot.slane %v6859, %v6865
        %v6867 = vcombine.low %v6379, %v6380
        %v6869 = vunpack.c.l.s4 1983009808
        %v6870 = vunpack.c.0.s8 %v6869
        %v6871 = vlaneseq
        %v6872 = vshrl.u32 %v6871, 7
        %v6873 = vsub.s32 %v6870, %v6872
        %v6874 = vrot.slane %v6867, %v6873
        %v6875 = vcombine.low %v6371, %v6378
        %v6877 = vunpack.c.l.s4 1983009808
        %v6878 = vunpack.c.0.s8 %v6877
        %v6879 = vlaneseq
        %v6880 = vshrl.u32 %v6879, 7
        %v6881 = vsub.s32 %v6878, %v6880
        %v6882 = vrot.slane %v6875, %v6881
        %v6883 = vcombine.low %v6381, %v6382
        %v6885 = vunpack.c.l.s4 1983009808
        %v6886 = vunpack.c.0.s8 %v6885
        %v6887 = vlaneseq
        %v6888 = vshrl.u32 %v6887, 7
        %v6889 = vsub.s32 %v6886, %v6888
        %v6890 = vrot.slane %v6883, %v6889
        %v6891 = vcombine.low %v6866, %v6874
        %v6892 = vcombine.high %v6866, %v6874
        %v6894 = vunpack.c.l.s4 1934713408
        %v6895 = vunpack.c.0.s8 %v6894
        %v6896 = vlaneseq
        %v6897 = vshrl.u32 %v6896, 7
        %v6898 = vsub.s32 %v6895, %v6897
        %v6899 = vrot.slane %v6891, %v6898
        %v6901 = vunpack.c.l.s4 1934713408
        %v6902 = vunpack.c.0.s8 %v6901
        %v6903 = vlaneseq
        %v6904 = vshrl.u32 %v6903, 7
        %v6905 = vsub.s32 %v6902, %v6904
        %v6906 = vrot.slane %v6892, %v6905
        %v6907 = vcombine.low %v6882, %v6890
        %v6908 = vcombine.high %v6882, %v6890
        %v6910 = vunpack.c.l.s4 1934713408
        %v6911 = vunpack.c.0.s8 %v6910
        %v6912 = vlaneseq
        %v6913 = vshrl.u32 %v6912, 7
        %v6914 = vsub.s32 %v6911, %v6913
        %v6915 = vrot.slane %v6907, %v6914
        %v6917 = vunpack.c.l.s4 1934713408
        %v6918 = vunpack.c.0.s8 %v6917
        %v6919 = vlaneseq
        %v6920 = vshrl.u32 %v6919, 7
        %v6921 = vsub.s32 %v6918, %v6920
        %v6922 = vrot.slane %v6908, %v6921
        %v6923 = vcombine.low %v6899, %v6915
        %v6924 = vcombine.high %v6899, %v6915
        %v6925 = vcombine.low %v6906, %v6922
        %v6926 = vcombine.high %v6906, %v6922
        %6935 = vrot.lane.b32.xlu0 %v6448, 8
        %v6936 = vpop.permute.xlu0 %6935
        %6937 = vrot.lane.b32.xlu0 %v6516, 8
        %v6938 = vpop.permute.xlu0 %6937
        %6939 = vrot.lane.b32.xlu0 %v6584, 8
        %v6940 = vpop.permute.xlu0 %6939
        %6941 = vrot.lane.b32.xlu0 %v6652, 8
        %v6942 = vpop.permute.xlu0 %6941
        %6943 = vrot.lane.b32.xlu0 %v6720, 8
        %v6944 = vpop.permute.xlu0 %6943
        %6945 = vrot.lane.b32.xlu0 %v6788, 8
        %v6946 = vpop.permute.xlu0 %6945
        %6947 = vrot.lane.b32.xlu0 %v6856, 8
        %v6948 = vpop.permute.xlu0 %6947
        %6949 = vrot.lane.b32.xlu0 %v6924, 8
        %v6950 = vpop.permute.xlu0 %6949
        %6967 = vrot.lane.b32.xlu0 %v6449, 16
        %v6968 = vpop.permute.xlu0 %6967
        %6969 = vrot.lane.b32.xlu0 %v6517, 16
        %v6970 = vpop.permute.xlu0 %6969
        %6971 = vrot.lane.b32.xlu0 %v6585, 16
        %v6972 = vpop.permute.xlu0 %6971
        %6973 = vrot.lane.b32.xlu0 %v6653, 16
        %v6974 = vpop.permute.xlu0 %6973
        %6975 = vrot.lane.b32.xlu0 %v6721, 16
        %v6976 = vpop.permute.xlu0 %6975
        %6977 = vrot.lane.b32.xlu0 %v6789, 16
        %v6978 = vpop.permute.xlu0 %6977
        %6979 = vrot.lane.b32.xlu0 %v6857, 16
        %v6980 = vpop.permute.xlu0 %6979
        %6981 = vrot.lane.b32.xlu0 %v6925, 16
        %v6982 = vpop.permute.xlu0 %6981
        %6999 = vrot.lane.b32.xlu0 %v6450, 24
        %v7000 = vpop.permute.xlu0 %6999
        %7001 = vrot.lane.b32.xlu0 %v6518, 24
        %v7002 = vpop.permute.xlu0 %7001
        %7003 = vrot.lane.b32.xlu0 %v6586, 24
        %v7004 = vpop.permute.xlu0 %7003
        %7005 = vrot.lane.b32.xlu0 %v6654, 24
        %v7006 = vpop.permute.xlu0 %7005
        %7007 = vrot.lane.b32.xlu0 %v6722, 24
        %v7008 = vpop.permute.xlu0 %7007
        %7009 = vrot.lane.b32.xlu0 %v6790, 24
        %v7010 = vpop.permute.xlu0 %7009
        %7011 = vrot.lane.b32.xlu0 %v6858, 24
        %v7012 = vpop.permute.xlu0 %7011
        %7013 = vrot.lane.b32.xlu0 %v6926, 24
        %v7014 = vpop.permute.xlu0 %7013
        %v7023 = vsel %vm4013, %v6447, %v6936
        %v7024 = vsel %vm4013, %v6515, %v6938
        %v7025 = vsel %vm4013, %v6583, %v6940
        %v7026 = vsel %vm4013, %v6651, %v6942
        %v7027 = vsel %vm4013, %v6719, %v6944
        %v7028 = vsel %vm4013, %v6787, %v6946
        %v7029 = vsel %vm4013, %v6855, %v6948
        %v7030 = vsel %vm4013, %v6923, %v6950
        %v7031 = vsel %vm4766, %v7023, %v6968
        %v7032 = vsel %vm4766, %v7024, %v6970
        %v7033 = vsel %vm4766, %v7025, %v6972
        %v7034 = vsel %vm4766, %v7026, %v6974
        %v7035 = vsel %vm4766, %v7027, %v6976
        %v7036 = vsel %vm4766, %v7028, %v6978
        %v7037 = vsel %vm4766, %v7029, %v6980
        %v7038 = vsel %vm4766, %v7030, %v6982
        %vm7039 = vcmask 195584
        %v7040 = vsel %vm7039, %v7031, %v7000
        %v7041 = vsel %vm7039, %v7032, %v7002
        %v7042 = vsel %vm7039, %v7033, %v7004
        %v7043 = vsel %vm7039, %v7034, %v7006
        %v7044 = vsel %vm7039, %v7035, %v7008
        %v7045 = vsel %vm7039, %v7036, %v7010
        %v7046 = vsel %vm7039, %v7037, %v7012
        %v7047 = vsel %vm7039, %v7038, %v7014
        %v7048 = vpack.c.bf16 %v7041, %v7040
        %v7049 = vpack.c.bf16 %v7043, %v7042
        %v7050 = vpack.c.bf16 %v7045, %v7044
        %v7051 = vpack.c.bf16 %v7047, %v7046
        %v7052 = vld [vmem:[%s7] sm:$0xf]
        %v7053 = vld [vmem:[%s7 + $0x4] sm:$0xf]
        %v7054 = vld [vmem:[%s7 + $0x8] sm:$0xf]
        %v7055 = vld [vmem:[%s7 + $0xc] sm:$0xf]
        %v7056 = vld [vmem:[%s8] sm:$0x1]
        %v7058 = vlaneseq
        %v7059 = vshrl.u32 %v7058, 7
        %v7060 = vsub.s32 0, %v7059
        %v7061 = vrot.slane %v7056, %v7060
        %v7067 = vunpack.c.l.b16 %v7052
        %v7068 = vunpack.c.l.b16 %v7053
        %v7069 = vunpack.c.l.b16 %v7054
        %v7070 = vunpack.c.l.b16 %v7055
        %v7071 = vpack.c.b16 %v7068, %v7067
        %v7072 = vpack.c.b16 %v7070, %v7069
        %vm7075 = vcmask 261120
        %v7077 = vsel %vm7075, %v7048, 0
        %v7080 = vsel %vm7075, %v7049, 0
        %v7083 = vsel %vm7075, %v7050, 0
        %v7086 = vsel %vm7075, %v7051, 0
        %7088 = vmatprep.subr.bf16.mxu0 0
        %7089 = vmatpush1.bf16.msra.mxu0 0
        %7090 = vmatprep.subr.bf16.mxu0 0
        %7091 = vmatpush1.bf16.msra.mxu0 0
        %7092 = vmatprep.subr.bf16.mxu0 0
        %7093 = vmatpush1.bf16.msra.mxu0 0
        %7094 = vmatprep.subr.bf16.mxu0 0
        %7095 = vmatpush1.bf16.msra.mxu0 0
        %7096 = vmatprep.subr.bf16.mxu0 0
        %7097 = vmatpush1.bf16.msra.mxu0 0
        %7098 = vmatprep.subr.bf16.mxu0 0
        %7099 = vmatpush1.bf16.msra.mxu0 0
        %7100 = vmatprep.subr.bf16.mxu0 0
        %7101 = vmatpush1.bf16.msra.mxu0 %v7072
        %7102 = vmatprep.subr.bf16.mxu0 0
        %7103 = vmatpush1.bf16.msra.mxu0 %v7071
        %7104 = vmatprep.subr.bf16.mxu0 0
        %7105 = vmatpush2.bf16.msra.mxu0 0
        %7106 = vmatprep.subr.bf16.mxu0 0
        %7107 = vmatpush2.bf16.msra.mxu0 0
        %7108 = vmatprep.subr.bf16.mxu0 0
        %7109 = vmatpush2.bf16.msra.mxu0 0
        %7110 = vmatprep.subr.bf16.mxu0 0
        %7111 = vmatpush2.bf16.msra.mxu0 0
        %7112 = vmatprep.subr.bf16.mxu0 0
        %7113 = vmatpush2.bf16.msra.mxu0 0
        %7114 = vmatprep.subr.bf16.mxu0 0
        %7115 = vmatpush2.bf16.msra.mxu0 0
        %7116 = vmatprep.subr.bf16.mxu0 0
        %7117 = vmatpush2.bf16.msra.mxu0 0
        %7118 = vmatprep.subr.bf16.mxu0 0
        %7119 = vmatpush2.bf16.msra.mxu0 0
        %7120 = vmatprep.mubr.bf16.mxu0 0
        %7121 = vmatmul.mubr.bf16.gmra.mxu0 %v7077
        %v7122 = vpop.f32.mrf.mxu0
        %v7123 = vadd.f32 %v7061, %v7122
        %v7124 = vpop.f32.mrf.mxu0
        %v7125 = vpop.f32.mrf.mxu0
        %v7126 = vadd.f32 %v7061, %v7125
        %v7127 = vpop.f32.mrf.mxu0
        %7128 = vmatprep.mubr.bf16.mxu0 0
        %7129 = vmatmul.mubr.bf16.gmra.mxu0 %v7080
        %v7130 = vpop.f32.mrf.mxu0
        %v7131 = vadd.f32 %v7061, %v7130
        %v7132 = vpop.f32.mrf.mxu0
        %v7133 = vpop.f32.mrf.mxu0
        %v7134 = vadd.f32 %v7061, %v7133
        %v7135 = vpop.f32.mrf.mxu0
        %7136 = vmatprep.mubr.bf16.mxu0 0
        %7137 = vmatmul.mubr.bf16.gmra.mxu0 %v7083
        %v7138 = vpop.f32.mrf.mxu0
        %v7139 = vadd.f32 %v7061, %v7138
        %v7140 = vpop.f32.mrf.mxu0
        %v7141 = vpop.f32.mrf.mxu0
        %v7142 = vadd.f32 %v7061, %v7141
        %v7143 = vpop.f32.mrf.mxu0
        %7144 = vmatprep.mubr.bf16.mxu0 0
        %7145 = vmatmul.mubr.bf16.gmra.mxu0 %v7086
        %v7146 = vpop.f32.mrf.mxu0
        %v7147 = vadd.f32 %v7061, %v7146
        %v7148 = vpop.f32.mrf.mxu0
        %v7149 = vpop.f32.mrf.mxu0
        %v7150 = vadd.f32 %v7061, %v7149
        %v7151 = vpop.f32.mrf.mxu0
        %7152 = vdwg.mxu0
        %v7153 = vpack.c.bf16 %v7126, %v7123
        %v7154 = vpack.c.bf16 %v7134, %v7131
        %v7155 = vpack.c.bf16 %v7142, %v7139
        %v7156 = vpack.c.bf16 %v7150, %v7147
        %v7161 = vunpack.c.l.b16 %v7153
        %v7162 = vunpack.c.h.b16 %v7153
        %v7163 = vunpack.c.l.b16 %v7154
        %v7164 = vunpack.c.h.b16 %v7154
        %v7165 = vunpack.c.l.b16 %v7155
        %v7166 = vunpack.c.h.b16 %v7155
        %v7167 = vunpack.c.l.b16 %v7156
        %v7168 = vunpack.c.h.b16 %v7156
        %v7169 = vpack.c.b16 %v7161, %v7161
        %v7170 = vpack.c.b16 %v7162, %v7162
        %v7171 = vpack.c.b16 %v7163, %v7163
        %v7172 = vpack.c.b16 %v7164, %v7164
        %v7173 = vpack.c.b16 %v7165, %v7165
        %v7174 = vpack.c.b16 %v7166, %v7166
        %v7175 = vpack.c.b16 %v7167, %v7167
        %v7176 = vpack.c.b16 %v7168, %v7168
        %7185 = vst [vmem:[%s326] sm:$0xf] %v7169
        %7186 = vst [vmem:[%s326 + $0x4] sm:$0xf] %v7170
        %7187 = vst [vmem:[%s326 + $0x8] sm:$0xf] %v7171
        %7188 = vst [vmem:[%s326 + $0xc] sm:$0xf] %v7172
        %7189 = vst [vmem:[%s326 + $0x10] sm:$0xf] %v7173
        %7190 = vst [vmem:[%s326 + $0x14] sm:$0xf] %v7174
        %7191 = vst [vmem:[%s326 + $0x18] sm:$0xf] %v7175
        %7192 = vst [vmem:[%s326 + $0x1c] sm:$0xf] %v7176
        %s7193 = sand.u32 %s225, 1
        %s7194 = scalar_lea.sflag [#allocation3], %s7193
        %s7195 = sand.u32 %s225, 1
        %s7196 = smul.addr %s7195, 32
        %s7197 = scalar_lea.vmem [#allocation2], %s7196
        // Predicated region
        $region57: #{tpu_custom_call.1} parent=55 // pred_check
          %p7198 = pneg %p235
        $region58: #{tpu_custom_call.1} parent=55 // pred_check_branch
          %7200 = sbr.rel (%p7198) target = $region60
        $region59: #{tpu_custom_call.1} parent=55 // pred_region
          %s7201 = smul.u32 8, %s23
          %s7203 = ssub.s32 512, 512
          %7204 = vsyncadd %s7194, %s7203
          %s7205 = smul.addr %s7201, 64
          %s7206 = scalar_lea.hbm %s9, %s7205
          %s7207 = sshll.u32 %s7197, 4
          %s7208 = int_to_ptr.vmem [resolvable:$true] %s7207
          %7213 = dma.vmem_to_hbm [thread:$0]  %s7208, 512, %s7206, %s7194, 64, 64, 4
        $region60: #{tpu_custom_call.1} parent=55 // pred_fallthru
          _
      $region56: #{tpu_custom_call.1} parent=5 // pred_fallthru
        _
      %p7214 = scmp.le.s32.totalorder 2, %s18
      // Predicated region
      $region61: #{tpu_custom_call.1} parent=5 // pred_check
        %p7215 = pneg %p7214
      $region62: #{tpu_custom_call.1} parent=5 // pred_check_branch
        %7217 = sbr.rel (%p7215) target = $region64
      $region63: #{tpu_custom_call.1} parent=5 // pred_region
        %s7218 = ssub.s32 %s18, 2
        // Predicated region
        $region65: #{tpu_custom_call.1} parent=63 // pred_check
          %p7219 = pneg %p241
        $region66: #{tpu_custom_call.1} parent=63 // pred_check_branch
          %7221 = sbr.rel (%p7219) target = $region68
        $region67: #{tpu_custom_call.1} parent=63 // pred_region
          %s7222 = sand.u32 %s226, 1
          %s7223 = scalar_lea.sflag [#allocation3], %s7222
          %s7224 = sand.u32 %s226, 1
          %s7225 = smul.addr %s7224, 32
          %s7226 = scalar_lea.vmem [#allocation2], %s7225
          %7227 = dma.done %s7223, 512
        $region68: #{tpu_custom_call.1} parent=63 // pred_fallthru
          _
      $region64: #{tpu_custom_call.1} parent=5 // pred_fallthru
        _
    $region6: #{tpu_custom_call.1} parent=1 // loop_footer
      %s22 = sadd.s32 1, %s18
    $region7: #{tpu_custom_call.1} parent=1 // loop_footer_branch
      %17 = sbr.rel target = $region3
    $region8: #{tpu_custom_call.1} parent=1 // loop_exit
      _
    %7228 = vsyncpa [#allocation3], 1
    %s7229 = scalar_lea.sflag [#allocation3], 1
    %7230 = vsyncpa %s7229, 1

</llo_original>
